<compile_context>
chip_gen: v5e
topology: v5e:2x2
jax: 0.10.0
libtpu: 0.0.40
codegen_flags: <defaults>
</compile_context>

<pallas_src>
import functools

import jax
import jax.numpy as jnp
from jax import lax
from jax.experimental import pallas as pl
from jax.experimental.pallas import tpu as pltpu

LANE = 128      # lane width  (last dim alignment)
SUBLANE = 8     # sublane width (second-to-last dim alignment)


def _round_up(x, m):
    return ((x + m - 1) // m) * m


# ----------------------------------------------------------------------------
# Fused kernel: all GRU layers + relu + avg/max pool + fc.
# Gate order follows PyTorch: r, z, n (each gate in its own Hpad lane block).
# ----------------------------------------------------------------------------
def _make_fused_kernel(num_layers, T, Btile, Hpad, Ipad, Opad):
    inv_T = 1.0 / float(T)
    unroll = True if T <= 16 else 8

    def kernel(*refs):
        idx = 0
        x_ref = refs[idx]; idx += 1
        layer_refs = []
        for _ in range(num_layers):
            layer_refs.append(refs[idx:idx + 4]); idx += 4      # (wih, whh, bgi, bhn)
        wavg_ref, wmax_ref, fcb_ref = refs[idx:idx + 3]; idx += 3
        out_ref = refs[idx]; idx += 1
        gi_s, seq_s, h_s, sum_s, max_s = refs[idx:idx + 5]

        H = Hpad

        for layer in range(num_layers):
            wih_ref, whh_ref, bgi_ref, bhn_ref = layer_refs[layer]
            is_last = (layer == num_layers - 1)

            # ---- hoisted input projection: one big matmul per layer ----
            if layer == 0:
                src2d = x_ref[...].reshape(T * Btile, Ipad)
            else:
                src2d = seq_s[...]                               # (T*Btile, Hpad)
            gi_s[...] = (
                jnp.dot(src2d, wih_ref[...], preferred_element_type=jnp.float32)
                + bgi_ref[...]
            )

            # ---- reset recurrent / pooling state ----
            h_s[...] = jnp.zeros_like(h_s)
            if is_last:
                sum_s[...] = jnp.zeros_like(sum_s)
                max_s[...] = jnp.zeros_like(max_s)   # relu output >= 0, so 0-init is exact

            whh = whh_ref[...]       # (Hpad, 3*Hpad), loop invariant
            bhn = bhn_ref[...]       # (1, Hpad),      loop invariant

            def step(t, carry, _is_last=is_last):
                off = t * Btile
                if not isinstance(off, int):
                    off = pl.multiple_of(off, Btile)
                gi_t = gi_s[pl.ds(off, Btile), :]                # (Btile, 3*Hpad)
                h = h_s[...]                                     # (Btile, Hpad)
                gh = jnp.dot(h, whh, preferred_element_type=jnp.float32)
                r = jax.nn.sigmoid(gi_t[:, 0:H] + gh[:, 0:H])
                z = jax.nn.sigmoid(gi_t[:, H:2 * H] + gh[:, H:2 * H])
                n = jnp.tanh(gi_t[:, 2 * H:3 * H] + r * (gh[:, 2 * H:3 * H] + bhn))
                h_new = (1.0 - z) * n + z * h
                h_s[...] = h_new
                if _is_last:
                    # fused relu + running avg/max pooling
                    y = jnp.maximum(h_new, 0.0)
                    sum_s[...] = sum_s[...] + y
                    max_s[...] = jnp.maximum(max_s[...], y)
                else:
                    seq_s[pl.ds(off, Btile), :] = h_new
                return carry

            lax.fori_loop(0, T, step, 0, unroll=unroll)

        # ---- final Linear: concat avoided via split weights ----
        avg = sum_s[...] * inv_T
        out = (
            jnp.dot(avg, wavg_ref[...], preferred_element_type=jnp.float32)
            + jnp.dot(max_s[...], wmax_ref[...], preferred_element_type=jnp.float32)
            + fcb_ref[...]
        )
        out_ref[...] = out.astype(out_ref.dtype)

    return kernel


# ----------------------------------------------------------------------------
# Parameter init (PyTorch-style layout) and one-time pre-pad/pre-transpose.
# ----------------------------------------------------------------------------
def init_params(key, input_size, rnn_size, num_layers, output_size):
    params = {"gru": []}
    H = rnn_size
    for layer in range(num_layers):
        in_sz = input_size if layer == 0 else H
        k = 1.0 / jnp.sqrt(H)
        key, k1, k2, k3, k4 = jax.random.split(key, 5)
        w_ih = jax.random.uniform(k1, (3 * H, in_sz), jnp.float32, -k, k)
        w_hh = jax.random.uniform(k2, (3 * H, H), jnp.float32, -k, k)
        b_ih = jax.random.uniform(k3, (3 * H,), jnp.float32, -k, k)
        b_hh = jax.random.uniform(k4, (3 * H,), jnp.float32, -k, k)
        params["gru"].append((w_ih, w_hh, b_ih, b_hh))
    key, k1, k2 = jax.random.split(key, 3)
    lin_in = 2 * H  # feature_pool == 'concat'
    kk = 1.0 / jnp.sqrt(lin_in)
    params["fc_w"] = jax.random.uniform(k1, (output_size, lin_in), jnp.float32, -kk, kk)
    params["fc_b"] = jax.random.uniform(k2, (output_size,), jnp.float32, -kk, kk)
    return params


def prepare_params(params):
    """Pre-transpose + pad weights into the kernel's lane-aligned layout (done once)."""
    H = params["gru"][0][1].shape[1]           # w_hh: (3H, H)
    input_size = params["gru"][0][0].shape[1]
    output_size = params["fc_w"].shape[0]
    Hpad = _round_up(H, LANE)
    Ipad = _round_up(input_size, LANE)
    Opad = _round_up(output_size, LANE)

    layers = []
    for layer, (w_ih, w_hh, b_ih, b_hh) in enumerate(params["gru"]):
        in_size = w_ih.shape[1]
        in_pad = Ipad if layer == 0 else Hpad
        wih_p = jnp.zeros((in_pad, 3 * Hpad), jnp.float32)
        whh_p = jnp.zeros((Hpad, 3 * Hpad), jnp.float32)
        bgi_p = jnp.zeros((1, 3 * Hpad), jnp.float32)
        bhn_p = jnp.zeros((1, Hpad), jnp.float32)
        for g in range(3):
            wih_p = wih_p.at[:in_size, g * Hpad:g * Hpad + H].set(
                jnp.transpose(w_ih[g * H:(g + 1) * H, :]))
            whh_p = whh_p.at[:H, g * Hpad:g * Hpad + H].set(
                jnp.transpose(w_hh[g * H:(g + 1) * H, :]))
        # combined biases: (b_ir+b_hr, b_iz+b_hz, b_in) folded into hoisted projection
        bgi_p = bgi_p.at[0, 0:H].set(b_ih[0:H] + b_hh[0:H])
        bgi_p = bgi_p.at[0, Hpad:Hpad + H].set(b_ih[H:2 * H] + b_hh[H:2 * H])
        bgi_p = bgi_p.at[0, 2 * Hpad:2 * Hpad + H].set(b_ih[2 * H:3 * H])
        bhn_p = bhn_p.at[0, 0:H].set(b_hh[2 * H:3 * H])
        layers.append((wih_p, whh_p, bgi_p, bhn_p))

    fc_w, fc_b = params["fc_w"], params["fc_b"]
    w_avg = jnp.zeros((Hpad, Opad), jnp.float32).at[:H, :output_size].set(
        jnp.transpose(fc_w[:, :H]))
    w_max = jnp.zeros((Hpad, Opad), jnp.float32).at[:H, :output_size].set(
        jnp.transpose(fc_w[:, H:]))
    fcb_p = jnp.zeros((1, Opad), jnp.float32).at[0, :output_size].set(fc_b)
    return {"layers": tuple(layers), "w_avg": w_avg, "w_max": w_max, "fc_b": fcb_p}


# ----------------------------------------------------------------------------
# MotionDiscriminator forward (feature_pool='concat')
# ----------------------------------------------------------------------------
@functools.partial(jax.jit, static_argnames=("output_size",))
def motion_discriminator_forward(sequence, prepped, *, output_size):
    """sequence: [batch, seq_len, input_size] -> [batch, output_size]."""
    layers = prepped["layers"]
    w_avg, w_max, fc_b = prepped["w_avg"], prepped["w_max"], prepped["fc_b"]

    B, T, I = sequence.shape
    num_layers = len(layers)
    Ipad = layers[0][0].shape[0]
    Hpad = layers[0][1].shape[0]
    Opad = w_avg.shape[1]
    Btile = SUBLANE
    Bpad = _round_up(B, Btile)

    # [B,T,I] -> [T,B,I], pad batch to sublane tile, features to lane tile.
    x = jnp.transpose(sequence, (1, 0, 2)).astype(jnp.float32)
    x = jnp.pad(x, ((0, 0), (0, Bpad - B), (0, Ipad - I)))

    flat_weights = []
    in_specs = [pl.BlockSpec((T, Btile, Ipad), lambda b: (0, b, 0))]
    for (wih, whh, bgi, bhn) in layers:
        for w in (wih, whh, bgi, bhn):
            flat_weights.append(w)
            in_specs.append(pl.BlockSpec(w.shape, lambda b: (0, 0)))
    for w in (w_avg, w_max, fc_b):
        flat_weights.append(w)
        in_specs.append(pl.BlockSpec(w.shape, lambda b: (0, 0)))

    # VMEM budget (inputs/outputs double-buffered + scratch) and cost estimate.
    weight_bytes = 4 * sum(int(w.size) for w in flat_weights)
    x_block_bytes = 4 * T * Btile * Ipad
    out_block_bytes = 4 * Btile * Opad
    scratch_bytes = 4 * (T * Btile * 3 * Hpad + T * Btile * Hpad + 3 * Btile * Hpad)
    vmem_limit = int(min(
        100 * (1 << 20),
        max(8 * (1 << 20),
            2 * (x_block_bytes + weight_bytes + out_block_bytes)
            + scratch_bytes + (1 << 20))))

    flops = 0
    for layer in range(num_layers):
        in_p = Ipad if layer == 0 else Hpad
        flops += 2 * T * Bpad * in_p * 3 * Hpad      # hoisted input projection
        flops += 2 * T * Bpad * Hpad * 3 * Hpad      # recurrent matmuls
    flops += 2 * 2 * Bpad * Hpad * Opad              # final fc (avg + max halves)
    transcendentals = 3 * num_layers * T * Bpad * Hpad
    bytes_accessed = 4 * (int(x.size) + sum(int(w.size) for w in flat_weights)
                          + Bpad * Opad)

    kernel = _make_fused_kernel(num_layers, T, Btile, Hpad, Ipad, Opad)

    out = pl.pallas_call(
        kernel,
        out_shape=jax.ShapeDtypeStruct((Bpad, Opad), jnp.float32),
        grid=(Bpad // Btile,),
        in_specs=in_specs,
        out_specs=pl.BlockSpec((Btile, Opad), lambda b: (b, 0)),
        scratch_shapes=[
            pltpu.VMEM((T * Btile, 3 * Hpad), jnp.float32),   # hoisted gate projections
            pltpu.VMEM((T * Btile, Hpad), jnp.float32),       # previous-layer sequence
            pltpu.VMEM((Btile, Hpad), jnp.float32),           # h state
            pltpu.VMEM((Btile, Hpad), jnp.float32),           # running sum (avg pool)
            pltpu.VMEM((Btile, Hpad), jnp.float32),           # running max (max pool)
        ],
        compiler_params=pltpu.CompilerParams(
            dimension_semantics=("parallel",),
            vmem_limit_bytes=vmem_limit,
        ),
        cost_estimate=pl.CostEstimate(
            flops=flops,
            transcendentals=transcendentals,
            bytes_accessed=bytes_accessed),
    )(x, *flat_weights)

    return out[:B, :output_size]


# ----------------------------------------------------------------------------
# Pure-JAX reference (mirrors PyTorch semantics) for a correctness check.
# ----------------------------------------------------------------------------
def reference_forward(sequence, params):
    x = jnp.transpose(sequence, (1, 0, 2)).astype(jnp.float32)  # [T, B, I]
    T, B, _ = x.shape
    for (w_ih, w_hh, b_ih, b_hh) in params["gru"]:
        H = w_hh.shape[1]

        def cell(h, xt):
            gi = xt @ w_ih.T + b_ih
            gh = h @ w_hh.T + b_hh
            r = jax.nn.sigmoid(gi[:, :H] + gh[:, :H])
            z = jax.nn.sigmoid(gi[:, H:2 * H] + gh[:, H:2 * H])
            n = jnp.tanh(gi[:, 2 * H:] + r * gh[:, 2 * H:])
            h_new = (1.0 - z) * n + z * h
            return h_new, h_new

        _, ys = lax.scan(cell, jnp.zeros((B, H), jnp.float32), x)
        x = ys
    y = jax.nn.relu(x)                                  # [T, B, H]
    avg = jnp.mean(y, axis=0)
    mx = jnp.max(y, axis=0)
    feat = jnp.concatenate([avg, mx], axis=1)
    return feat @ params["fc_w"].T + params["fc_b"]


if __name__ == "__main__":
    # Small shapes consistent with MotionDiscriminator(rnn_size, input_size, num_layers)
    batch, seqlen, input_size = 2, 8, 16
    rnn_size, num_layers, output_size = 32, 2, 2

    key = jax.random.PRNGKey(0)
    key, pkey, xkey = jax.random.split(key, 3)
    params = init_params(pkey, input_size, rnn_size, num_layers, output_size)
    prepped = prepare_params(params)   # pre-transposed / pre-padded, done once
    sequence = jax.random.normal(xkey, (batch, seqlen, input_size), jnp.float32)

    out = motion_discriminator_forward(sequence, prepped, output_size=output_size)
    out = jax.block_until_ready(out)

    ref = reference_forward(sequence, params)
    assert out.shape == (batch, output_size)
    assert jnp.allclose(out, ref, atol=1e-4, rtol=1e-4), (out, ref)

    print("KERNEL_OK")
</pallas_src>

<mosaic_0001>
module attributes {stable_mosaic.version = 11 : i64} {
  func.func @kernel(%arg0: i32, %arg1: memref<8x8x128xf32, #tpu.memory_space<vmem>>, %arg2: memref<128x384xf32, #tpu.memory_space<vmem>>, %arg3: memref<128x384xf32, #tpu.memory_space<vmem>>, %arg4: memref<1x384xf32, #tpu.memory_space<vmem>>, %arg5: memref<1x128xf32, #tpu.memory_space<vmem>>, %arg6: memref<128x384xf32, #tpu.memory_space<vmem>>, %arg7: memref<128x384xf32, #tpu.memory_space<vmem>>, %arg8: memref<1x384xf32, #tpu.memory_space<vmem>>, %arg9: memref<1x128xf32, #tpu.memory_space<vmem>>, %arg10: memref<128x128xf32, #tpu.memory_space<vmem>>, %arg11: memref<128x128xf32, #tpu.memory_space<vmem>>, %arg12: memref<1x128xf32, #tpu.memory_space<vmem>>, %arg13: memref<8x128xf32, #tpu.memory_space<vmem>>, %arg14: memref<64x384xf32, #tpu.memory_space<vmem>>, %arg15: memref<64x128xf32, #tpu.memory_space<vmem>>, %arg16: memref<8x128xf32, #tpu.memory_space<vmem>>, %arg17: memref<8x128xf32, #tpu.memory_space<vmem>>, %arg18: memref<8x128xf32, #tpu.memory_space<vmem>>) attributes {dimension_semantics = [#tpu.dimension_semantics<parallel>], iteration_bounds = array<i64: 1>, scalar_prefetch = 0 : i64, scratch_operands = 5 : i64, tpu.core_type = #tpu.core_type<tc>, window_params = [{transform_indices = @transform_0, window_bounds = array<i64: 8, 8, 128>}, {pipeline_mode = #tpu.pipeline_mode<synchronous>, transform_indices = @transform_1, window_bounds = array<i64: 128, 384>}, {pipeline_mode = #tpu.pipeline_mode<synchronous>, transform_indices = @transform_2, window_bounds = array<i64: 128, 384>}, {pipeline_mode = #tpu.pipeline_mode<synchronous>, transform_indices = @transform_3, window_bounds = array<i64: 1, 384>}, {pipeline_mode = #tpu.pipeline_mode<synchronous>, transform_indices = @transform_4, window_bounds = array<i64: 1, 128>}, {pipeline_mode = #tpu.pipeline_mode<synchronous>, transform_indices = @transform_5, window_bounds = array<i64: 128, 384>}, {pipeline_mode = #tpu.pipeline_mode<synchronous>, transform_indices = @transform_6, window_bounds = array<i64: 128, 384>}, {pipeline_mode = #tpu.pipeline_mode<synchronous>, transform_indices = @transform_7, window_bounds = array<i64: 1, 384>}, {pipeline_mode = #tpu.pipeline_mode<synchronous>, transform_indices = @transform_8, window_bounds = array<i64: 1, 128>}, {pipeline_mode = #tpu.pipeline_mode<synchronous>, transform_indices = @transform_9, window_bounds = array<i64: 128, 128>}, {pipeline_mode = #tpu.pipeline_mode<synchronous>, transform_indices = @transform_10, window_bounds = array<i64: 128, 128>}, {pipeline_mode = #tpu.pipeline_mode<synchronous>, transform_indices = @transform_11, window_bounds = array<i64: 1, 128>}, {transform_indices = @transform_12, window_bounds = array<i64: 8, 128>}]} {
    %c0 = arith.constant 0 : index
    %c0_0 = arith.constant 0 : index
    %c0_1 = arith.constant 0 : index
    %0 = vector.load %arg1[%c0, %c0_0, %c0_1] : memref<8x8x128xf32, #tpu.memory_space<vmem>>, vector<8x8x128xf32>
    %1 = vector.shape_cast %0 : vector<8x8x128xf32> to vector<64x128xf32>
    %c0_2 = arith.constant 0 : index
    %c0_3 = arith.constant 0 : index
    %2 = vector.load %arg2[%c0_2, %c0_3] : memref<128x384xf32, #tpu.memory_space<vmem>>, vector<128x384xf32>
    %cst = arith.constant dense<0.000000e+00> : vector<64x384xf32>
    %3 = tpu.matmul %1, %2, %cst {dimension_numbers = #tpu.dot_dimension_numbers<[1], [0], [0], [1], [0, 0, 1, 1], [], []>} : vector<64x128xf32>, vector<128x384xf32>, vector<64x384xf32> -> vector<64x384xf32>
    %c0_4 = arith.constant 0 : index
    %c0_5 = arith.constant 0 : index
    %4 = vector.load %arg4[%c0_4, %c0_5] : memref<1x384xf32, #tpu.memory_space<vmem>>, vector<1x384xf32>
    %5 = vector.broadcast %4 : vector<1x384xf32> to vector<64x384xf32>
    %6 = arith.addf %3, %5 : vector<64x384xf32>
    %c0_6 = arith.constant 0 : index
    %c0_7 = arith.constant 0 : index
    %7 = vector.load %arg14[%c0_6, %c0_7] : memref<64x384xf32, #tpu.memory_space<vmem>>, vector<64x384xf32>
    tpu.vector_store %arg14[%c0_6, %c0_7], %6 {strides = array<i32>} : memref<64x384xf32, #tpu.memory_space<vmem>>, vector<64x384xf32>,
    %cst_8 = arith.constant 0.000000e+00 : f32
    %8 = vector.broadcast %cst_8 : f32 to vector<8x128xf32>
    %c0_9 = arith.constant 0 : index
    %c0_10 = arith.constant 0 : index
    %9 = vector.load %arg16[%c0_9, %c0_10] : memref<8x128xf32, #tpu.memory_space<vmem>>, vector<8x128xf32>
    tpu.vector_store %arg16[%c0_9, %c0_10], %8 {strides = array<i32>} : memref<8x128xf32, #tpu.memory_space<vmem>>, vector<8x128xf32>,
    %c0_11 = arith.constant 0 : index
    %c0_12 = arith.constant 0 : index
    %10 = vector.load %arg3[%c0_11, %c0_12] : memref<128x384xf32, #tpu.memory_space<vmem>>, vector<128x384xf32>
    %c0_13 = arith.constant 0 : index
    %c0_14 = arith.constant 0 : index
    %11 = vector.load %arg5[%c0_13, %c0_14] : memref<1x128xf32, #tpu.memory_space<vmem>>, vector<1x128xf32>
    %c0_i32 = arith.constant 0 : i32
    %c8_i32 = arith.constant 8 : i32
    %12 = arith.muli %c0_i32, %c8_i32 : i32
    %13 = tpu.assume_multiple %12, 8 : i32
    %14 = arith.index_cast %13 : i32 to index
    %c0_15 = arith.constant 0 : index
    %15 = vector.load %arg14[%14, %c0_15] : memref<64x384xf32, #tpu.memory_space<vmem>>, vector<8x384xf32>
    %c0_16 = arith.constant 0 : index
    %c0_17 = arith.constant 0 : index
    %16 = vector.load %arg16[%c0_16, %c0_17] : memref<8x128xf32, #tpu.memory_space<vmem>>, vector<8x128xf32>
    %cst_18 = arith.constant dense<0.000000e+00> : vector<8x384xf32>
    %17 = tpu.matmul %16, %10, %cst_18 {dimension_numbers = #tpu.dot_dimension_numbers<[1], [0], [0], [1], [0, 0, 1, 1], [], []>} : vector<8x128xf32>, vector<128x384xf32>, vector<8x384xf32> -> vector<8x384xf32>
    %18 = vector.extract_strided_slice %15 {offsets = [0, 0], sizes = [8, 128], strides = [1, 1]} : vector<8x384xf32> to vector<8x128xf32>
    %19 = vector.extract_strided_slice %17 {offsets = [0, 0], sizes = [8, 128], strides = [1, 1]} : vector<8x384xf32> to vector<8x128xf32>
    %20 = arith.addf %18, %19 : vector<8x128xf32>
    %21 = arith.negf %20 : vector<8x128xf32>
    %22 = math.exp %21 : vector<8x128xf32>
    %cst_19 = arith.constant 1.000000e+00 : f32
    %23 = vector.broadcast %cst_19 : f32 to vector<8x128xf32>
    %24 = arith.addf %23, %22 : vector<8x128xf32>
    %25 = arith.divf %23, %24 : vector<8x128xf32>
    %26 = vector.extract_strided_slice %15 {offsets = [0, 128], sizes = [8, 128], strides = [1, 1]} : vector<8x384xf32> to vector<8x128xf32>
    %27 = vector.extract_strided_slice %17 {offsets = [0, 128], sizes = [8, 128], strides = [1, 1]} : vector<8x384xf32> to vector<8x128xf32>
    %28 = arith.addf %26, %27 : vector<8x128xf32>
    %29 = arith.negf %28 : vector<8x128xf32>
    %30 = math.exp %29 : vector<8x128xf32>
    %cst_20 = arith.constant 1.000000e+00 : f32
    %31 = vector.broadcast %cst_20 : f32 to vector<8x128xf32>
    %32 = arith.addf %31, %30 : vector<8x128xf32>
    %33 = arith.divf %31, %32 : vector<8x128xf32>
    %34 = vector.extract_strided_slice %15 {offsets = [0, 256], sizes = [8, 128], strides = [1, 1]} : vector<8x384xf32> to vector<8x128xf32>
    %35 = vector.extract_strided_slice %17 {offsets = [0, 256], sizes = [8, 128], strides = [1, 1]} : vector<8x384xf32> to vector<8x128xf32>
    %36 = vector.broadcast %11 : vector<1x128xf32> to vector<8x128xf32>
    %37 = arith.addf %35, %36 : vector<8x128xf32>
    %38 = arith.mulf %25, %37 : vector<8x128xf32>
    %39 = arith.addf %34, %38 : vector<8x128xf32>
    %40 = math.tanh %39 : vector<8x128xf32>
    %cst_21 = arith.constant 1.000000e+00 : f32
    %41 = vector.broadcast %cst_21 : f32 to vector<8x128xf32>
    %42 = arith.subf %41, %33 : vector<8x128xf32>
    %43 = arith.mulf %42, %40 : vector<8x128xf32>
    %44 = arith.mulf %33, %16 : vector<8x128xf32>
    %45 = arith.addf %43, %44 : vector<8x128xf32>
    %c0_22 = arith.constant 0 : index
    %c0_23 = arith.constant 0 : index
    %46 = vector.load %arg16[%c0_22, %c0_23] : memref<8x128xf32, #tpu.memory_space<vmem>>, vector<8x128xf32>
    tpu.vector_store %arg16[%c0_22, %c0_23], %45 {strides = array<i32>} : memref<8x128xf32, #tpu.memory_space<vmem>>, vector<8x128xf32>,
    %47 = arith.index_cast %13 : i32 to index
    %c0_24 = arith.constant 0 : index
    %48 = vector.load %arg15[%47, %c0_24] : memref<64x128xf32, #tpu.memory_space<vmem>>, vector<8x128xf32>
    tpu.vector_store %arg15[%47, %c0_24], %45 {strides = array<i32>} : memref<64x128xf32, #tpu.memory_space<vmem>>, vector<8x128xf32>,
    %c1_i32 = arith.constant 1 : i32
    %c8_i32_25 = arith.constant 8 : i32
    %49 = arith.muli %c1_i32, %c8_i32_25 : i32
    %50 = tpu.assume_multiple %49, 8 : i32
    %51 = arith.index_cast %50 : i32 to index
    %c0_26 = arith.constant 0 : index
    %52 = vector.load %arg14[%51, %c0_26] : memref<64x384xf32, #tpu.memory_space<vmem>>, vector<8x384xf32>
    %c0_27 = arith.constant 0 : index
    %c0_28 = arith.constant 0 : index
    %53 = vector.load %arg16[%c0_27, %c0_28] : memref<8x128xf32, #tpu.memory_space<vmem>>, vector<8x128xf32>
    %cst_29 = arith.constant dense<0.000000e+00> : vector<8x384xf32>
    %54 = tpu.matmul %53, %10, %cst_29 {dimension_numbers = #tpu.dot_dimension_numbers<[1], [0], [0], [1], [0, 0, 1, 1], [], []>} : vector<8x128xf32>, vector<128x384xf32>, vector<8x384xf32> -> vector<8x384xf32>
    %55 = vector.extract_strided_slice %52 {offsets = [0, 0], sizes = [8, 128], strides = [1, 1]} : vector<8x384xf32> to vector<8x128xf32>
    %56 = vector.extract_strided_slice %54 {offsets = [0, 0], sizes = [8, 128], strides = [1, 1]} : vector<8x384xf32> to vector<8x128xf32>
    %57 = arith.addf %55, %56 : vector<8x128xf32>
    %58 = arith.negf %57 : vector<8x128xf32>
    %59 = math.exp %58 : vector<8x128xf32>
    %cst_30 = arith.constant 1.000000e+00 : f32
    %60 = vector.broadcast %cst_30 : f32 to vector<8x128xf32>
    %61 = arith.addf %60, %59 : vector<8x128xf32>
    %62 = arith.divf %60, %61 : vector<8x128xf32>
    %63 = vector.extract_strided_slice %52 {offsets = [0, 128], sizes = [8, 128], strides = [1, 1]} : vector<8x384xf32> to vector<8x128xf32>
    %64 = vector.extract_strided_slice %54 {offsets = [0, 128], sizes = [8, 128], strides = [1, 1]} : vector<8x384xf32> to vector<8x128xf32>
    %65 = arith.addf %63, %64 : vector<8x128xf32>
    %66 = arith.negf %65 : vector<8x128xf32>
    %67 = math.exp %66 : vector<8x128xf32>
    %cst_31 = arith.constant 1.000000e+00 : f32
    %68 = vector.broadcast %cst_31 : f32 to vector<8x128xf32>
    %69 = arith.addf %68, %67 : vector<8x128xf32>
    %70 = arith.divf %68, %69 : vector<8x128xf32>
    %71 = vector.extract_strided_slice %52 {offsets = [0, 256], sizes = [8, 128], strides = [1, 1]} : vector<8x384xf32> to vector<8x128xf32>
    %72 = vector.extract_strided_slice %54 {offsets = [0, 256], sizes = [8, 128], strides = [1, 1]} : vector<8x384xf32> to vector<8x128xf32>
    %73 = vector.broadcast %11 : vector<1x128xf32> to vector<8x128xf32>
    %74 = arith.addf %72, %73 : vector<8x128xf32>
    %75 = arith.mulf %62, %74 : vector<8x128xf32>
    %76 = arith.addf %71, %75 : vector<8x128xf32>
    %77 = math.tanh %76 : vector<8x128xf32>
    %cst_32 = arith.constant 1.000000e+00 : f32
    %78 = vector.broadcast %cst_32 : f32 to vector<8x128xf32>
    %79 = arith.subf %78, %70 : vector<8x128xf32>
    %80 = arith.mulf %79, %77 : vector<8x128xf32>
    %81 = arith.mulf %70, %53 : vector<8x128xf32>
    %82 = arith.addf %80, %81 : vector<8x128xf32>
    %c0_33 = arith.constant 0 : index
    %c0_34 = arith.constant 0 : index
    %83 = vector.load %arg16[%c0_33, %c0_34] : memref<8x128xf32, #tpu.memory_space<vmem>>, vector<8x128xf32>
    tpu.vector_store %arg16[%c0_33, %c0_34], %82 {strides = array<i32>} : memref<8x128xf32, #tpu.memory_space<vmem>>, vector<8x128xf32>,
    %84 = arith.index_cast %50 : i32 to index
    %c0_35 = arith.constant 0 : index
    %85 = vector.load %arg15[%84, %c0_35] : memref<64x128xf32, #tpu.memory_space<vmem>>, vector<8x128xf32>
    tpu.vector_store %arg15[%84, %c0_35], %82 {strides = array<i32>} : memref<64x128xf32, #tpu.memory_space<vmem>>, vector<8x128xf32>,
    %c2_i32 = arith.constant 2 : i32
    %c8_i32_36 = arith.constant 8 : i32
    %86 = arith.muli %c2_i32, %c8_i32_36 : i32
    %87 = tpu.assume_multiple %86, 8 : i32
    %88 = arith.index_cast %87 : i32 to index
    %c0_37 = arith.constant 0 : index
    %89 = vector.load %arg14[%88, %c0_37] : memref<64x384xf32, #tpu.memory_space<vmem>>, vector<8x384xf32>
    %c0_38 = arith.constant 0 : index
    %c0_39 = arith.constant 0 : index
    %90 = vector.load %arg16[%c0_38, %c0_39] : memref<8x128xf32, #tpu.memory_space<vmem>>, vector<8x128xf32>
    %cst_40 = arith.constant dense<0.000000e+00> : vector<8x384xf32>
    %91 = tpu.matmul %90, %10, %cst_40 {dimension_numbers = #tpu.dot_dimension_numbers<[1], [0], [0], [1], [0, 0, 1, 1], [], []>} : vector<8x128xf32>, vector<128x384xf32>, vector<8x384xf32> -> vector<8x384xf32>
    %92 = vector.extract_strided_slice %89 {offsets = [0, 0], sizes = [8, 128], strides = [1, 1]} : vector<8x384xf32> to vector<8x128xf32>
    %93 = vector.extract_strided_slice %91 {offsets = [0, 0], sizes = [8, 128], strides = [1, 1]} : vector<8x384xf32> to vector<8x128xf32>
    %94 = arith.addf %92, %93 : vector<8x128xf32>
    %95 = arith.negf %94 : vector<8x128xf32>
    %96 = math.exp %95 : vector<8x128xf32>
    %cst_41 = arith.constant 1.000000e+00 : f32
    %97 = vector.broadcast %cst_41 : f32 to vector<8x128xf32>
    %98 = arith.addf %97, %96 : vector<8x128xf32>
    %99 = arith.divf %97, %98 : vector<8x128xf32>
    %100 = vector.extract_strided_slice %89 {offsets = [0, 128], sizes = [8, 128], strides = [1, 1]} : vector<8x384xf32> to vector<8x128xf32>
    %101 = vector.extract_strided_slice %91 {offsets = [0, 128], sizes = [8, 128], strides = [1, 1]} : vector<8x384xf32> to vector<8x128xf32>
    %102 = arith.addf %100, %101 : vector<8x128xf32>
    %103 = arith.negf %102 : vector<8x128xf32>
    %104 = math.exp %103 : vector<8x128xf32>
    %cst_42 = arith.constant 1.000000e+00 : f32
    %105 = vector.broadcast %cst_42 : f32 to vector<8x128xf32>
    %106 = arith.addf %105, %104 : vector<8x128xf32>
    %107 = arith.divf %105, %106 : vector<8x128xf32>
    %108 = vector.extract_strided_slice %89 {offsets = [0, 256], sizes = [8, 128], strides = [1, 1]} : vector<8x384xf32> to vector<8x128xf32>
    %109 = vector.extract_strided_slice %91 {offsets = [0, 256], sizes = [8, 128], strides = [1, 1]} : vector<8x384xf32> to vector<8x128xf32>
    %110 = vector.broadcast %11 : vector<1x128xf32> to vector<8x128xf32>
    %111 = arith.addf %109, %110 : vector<8x128xf32>
    %112 = arith.mulf %99, %111 : vector<8x128xf32>
    %113 = arith.addf %108, %112 : vector<8x128xf32>
    %114 = math.tanh %113 : vector<8x128xf32>
    %cst_43 = arith.constant 1.000000e+00 : f32
    %115 = vector.broadcast %cst_43 : f32 to vector<8x128xf32>
    %116 = arith.subf %115, %107 : vector<8x128xf32>
    %117 = arith.mulf %116, %114 : vector<8x128xf32>
    %118 = arith.mulf %107, %90 : vector<8x128xf32>
    %119 = arith.addf %117, %118 : vector<8x128xf32>
    %c0_44 = arith.constant 0 : index
    %c0_45 = arith.constant 0 : index
    %120 = vector.load %arg16[%c0_44, %c0_45] : memref<8x128xf32, #tpu.memory_space<vmem>>, vector<8x128xf32>
    tpu.vector_store %arg16[%c0_44, %c0_45], %119 {strides = array<i32>} : memref<8x128xf32, #tpu.memory_space<vmem>>, vector<8x128xf32>,
    %121 = arith.index_cast %87 : i32 to index
    %c0_46 = arith.constant 0 : index
    %122 = vector.load %arg15[%121, %c0_46] : memref<64x128xf32, #tpu.memory_space<vmem>>, vector<8x128xf32>
    tpu.vector_store %arg15[%121, %c0_46], %119 {strides = array<i32>} : memref<64x128xf32, #tpu.memory_space<vmem>>, vector<8x128xf32>,
    %c3_i32 = arith.constant 3 : i32
    %c8_i32_47 = arith.constant 8 : i32
    %123 = arith.muli %c3_i32, %c8_i32_47 : i32
    %124 = tpu.assume_multiple %123, 8 : i32
    %125 = arith.index_cast %124 : i32 to index
    %c0_48 = arith.constant 0 : index
    %126 = vector.load %arg14[%125, %c0_48] : memref<64x384xf32, #tpu.memory_space<vmem>>, vector<8x384xf32>
    %c0_49 = arith.constant 0 : index
    %c0_50 = arith.constant 0 : index
    %127 = vector.load %arg16[%c0_49, %c0_50] : memref<8x128xf32, #tpu.memory_space<vmem>>, vector<8x128xf32>
    %cst_51 = arith.constant dense<0.000000e+00> : vector<8x384xf32>
    %128 = tpu.matmul %127, %10, %cst_51 {dimension_numbers = #tpu.dot_dimension_numbers<[1], [0], [0], [1], [0, 0, 1, 1], [], []>} : vector<8x128xf32>, vector<128x384xf32>, vector<8x384xf32> -> vector<8x384xf32>
    %129 = vector.extract_strided_slice %126 {offsets = [0, 0], sizes = [8, 128], strides = [1, 1]} : vector<8x384xf32> to vector<8x128xf32>
    %130 = vector.extract_strided_slice %128 {offsets = [0, 0], sizes = [8, 128], strides = [1, 1]} : vector<8x384xf32> to vector<8x128xf32>
    %131 = arith.addf %129, %130 : vector<8x128xf32>
    %132 = arith.negf %131 : vector<8x128xf32>
    %133 = math.exp %132 : vector<8x128xf32>
    %cst_52 = arith.constant 1.000000e+00 : f32
    %134 = vector.broadcast %cst_52 : f32 to vector<8x128xf32>
    %135 = arith.addf %134, %133 : vector<8x128xf32>
    %136 = arith.divf %134, %135 : vector<8x128xf32>
    %137 = vector.extract_strided_slice %126 {offsets = [0, 128], sizes = [8, 128], strides = [1, 1]} : vector<8x384xf32> to vector<8x128xf32>
    %138 = vector.extract_strided_slice %128 {offsets = [0, 128], sizes = [8, 128], strides = [1, 1]} : vector<8x384xf32> to vector<8x128xf32>
    %139 = arith.addf %137, %138 : vector<8x128xf32>
    %140 = arith.negf %139 : vector<8x128xf32>
    %141 = math.exp %140 : vector<8x128xf32>
    %cst_53 = arith.constant 1.000000e+00 : f32
    %142 = vector.broadcast %cst_53 : f32 to vector<8x128xf32>
    %143 = arith.addf %142, %141 : vector<8x128xf32>
    %144 = arith.divf %142, %143 : vector<8x128xf32>
    %145 = vector.extract_strided_slice %126 {offsets = [0, 256], sizes = [8, 128], strides = [1, 1]} : vector<8x384xf32> to vector<8x128xf32>
    %146 = vector.extract_strided_slice %128 {offsets = [0, 256], sizes = [8, 128], strides = [1, 1]} : vector<8x384xf32> to vector<8x128xf32>
    %147 = vector.broadcast %11 : vector<1x128xf32> to vector<8x128xf32>
    %148 = arith.addf %146, %147 : vector<8x128xf32>
    %149 = arith.mulf %136, %148 : vector<8x128xf32>
    %150 = arith.addf %145, %149 : vector<8x128xf32>
    %151 = math.tanh %150 : vector<8x128xf32>
    %cst_54 = arith.constant 1.000000e+00 : f32
    %152 = vector.broadcast %cst_54 : f32 to vector<8x128xf32>
    %153 = arith.subf %152, %144 : vector<8x128xf32>
    %154 = arith.mulf %153, %151 : vector<8x128xf32>
    %155 = arith.mulf %144, %127 : vector<8x128xf32>
    %156 = arith.addf %154, %155 : vector<8x128xf32>
    %c0_55 = arith.constant 0 : index
    %c0_56 = arith.constant 0 : index
    %157 = vector.load %arg16[%c0_55, %c0_56] : memref<8x128xf32, #tpu.memory_space<vmem>>, vector<8x128xf32>
    tpu.vector_store %arg16[%c0_55, %c0_56], %156 {strides = array<i32>} : memref<8x128xf32, #tpu.memory_space<vmem>>, vector<8x128xf32>,
    %158 = arith.index_cast %124 : i32 to index
    %c0_57 = arith.constant 0 : index
    %159 = vector.load %arg15[%158, %c0_57] : memref<64x128xf32, #tpu.memory_space<vmem>>, vector<8x128xf32>
    tpu.vector_store %arg15[%158, %c0_57], %156 {strides = array<i32>} : memref<64x128xf32, #tpu.memory_space<vmem>>, vector<8x128xf32>,
    %c4_i32 = arith.constant 4 : i32
    %c8_i32_58 = arith.constant 8 : i32
    %160 = arith.muli %c4_i32, %c8_i32_58 : i32
    %161 = tpu.assume_multiple %160, 8 : i32
    %162 = arith.index_cast %161 : i32 to index
    %c0_59 = arith.constant 0 : index
    %163 = vector.load %arg14[%162, %c0_59] : memref<64x384xf32, #tpu.memory_space<vmem>>, vector<8x384xf32>
    %c0_60 = arith.constant 0 : index
    %c0_61 = arith.constant 0 : index
    %164 = vector.load %arg16[%c0_60, %c0_61] : memref<8x128xf32, #tpu.memory_space<vmem>>, vector<8x128xf32>
    %cst_62 = arith.constant dense<0.000000e+00> : vector<8x384xf32>
    %165 = tpu.matmul %164, %10, %cst_62 {dimension_numbers = #tpu.dot_dimension_numbers<[1], [0], [0], [1], [0, 0, 1, 1], [], []>} : vector<8x128xf32>, vector<128x384xf32>, vector<8x384xf32> -> vector<8x384xf32>
    %166 = vector.extract_strided_slice %163 {offsets = [0, 0], sizes = [8, 128], strides = [1, 1]} : vector<8x384xf32> to vector<8x128xf32>
    %167 = vector.extract_strided_slice %165 {offsets = [0, 0], sizes = [8, 128], strides = [1, 1]} : vector<8x384xf32> to vector<8x128xf32>
    %168 = arith.addf %166, %167 : vector<8x128xf32>
    %169 = arith.negf %168 : vector<8x128xf32>
    %170 = math.exp %169 : vector<8x128xf32>
    %cst_63 = arith.constant 1.000000e+00 : f32
    %171 = vector.broadcast %cst_63 : f32 to vector<8x128xf32>
    %172 = arith.addf %171, %170 : vector<8x128xf32>
    %173 = arith.divf %171, %172 : vector<8x128xf32>
    %174 = vector.extract_strided_slice %163 {offsets = [0, 128], sizes = [8, 128], strides = [1, 1]} : vector<8x384xf32> to vector<8x128xf32>
    %175 = vector.extract_strided_slice %165 {offsets = [0, 128], sizes = [8, 128], strides = [1, 1]} : vector<8x384xf32> to vector<8x128xf32>
    %176 = arith.addf %174, %175 : vector<8x128xf32>
    %177 = arith.negf %176 : vector<8x128xf32>
    %178 = math.exp %177 : vector<8x128xf32>
    %cst_64 = arith.constant 1.000000e+00 : f32
    %179 = vector.broadcast %cst_64 : f32 to vector<8x128xf32>
    %180 = arith.addf %179, %178 : vector<8x128xf32>
    %181 = arith.divf %179, %180 : vector<8x128xf32>
    %182 = vector.extract_strided_slice %163 {offsets = [0, 256], sizes = [8, 128], strides = [1, 1]} : vector<8x384xf32> to vector<8x128xf32>
    %183 = vector.extract_strided_slice %165 {offsets = [0, 256], sizes = [8, 128], strides = [1, 1]} : vector<8x384xf32> to vector<8x128xf32>
    %184 = vector.broadcast %11 : vector<1x128xf32> to vector<8x128xf32>
    %185 = arith.addf %183, %184 : vector<8x128xf32>
    %186 = arith.mulf %173, %185 : vector<8x128xf32>
    %187 = arith.addf %182, %186 : vector<8x128xf32>
    %188 = math.tanh %187 : vector<8x128xf32>
    %cst_65 = arith.constant 1.000000e+00 : f32
    %189 = vector.broadcast %cst_65 : f32 to vector<8x128xf32>
    %190 = arith.subf %189, %181 : vector<8x128xf32>
    %191 = arith.mulf %190, %188 : vector<8x128xf32>
    %192 = arith.mulf %181, %164 : vector<8x128xf32>
    %193 = arith.addf %191, %192 : vector<8x128xf32>
    %c0_66 = arith.constant 0 : index
    %c0_67 = arith.constant 0 : index
    %194 = vector.load %arg16[%c0_66, %c0_67] : memref<8x128xf32, #tpu.memory_space<vmem>>, vector<8x128xf32>
    tpu.vector_store %arg16[%c0_66, %c0_67], %193 {strides = array<i32>} : memref<8x128xf32, #tpu.memory_space<vmem>>, vector<8x128xf32>,
    %195 = arith.index_cast %161 : i32 to index
    %c0_68 = arith.constant 0 : index
    %196 = vector.load %arg15[%195, %c0_68] : memref<64x128xf32, #tpu.memory_space<vmem>>, vector<8x128xf32>
    tpu.vector_store %arg15[%195, %c0_68], %193 {strides = array<i32>} : memref<64x128xf32, #tpu.memory_space<vmem>>, vector<8x128xf32>,
    %c5_i32 = arith.constant 5 : i32
    %c8_i32_69 = arith.constant 8 : i32
    %197 = arith.muli %c5_i32, %c8_i32_69 : i32
    %198 = tpu.assume_multiple %197, 8 : i32
    %199 = arith.index_cast %198 : i32 to index
    %c0_70 = arith.constant 0 : index
    %200 = vector.load %arg14[%199, %c0_70] : memref<64x384xf32, #tpu.memory_space<vmem>>, vector<8x384xf32>
    %c0_71 = arith.constant 0 : index
    %c0_72 = arith.constant 0 : index
    %201 = vector.load %arg16[%c0_71, %c0_72] : memref<8x128xf32, #tpu.memory_space<vmem>>, vector<8x128xf32>
    %cst_73 = arith.constant dense<0.000000e+00> : vector<8x384xf32>
    %202 = tpu.matmul %201, %10, %cst_73 {dimension_numbers = #tpu.dot_dimension_numbers<[1], [0], [0], [1], [0, 0, 1, 1], [], []>} : vector<8x128xf32>, vector<128x384xf32>, vector<8x384xf32> -> vector<8x384xf32>
    %203 = vector.extract_strided_slice %200 {offsets = [0, 0], sizes = [8, 128], strides = [1, 1]} : vector<8x384xf32> to vector<8x128xf32>
    %204 = vector.extract_strided_slice %202 {offsets = [0, 0], sizes = [8, 128], strides = [1, 1]} : vector<8x384xf32> to vector<8x128xf32>
    %205 = arith.addf %203, %204 : vector<8x128xf32>
    %206 = arith.negf %205 : vector<8x128xf32>
    %207 = math.exp %206 : vector<8x128xf32>
    %cst_74 = arith.constant 1.000000e+00 : f32
    %208 = vector.broadcast %cst_74 : f32 to vector<8x128xf32>
    %209 = arith.addf %208, %207 : vector<8x128xf32>
    %210 = arith.divf %208, %209 : vector<8x128xf32>
    %211 = vector.extract_strided_slice %200 {offsets = [0, 128], sizes = [8, 128], strides = [1, 1]} : vector<8x384xf32> to vector<8x128xf32>
    %212 = vector.extract_strided_slice %202 {offsets = [0, 128], sizes = [8, 128], strides = [1, 1]} : vector<8x384xf32> to vector<8x128xf32>
    %213 = arith.addf %211, %212 : vector<8x128xf32>
    %214 = arith.negf %213 : vector<8x128xf32>
    %215 = math.exp %214 : vector<8x128xf32>
    %cst_75 = arith.constant 1.000000e+00 : f32
    %216 = vector.broadcast %cst_75 : f32 to vector<8x128xf32>
    %217 = arith.addf %216, %215 : vector<8x128xf32>
    %218 = arith.divf %216, %217 : vector<8x128xf32>
    %219 = vector.extract_strided_slice %200 {offsets = [0, 256], sizes = [8, 128], strides = [1, 1]} : vector<8x384xf32> to vector<8x128xf32>
    %220 = vector.extract_strided_slice %202 {offsets = [0, 256], sizes = [8, 128], strides = [1, 1]} : vector<8x384xf32> to vector<8x128xf32>
    %221 = vector.broadcast %11 : vector<1x128xf32> to vector<8x128xf32>
    %222 = arith.addf %220, %221 : vector<8x128xf32>
    %223 = arith.mulf %210, %222 : vector<8x128xf32>
    %224 = arith.addf %219, %223 : vector<8x128xf32>
    %225 = math.tanh %224 : vector<8x128xf32>
    %cst_76 = arith.constant 1.000000e+00 : f32
    %226 = vector.broadcast %cst_76 : f32 to vector<8x128xf32>
    %227 = arith.subf %226, %218 : vector<8x128xf32>
    %228 = arith.mulf %227, %225 : vector<8x128xf32>
    %229 = arith.mulf %218, %201 : vector<8x128xf32>
    %230 = arith.addf %228, %229 : vector<8x128xf32>
    %c0_77 = arith.constant 0 : index
    %c0_78 = arith.constant 0 : index
    %231 = vector.load %arg16[%c0_77, %c0_78] : memref<8x128xf32, #tpu.memory_space<vmem>>, vector<8x128xf32>
    tpu.vector_store %arg16[%c0_77, %c0_78], %230 {strides = array<i32>} : memref<8x128xf32, #tpu.memory_space<vmem>>, vector<8x128xf32>,
    %232 = arith.index_cast %198 : i32 to index
    %c0_79 = arith.constant 0 : index
    %233 = vector.load %arg15[%232, %c0_79] : memref<64x128xf32, #tpu.memory_space<vmem>>, vector<8x128xf32>
    tpu.vector_store %arg15[%232, %c0_79], %230 {strides = array<i32>} : memref<64x128xf32, #tpu.memory_space<vmem>>, vector<8x128xf32>,
    %c6_i32 = arith.constant 6 : i32
    %c8_i32_80 = arith.constant 8 : i32
    %234 = arith.muli %c6_i32, %c8_i32_80 : i32
    %235 = tpu.assume_multiple %234, 8 : i32
    %236 = arith.index_cast %235 : i32 to index
    %c0_81 = arith.constant 0 : index
    %237 = vector.load %arg14[%236, %c0_81] : memref<64x384xf32, #tpu.memory_space<vmem>>, vector<8x384xf32>
    %c0_82 = arith.constant 0 : index
    %c0_83 = arith.constant 0 : index
    %238 = vector.load %arg16[%c0_82, %c0_83] : memref<8x128xf32, #tpu.memory_space<vmem>>, vector<8x128xf32>
    %cst_84 = arith.constant dense<0.000000e+00> : vector<8x384xf32>
    %239 = tpu.matmul %238, %10, %cst_84 {dimension_numbers = #tpu.dot_dimension_numbers<[1], [0], [0], [1], [0, 0, 1, 1], [], []>} : vector<8x128xf32>, vector<128x384xf32>, vector<8x384xf32> -> vector<8x384xf32>
    %240 = vector.extract_strided_slice %237 {offsets = [0, 0], sizes = [8, 128], strides = [1, 1]} : vector<8x384xf32> to vector<8x128xf32>
    %241 = vector.extract_strided_slice %239 {offsets = [0, 0], sizes = [8, 128], strides = [1, 1]} : vector<8x384xf32> to vector<8x128xf32>
    %242 = arith.addf %240, %241 : vector<8x128xf32>
    %243 = arith.negf %242 : vector<8x128xf32>
    %244 = math.exp %243 : vector<8x128xf32>
    %cst_85 = arith.constant 1.000000e+00 : f32
    %245 = vector.broadcast %cst_85 : f32 to vector<8x128xf32>
    %246 = arith.addf %245, %244 : vector<8x128xf32>
    %247 = arith.divf %245, %246 : vector<8x128xf32>
    %248 = vector.extract_strided_slice %237 {offsets = [0, 128], sizes = [8, 128], strides = [1, 1]} : vector<8x384xf32> to vector<8x128xf32>
    %249 = vector.extract_strided_slice %239 {offsets = [0, 128], sizes = [8, 128], strides = [1, 1]} : vector<8x384xf32> to vector<8x128xf32>
    %250 = arith.addf %248, %249 : vector<8x128xf32>
    %251 = arith.negf %250 : vector<8x128xf32>
    %252 = math.exp %251 : vector<8x128xf32>
    %cst_86 = arith.constant 1.000000e+00 : f32
    %253 = vector.broadcast %cst_86 : f32 to vector<8x128xf32>
    %254 = arith.addf %253, %252 : vector<8x128xf32>
    %255 = arith.divf %253, %254 : vector<8x128xf32>
    %256 = vector.extract_strided_slice %237 {offsets = [0, 256], sizes = [8, 128], strides = [1, 1]} : vector<8x384xf32> to vector<8x128xf32>
    %257 = vector.extract_strided_slice %239 {offsets = [0, 256], sizes = [8, 128], strides = [1, 1]} : vector<8x384xf32> to vector<8x128xf32>
    %258 = vector.broadcast %11 : vector<1x128xf32> to vector<8x128xf32>
    %259 = arith.addf %257, %258 : vector<8x128xf32>
    %260 = arith.mulf %247, %259 : vector<8x128xf32>
    %261 = arith.addf %256, %260 : vector<8x128xf32>
    %262 = math.tanh %261 : vector<8x128xf32>
    %cst_87 = arith.constant 1.000000e+00 : f32
    %263 = vector.broadcast %cst_87 : f32 to vector<8x128xf32>
    %264 = arith.subf %263, %255 : vector<8x128xf32>
    %265 = arith.mulf %264, %262 : vector<8x128xf32>
    %266 = arith.mulf %255, %238 : vector<8x128xf32>
    %267 = arith.addf %265, %266 : vector<8x128xf32>
    %c0_88 = arith.constant 0 : index
    %c0_89 = arith.constant 0 : index
    %268 = vector.load %arg16[%c0_88, %c0_89] : memref<8x128xf32, #tpu.memory_space<vmem>>, vector<8x128xf32>
    tpu.vector_store %arg16[%c0_88, %c0_89], %267 {strides = array<i32>} : memref<8x128xf32, #tpu.memory_space<vmem>>, vector<8x128xf32>,
    %269 = arith.index_cast %235 : i32 to index
    %c0_90 = arith.constant 0 : index
    %270 = vector.load %arg15[%269, %c0_90] : memref<64x128xf32, #tpu.memory_space<vmem>>, vector<8x128xf32>
    tpu.vector_store %arg15[%269, %c0_90], %267 {strides = array<i32>} : memref<64x128xf32, #tpu.memory_space<vmem>>, vector<8x128xf32>,
    %c7_i32 = arith.constant 7 : i32
    %c8_i32_91 = arith.constant 8 : i32
    %271 = arith.muli %c7_i32, %c8_i32_91 : i32
    %272 = tpu.assume_multiple %271, 8 : i32
    %273 = arith.index_cast %272 : i32 to index
    %c0_92 = arith.constant 0 : index
    %274 = vector.load %arg14[%273, %c0_92] : memref<64x384xf32, #tpu.memory_space<vmem>>, vector<8x384xf32>
    %c0_93 = arith.constant 0 : index
    %c0_94 = arith.constant 0 : index
    %275 = vector.load %arg16[%c0_93, %c0_94] : memref<8x128xf32, #tpu.memory_space<vmem>>, vector<8x128xf32>
    %cst_95 = arith.constant dense<0.000000e+00> : vector<8x384xf32>
    %276 = tpu.matmul %275, %10, %cst_95 {dimension_numbers = #tpu.dot_dimension_numbers<[1], [0], [0], [1], [0, 0, 1, 1], [], []>} : vector<8x128xf32>, vector<128x384xf32>, vector<8x384xf32> -> vector<8x384xf32>
    %277 = vector.extract_strided_slice %274 {offsets = [0, 0], sizes = [8, 128], strides = [1, 1]} : vector<8x384xf32> to vector<8x128xf32>
    %278 = vector.extract_strided_slice %276 {offsets = [0, 0], sizes = [8, 128], strides = [1, 1]} : vector<8x384xf32> to vector<8x128xf32>
    %279 = arith.addf %277, %278 : vector<8x128xf32>
    %280 = arith.negf %279 : vector<8x128xf32>
    %281 = math.exp %280 : vector<8x128xf32>
    %cst_96 = arith.constant 1.000000e+00 : f32
    %282 = vector.broadcast %cst_96 : f32 to vector<8x128xf32>
    %283 = arith.addf %282, %281 : vector<8x128xf32>
    %284 = arith.divf %282, %283 : vector<8x128xf32>
    %285 = vector.extract_strided_slice %274 {offsets = [0, 128], sizes = [8, 128], strides = [1, 1]} : vector<8x384xf32> to vector<8x128xf32>
    %286 = vector.extract_strided_slice %276 {offsets = [0, 128], sizes = [8, 128], strides = [1, 1]} : vector<8x384xf32> to vector<8x128xf32>
    %287 = arith.addf %285, %286 : vector<8x128xf32>
    %288 = arith.negf %287 : vector<8x128xf32>
    %289 = math.exp %288 : vector<8x128xf32>
    %cst_97 = arith.constant 1.000000e+00 : f32
    %290 = vector.broadcast %cst_97 : f32 to vector<8x128xf32>
    %291 = arith.addf %290, %289 : vector<8x128xf32>
    %292 = arith.divf %290, %291 : vector<8x128xf32>
    %293 = vector.extract_strided_slice %274 {offsets = [0, 256], sizes = [8, 128], strides = [1, 1]} : vector<8x384xf32> to vector<8x128xf32>
    %294 = vector.extract_strided_slice %276 {offsets = [0, 256], sizes = [8, 128], strides = [1, 1]} : vector<8x384xf32> to vector<8x128xf32>
    %295 = vector.broadcast %11 : vector<1x128xf32> to vector<8x128xf32>
    %296 = arith.addf %294, %295 : vector<8x128xf32>
    %297 = arith.mulf %284, %296 : vector<8x128xf32>
    %298 = arith.addf %293, %297 : vector<8x128xf32>
    %299 = math.tanh %298 : vector<8x128xf32>
    %cst_98 = arith.constant 1.000000e+00 : f32
    %300 = vector.broadcast %cst_98 : f32 to vector<8x128xf32>
    %301 = arith.subf %300, %292 : vector<8x128xf32>
    %302 = arith.mulf %301, %299 : vector<8x128xf32>
    %303 = arith.mulf %292, %275 : vector<8x128xf32>
    %304 = arith.addf %302, %303 : vector<8x128xf32>
    %c0_99 = arith.constant 0 : index
    %c0_100 = arith.constant 0 : index
    %305 = vector.load %arg16[%c0_99, %c0_100] : memref<8x128xf32, #tpu.memory_space<vmem>>, vector<8x128xf32>
    tpu.vector_store %arg16[%c0_99, %c0_100], %304 {strides = array<i32>} : memref<8x128xf32, #tpu.memory_space<vmem>>, vector<8x128xf32>,
    %306 = arith.index_cast %272 : i32 to index
    %c0_101 = arith.constant 0 : index
    %307 = vector.load %arg15[%306, %c0_101] : memref<64x128xf32, #tpu.memory_space<vmem>>, vector<8x128xf32>
    tpu.vector_store %arg15[%306, %c0_101], %304 {strides = array<i32>} : memref<64x128xf32, #tpu.memory_space<vmem>>, vector<8x128xf32>,
    %c8_i32_102 = arith.constant 8 : i32
    %c0_103 = arith.constant 0 : index
    %c0_104 = arith.constant 0 : index
    %308 = vector.load %arg15[%c0_103, %c0_104] : memref<64x128xf32, #tpu.memory_space<vmem>>, vector<64x128xf32>
    %c0_105 = arith.constant 0 : index
    %c0_106 = arith.constant 0 : index
    %309 = vector.load %arg6[%c0_105, %c0_106] : memref<128x384xf32, #tpu.memory_space<vmem>>, vector<128x384xf32>
    %cst_107 = arith.constant dense<0.000000e+00> : vector<64x384xf32>
    %310 = tpu.matmul %308, %309, %cst_107 {dimension_numbers = #tpu.dot_dimension_numbers<[1], [0], [0], [1], [0, 0, 1, 1], [], []>} : vector<64x128xf32>, vector<128x384xf32>, vector<64x384xf32> -> vector<64x384xf32>
    %c0_108 = arith.constant 0 : index
    %c0_109 = arith.constant 0 : index
    %311 = vector.load %arg8[%c0_108, %c0_109] : memref<1x384xf32, #tpu.memory_space<vmem>>, vector<1x384xf32>
    %312 = vector.broadcast %311 : vector<1x384xf32> to vector<64x384xf32>
    %313 = arith.addf %310, %312 : vector<64x384xf32>
    %c0_110 = arith.constant 0 : index
    %c0_111 = arith.constant 0 : index
    %314 = vector.load %arg14[%c0_110, %c0_111] : memref<64x384xf32, #tpu.memory_space<vmem>>, vector<64x384xf32>
    tpu.vector_store %arg14[%c0_110, %c0_111], %313 {strides = array<i32>} : memref<64x384xf32, #tpu.memory_space<vmem>>, vector<64x384xf32>,
    %cst_112 = arith.constant 0.000000e+00 : f32
    %315 = vector.broadcast %cst_112 : f32 to vector<8x128xf32>
    %c0_113 = arith.constant 0 : index
    %c0_114 = arith.constant 0 : index
    %316 = vector.load %arg16[%c0_113, %c0_114] : memref<8x128xf32, #tpu.memory_space<vmem>>, vector<8x128xf32>
    tpu.vector_store %arg16[%c0_113, %c0_114], %315 {strides = array<i32>} : memref<8x128xf32, #tpu.memory_space<vmem>>, vector<8x128xf32>,
    %cst_115 = arith.constant 0.000000e+00 : f32
    %317 = vector.broadcast %cst_115 : f32 to vector<8x128xf32>
    %c0_116 = arith.constant 0 : index
    %c0_117 = arith.constant 0 : index
    %318 = vector.load %arg17[%c0_116, %c0_117] : memref<8x128xf32, #tpu.memory_space<vmem>>, vector<8x128xf32>
    tpu.vector_store %arg17[%c0_116, %c0_117], %317 {strides = array<i32>} : memref<8x128xf32, #tpu.memory_space<vmem>>, vector<8x128xf32>,
    %cst_118 = arith.constant 0.000000e+00 : f32
    %319 = vector.broadcast %cst_118 : f32 to vector<8x128xf32>
    %c0_119 = arith.constant 0 : index
    %c0_120 = arith.constant 0 : index
    %320 = vector.load %arg18[%c0_119, %c0_120] : memref<8x128xf32, #tpu.memory_space<vmem>>, vector<8x128xf32>
    tpu.vector_store %arg18[%c0_119, %c0_120], %319 {strides = array<i32>} : memref<8x128xf32, #tpu.memory_space<vmem>>, vector<8x128xf32>,
    %c0_121 = arith.constant 0 : index
    %c0_122 = arith.constant 0 : index
    %321 = vector.load %arg7[%c0_121, %c0_122] : memref<128x384xf32, #tpu.memory_space<vmem>>, vector<128x384xf32>
    %c0_123 = arith.constant 0 : index
    %c0_124 = arith.constant 0 : index
    %322 = vector.load %arg9[%c0_123, %c0_124] : memref<1x128xf32, #tpu.memory_space<vmem>>, vector<1x128xf32>
    %c0_i32_125 = arith.constant 0 : i32
    %c8_i32_126 = arith.constant 8 : i32
    %323 = arith.muli %c0_i32_125, %c8_i32_126 : i32
    %324 = tpu.assume_multiple %323, 8 : i32
    %325 = arith.index_cast %324 : i32 to index
    %c0_127 = arith.constant 0 : index
    %326 = vector.load %arg14[%325, %c0_127] : memref<64x384xf32, #tpu.memory_space<vmem>>, vector<8x384xf32>
    %c0_128 = arith.constant 0 : index
    %c0_129 = arith.constant 0 : index
    %327 = vector.load %arg16[%c0_128, %c0_129] : memref<8x128xf32, #tpu.memory_space<vmem>>, vector<8x128xf32>
    %cst_130 = arith.constant dense<0.000000e+00> : vector<8x384xf32>
    %328 = tpu.matmul %327, %321, %cst_130 {dimension_numbers = #tpu.dot_dimension_numbers<[1], [0], [0], [1], [0, 0, 1, 1], [], []>} : vector<8x128xf32>, vector<128x384xf32>, vector<8x384xf32> -> vector<8x384xf32>
    %329 = vector.extract_strided_slice %326 {offsets = [0, 0], sizes = [8, 128], strides = [1, 1]} : vector<8x384xf32> to vector<8x128xf32>
    %330 = vector.extract_strided_slice %328 {offsets = [0, 0], sizes = [8, 128], strides = [1, 1]} : vector<8x384xf32> to vector<8x128xf32>
    %331 = arith.addf %329, %330 : vector<8x128xf32>
    %332 = arith.negf %331 : vector<8x128xf32>
    %333 = math.exp %332 : vector<8x128xf32>
    %cst_131 = arith.constant 1.000000e+00 : f32
    %334 = vector.broadcast %cst_131 : f32 to vector<8x128xf32>
    %335 = arith.addf %334, %333 : vector<8x128xf32>
    %336 = arith.divf %334, %335 : vector<8x128xf32>
    %337 = vector.extract_strided_slice %326 {offsets = [0, 128], sizes = [8, 128], strides = [1, 1]} : vector<8x384xf32> to vector<8x128xf32>
    %338 = vector.extract_strided_slice %328 {offsets = [0, 128], sizes = [8, 128], strides = [1, 1]} : vector<8x384xf32> to vector<8x128xf32>
    %339 = arith.addf %337, %338 : vector<8x128xf32>
    %340 = arith.negf %339 : vector<8x128xf32>
    %341 = math.exp %340 : vector<8x128xf32>
    %cst_132 = arith.constant 1.000000e+00 : f32
    %342 = vector.broadcast %cst_132 : f32 to vector<8x128xf32>
    %343 = arith.addf %342, %341 : vector<8x128xf32>
    %344 = arith.divf %342, %343 : vector<8x128xf32>
    %345 = vector.extract_strided_slice %326 {offsets = [0, 256], sizes = [8, 128], strides = [1, 1]} : vector<8x384xf32> to vector<8x128xf32>
    %346 = vector.extract_strided_slice %328 {offsets = [0, 256], sizes = [8, 128], strides = [1, 1]} : vector<8x384xf32> to vector<8x128xf32>
    %347 = vector.broadcast %322 : vector<1x128xf32> to vector<8x128xf32>
    %348 = arith.addf %346, %347 : vector<8x128xf32>
    %349 = arith.mulf %336, %348 : vector<8x128xf32>
    %350 = arith.addf %345, %349 : vector<8x128xf32>
    %351 = math.tanh %350 : vector<8x128xf32>
    %cst_133 = arith.constant 1.000000e+00 : f32
    %352 = vector.broadcast %cst_133 : f32 to vector<8x128xf32>
    %353 = arith.subf %352, %344 : vector<8x128xf32>
    %354 = arith.mulf %353, %351 : vector<8x128xf32>
    %355 = arith.mulf %344, %327 : vector<8x128xf32>
    %356 = arith.addf %354, %355 : vector<8x128xf32>
    %c0_134 = arith.constant 0 : index
    %c0_135 = arith.constant 0 : index
    %357 = vector.load %arg16[%c0_134, %c0_135] : memref<8x128xf32, #tpu.memory_space<vmem>>, vector<8x128xf32>
    tpu.vector_store %arg16[%c0_134, %c0_135], %356 {strides = array<i32>} : memref<8x128xf32, #tpu.memory_space<vmem>>, vector<8x128xf32>,
    %cst_136 = arith.constant 0.000000e+00 : f32
    %358 = vector.broadcast %cst_136 : f32 to vector<8x128xf32>
    %359 = arith.maximumf %356, %358 : vector<8x128xf32>
    %c0_137 = arith.constant 0 : index
    %c0_138 = arith.constant 0 : index
    %360 = vector.load %arg17[%c0_137, %c0_138] : memref<8x128xf32, #tpu.memory_space<vmem>>, vector<8x128xf32>
    %361 = arith.addf %360, %359 : vector<8x128xf32>
    %c0_139 = arith.constant 0 : index
    %c0_140 = arith.constant 0 : index
    %362 = vector.load %arg17[%c0_139, %c0_140] : memref<8x128xf32, #tpu.memory_space<vmem>>, vector<8x128xf32>
    tpu.vector_store %arg17[%c0_139, %c0_140], %361 {strides = array<i32>} : memref<8x128xf32, #tpu.memory_space<vmem>>, vector<8x128xf32>,
    %c0_141 = arith.constant 0 : index
    %c0_142 = arith.constant 0 : index
    %363 = vector.load %arg18[%c0_141, %c0_142] : memref<8x128xf32, #tpu.memory_space<vmem>>, vector<8x128xf32>
    %364 = arith.maximumf %363, %359 : vector<8x128xf32>
    %c0_143 = arith.constant 0 : index
    %c0_144 = arith.constant 0 : index
    %365 = vector.load %arg18[%c0_143, %c0_144] : memref<8x128xf32, #tpu.memory_space<vmem>>, vector<8x128xf32>
    tpu.vector_store %arg18[%c0_143, %c0_144], %364 {strides = array<i32>} : memref<8x128xf32, #tpu.memory_space<vmem>>, vector<8x128xf32>,
    %c1_i32_145 = arith.constant 1 : i32
    %c8_i32_146 = arith.constant 8 : i32
    %366 = arith.muli %c1_i32_145, %c8_i32_146 : i32
    %367 = tpu.assume_multiple %366, 8 : i32
    %368 = arith.index_cast %367 : i32 to index
    %c0_147 = arith.constant 0 : index
    %369 = vector.load %arg14[%368, %c0_147] : memref<64x384xf32, #tpu.memory_space<vmem>>, vector<8x384xf32>
    %c0_148 = arith.constant 0 : index
    %c0_149 = arith.constant 0 : index
    %370 = vector.load %arg16[%c0_148, %c0_149] : memref<8x128xf32, #tpu.memory_space<vmem>>, vector<8x128xf32>
    %cst_150 = arith.constant dense<0.000000e+00> : vector<8x384xf32>
    %371 = tpu.matmul %370, %321, %cst_150 {dimension_numbers = #tpu.dot_dimension_numbers<[1], [0], [0], [1], [0, 0, 1, 1], [], []>} : vector<8x128xf32>, vector<128x384xf32>, vector<8x384xf32> -> vector<8x384xf32>
    %372 = vector.extract_strided_slice %369 {offsets = [0, 0], sizes = [8, 128], strides = [1, 1]} : vector<8x384xf32> to vector<8x128xf32>
    %373 = vector.extract_strided_slice %371 {offsets = [0, 0], sizes = [8, 128], strides = [1, 1]} : vector<8x384xf32> to vector<8x128xf32>
    %374 = arith.addf %372, %373 : vector<8x128xf32>
    %375 = arith.negf %374 : vector<8x128xf32>
    %376 = math.exp %375 : vector<8x128xf32>
    %cst_151 = arith.constant 1.000000e+00 : f32
    %377 = vector.broadcast %cst_151 : f32 to vector<8x128xf32>
    %378 = arith.addf %377, %376 : vector<8x128xf32>
    %379 = arith.divf %377, %378 : vector<8x128xf32>
    %380 = vector.extract_strided_slice %369 {offsets = [0, 128], sizes = [8, 128], strides = [1, 1]} : vector<8x384xf32> to vector<8x128xf32>
    %381 = vector.extract_strided_slice %371 {offsets = [0, 128], sizes = [8, 128], strides = [1, 1]} : vector<8x384xf32> to vector<8x128xf32>
    %382 = arith.addf %380, %381 : vector<8x128xf32>
    %383 = arith.negf %382 : vector<8x128xf32>
    %384 = math.exp %383 : vector<8x128xf32>
    %cst_152 = arith.constant 1.000000e+00 : f32
    %385 = vector.broadcast %cst_152 : f32 to vector<8x128xf32>
    %386 = arith.addf %385, %384 : vector<8x128xf32>
    %387 = arith.divf %385, %386 : vector<8x128xf32>
    %388 = vector.extract_strided_slice %369 {offsets = [0, 256], sizes = [8, 128], strides = [1, 1]} : vector<8x384xf32> to vector<8x128xf32>
    %389 = vector.extract_strided_slice %371 {offsets = [0, 256], sizes = [8, 128], strides = [1, 1]} : vector<8x384xf32> to vector<8x128xf32>
    %390 = vector.broadcast %322 : vector<1x128xf32> to vector<8x128xf32>
    %391 = arith.addf %389, %390 : vector<8x128xf32>
    %392 = arith.mulf %379, %391 : vector<8x128xf32>
    %393 = arith.addf %388, %392 : vector<8x128xf32>
    %394 = math.tanh %393 : vector<8x128xf32>
    %cst_153 = arith.constant 1.000000e+00 : f32
    %395 = vector.broadcast %cst_153 : f32 to vector<8x128xf32>
    %396 = arith.subf %395, %387 : vector<8x128xf32>
    %397 = arith.mulf %396, %394 : vector<8x128xf32>
    %398 = arith.mulf %387, %370 : vector<8x128xf32>
    %399 = arith.addf %397, %398 : vector<8x128xf32>
    %c0_154 = arith.constant 0 : index
    %c0_155 = arith.constant 0 : index
    %400 = vector.load %arg16[%c0_154, %c0_155] : memref<8x128xf32, #tpu.memory_space<vmem>>, vector<8x128xf32>
    tpu.vector_store %arg16[%c0_154, %c0_155], %399 {strides = array<i32>} : memref<8x128xf32, #tpu.memory_space<vmem>>, vector<8x128xf32>,
    %cst_156 = arith.constant 0.000000e+00 : f32
    %401 = vector.broadcast %cst_156 : f32 to vector<8x128xf32>
    %402 = arith.maximumf %399, %401 : vector<8x128xf32>
    %c0_157 = arith.constant 0 : index
    %c0_158 = arith.constant 0 : index
    %403 = vector.load %arg17[%c0_157, %c0_158] : memref<8x128xf32, #tpu.memory_space<vmem>>, vector<8x128xf32>
    %404 = arith.addf %403, %402 : vector<8x128xf32>
    %c0_159 = arith.constant 0 : index
    %c0_160 = arith.constant 0 : index
    %405 = vector.load %arg17[%c0_159, %c0_160] : memref<8x128xf32, #tpu.memory_space<vmem>>, vector<8x128xf32>
    tpu.vector_store %arg17[%c0_159, %c0_160], %404 {strides = array<i32>} : memref<8x128xf32, #tpu.memory_space<vmem>>, vector<8x128xf32>,
    %c0_161 = arith.constant 0 : index
    %c0_162 = arith.constant 0 : index
    %406 = vector.load %arg18[%c0_161, %c0_162] : memref<8x128xf32, #tpu.memory_space<vmem>>, vector<8x128xf32>
    %407 = arith.maximumf %406, %402 : vector<8x128xf32>
    %c0_163 = arith.constant 0 : index
    %c0_164 = arith.constant 0 : index
    %408 = vector.load %arg18[%c0_163, %c0_164] : memref<8x128xf32, #tpu.memory_space<vmem>>, vector<8x128xf32>
    tpu.vector_store %arg18[%c0_163, %c0_164], %407 {strides = array<i32>} : memref<8x128xf32, #tpu.memory_space<vmem>>, vector<8x128xf32>,
    %c2_i32_165 = arith.constant 2 : i32
    %c8_i32_166 = arith.constant 8 : i32
    %409 = arith.muli %c2_i32_165, %c8_i32_166 : i32
    %410 = tpu.assume_multiple %409, 8 : i32
    %411 = arith.index_cast %410 : i32 to index
    %c0_167 = arith.constant 0 : index
    %412 = vector.load %arg14[%411, %c0_167] : memref<64x384xf32, #tpu.memory_space<vmem>>, vector<8x384xf32>
    %c0_168 = arith.constant 0 : index
    %c0_169 = arith.constant 0 : index
    %413 = vector.load %arg16[%c0_168, %c0_169] : memref<8x128xf32, #tpu.memory_space<vmem>>, vector<8x128xf32>
    %cst_170 = arith.constant dense<0.000000e+00> : vector<8x384xf32>
    %414 = tpu.matmul %413, %321, %cst_170 {dimension_numbers = #tpu.dot_dimension_numbers<[1], [0], [0], [1], [0, 0, 1, 1], [], []>} : vector<8x128xf32>, vector<128x384xf32>, vector<8x384xf32> -> vector<8x384xf32>
    %415 = vector.extract_strided_slice %412 {offsets = [0, 0], sizes = [8, 128], strides = [1, 1]} : vector<8x384xf32> to vector<8x128xf32>
    %416 = vector.extract_strided_slice %414 {offsets = [0, 0], sizes = [8, 128], strides = [1, 1]} : vector<8x384xf32> to vector<8x128xf32>
    %417 = arith.addf %415, %416 : vector<8x128xf32>
    %418 = arith.negf %417 : vector<8x128xf32>
    %419 = math.exp %418 : vector<8x128xf32>
    %cst_171 = arith.constant 1.000000e+00 : f32
    %420 = vector.broadcast %cst_171 : f32 to vector<8x128xf32>
    %421 = arith.addf %420, %419 : vector<8x128xf32>
    %422 = arith.divf %420, %421 : vector<8x128xf32>
    %423 = vector.extract_strided_slice %412 {offsets = [0, 128], sizes = [8, 128], strides = [1, 1]} : vector<8x384xf32> to vector<8x128xf32>
    %424 = vector.extract_strided_slice %414 {offsets = [0, 128], sizes = [8, 128], strides = [1, 1]} : vector<8x384xf32> to vector<8x128xf32>
    %425 = arith.addf %423, %424 : vector<8x128xf32>
    %426 = arith.negf %425 : vector<8x128xf32>
    %427 = math.exp %426 : vector<8x128xf32>
    %cst_172 = arith.constant 1.000000e+00 : f32
    %428 = vector.broadcast %cst_172 : f32 to vector<8x128xf32>
    %429 = arith.addf %428, %427 : vector<8x128xf32>
    %430 = arith.divf %428, %429 : vector<8x128xf32>
    %431 = vector.extract_strided_slice %412 {offsets = [0, 256], sizes = [8, 128], strides = [1, 1]} : vector<8x384xf32> to vector<8x128xf32>
    %432 = vector.extract_strided_slice %414 {offsets = [0, 256], sizes = [8, 128], strides = [1, 1]} : vector<8x384xf32> to vector<8x128xf32>
    %433 = vector.broadcast %322 : vector<1x128xf32> to vector<8x128xf32>
    %434 = arith.addf %432, %433 : vector<8x128xf32>
    %435 = arith.mulf %422, %434 : vector<8x128xf32>
    %436 = arith.addf %431, %435 : vector<8x128xf32>
    %437 = math.tanh %436 : vector<8x128xf32>
    %cst_173 = arith.constant 1.000000e+00 : f32
    %438 = vector.broadcast %cst_173 : f32 to vector<8x128xf32>
    %439 = arith.subf %438, %430 : vector<8x128xf32>
    %440 = arith.mulf %439, %437 : vector<8x128xf32>
    %441 = arith.mulf %430, %413 : vector<8x128xf32>
    %442 = arith.addf %440, %441 : vector<8x128xf32>
    %c0_174 = arith.constant 0 : index
    %c0_175 = arith.constant 0 : index
    %443 = vector.load %arg16[%c0_174, %c0_175] : memref<8x128xf32, #tpu.memory_space<vmem>>, vector<8x128xf32>
    tpu.vector_store %arg16[%c0_174, %c0_175], %442 {strides = array<i32>} : memref<8x128xf32, #tpu.memory_space<vmem>>, vector<8x128xf32>,
    %cst_176 = arith.constant 0.000000e+00 : f32
    %444 = vector.broadcast %cst_176 : f32 to vector<8x128xf32>
    %445 = arith.maximumf %442, %444 : vector<8x128xf32>
    %c0_177 = arith.constant 0 : index
    %c0_178 = arith.constant 0 : index
    %446 = vector.load %arg17[%c0_177, %c0_178] : memref<8x128xf32, #tpu.memory_space<vmem>>, vector<8x128xf32>
    %447 = arith.addf %446, %445 : vector<8x128xf32>
    %c0_179 = arith.constant 0 : index
    %c0_180 = arith.constant 0 : index
    %448 = vector.load %arg17[%c0_179, %c0_180] : memref<8x128xf32, #tpu.memory_space<vmem>>, vector<8x128xf32>
    tpu.vector_store %arg17[%c0_179, %c0_180], %447 {strides = array<i32>} : memref<8x128xf32, #tpu.memory_space<vmem>>, vector<8x128xf32>,
    %c0_181 = arith.constant 0 : index
    %c0_182 = arith.constant 0 : index
    %449 = vector.load %arg18[%c0_181, %c0_182] : memref<8x128xf32, #tpu.memory_space<vmem>>, vector<8x128xf32>
    %450 = arith.maximumf %449, %445 : vector<8x128xf32>
    %c0_183 = arith.constant 0 : index
    %c0_184 = arith.constant 0 : index
    %451 = vector.load %arg18[%c0_183, %c0_184] : memref<8x128xf32, #tpu.memory_space<vmem>>, vector<8x128xf32>
    tpu.vector_store %arg18[%c0_183, %c0_184], %450 {strides = array<i32>} : memref<8x128xf32, #tpu.memory_space<vmem>>, vector<8x128xf32>,
    %c3_i32_185 = arith.constant 3 : i32
    %c8_i32_186 = arith.constant 8 : i32
    %452 = arith.muli %c3_i32_185, %c8_i32_186 : i32
    %453 = tpu.assume_multiple %452, 8 : i32
    %454 = arith.index_cast %453 : i32 to index
    %c0_187 = arith.constant 0 : index
    %455 = vector.load %arg14[%454, %c0_187] : memref<64x384xf32, #tpu.memory_space<vmem>>, vector<8x384xf32>
    %c0_188 = arith.constant 0 : index
    %c0_189 = arith.constant 0 : index
    %456 = vector.load %arg16[%c0_188, %c0_189] : memref<8x128xf32, #tpu.memory_space<vmem>>, vector<8x128xf32>
    %cst_190 = arith.constant dense<0.000000e+00> : vector<8x384xf32>
    %457 = tpu.matmul %456, %321, %cst_190 {dimension_numbers = #tpu.dot_dimension_numbers<[1], [0], [0], [1], [0, 0, 1, 1], [], []>} : vector<8x128xf32>, vector<128x384xf32>, vector<8x384xf32> -> vector<8x384xf32>
    %458 = vector.extract_strided_slice %455 {offsets = [0, 0], sizes = [8, 128], strides = [1, 1]} : vector<8x384xf32> to vector<8x128xf32>
    %459 = vector.extract_strided_slice %457 {offsets = [0, 0], sizes = [8, 128], strides = [1, 1]} : vector<8x384xf32> to vector<8x128xf32>
    %460 = arith.addf %458, %459 : vector<8x128xf32>
    %461 = arith.negf %460 : vector<8x128xf32>
    %462 = math.exp %461 : vector<8x128xf32>
    %cst_191 = arith.constant 1.000000e+00 : f32
    %463 = vector.broadcast %cst_191 : f32 to vector<8x128xf32>
    %464 = arith.addf %463, %462 : vector<8x128xf32>
    %465 = arith.divf %463, %464 : vector<8x128xf32>
    %466 = vector.extract_strided_slice %455 {offsets = [0, 128], sizes = [8, 128], strides = [1, 1]} : vector<8x384xf32> to vector<8x128xf32>
    %467 = vector.extract_strided_slice %457 {offsets = [0, 128], sizes = [8, 128], strides = [1, 1]} : vector<8x384xf32> to vector<8x128xf32>
    %468 = arith.addf %466, %467 : vector<8x128xf32>
    %469 = arith.negf %468 : vector<8x128xf32>
    %470 = math.exp %469 : vector<8x128xf32>
    %cst_192 = arith.constant 1.000000e+00 : f32
    %471 = vector.broadcast %cst_192 : f32 to vector<8x128xf32>
    %472 = arith.addf %471, %470 : vector<8x128xf32>
    %473 = arith.divf %471, %472 : vector<8x128xf32>
    %474 = vector.extract_strided_slice %455 {offsets = [0, 256], sizes = [8, 128], strides = [1, 1]} : vector<8x384xf32> to vector<8x128xf32>
    %475 = vector.extract_strided_slice %457 {offsets = [0, 256], sizes = [8, 128], strides = [1, 1]} : vector<8x384xf32> to vector<8x128xf32>
    %476 = vector.broadcast %322 : vector<1x128xf32> to vector<8x128xf32>
    %477 = arith.addf %475, %476 : vector<8x128xf32>
    %478 = arith.mulf %465, %477 : vector<8x128xf32>
    %479 = arith.addf %474, %478 : vector<8x128xf32>
    %480 = math.tanh %479 : vector<8x128xf32>
    %cst_193 = arith.constant 1.000000e+00 : f32
    %481 = vector.broadcast %cst_193 : f32 to vector<8x128xf32>
    %482 = arith.subf %481, %473 : vector<8x128xf32>
    %483 = arith.mulf %482, %480 : vector<8x128xf32>
    %484 = arith.mulf %473, %456 : vector<8x128xf32>
    %485 = arith.addf %483, %484 : vector<8x128xf32>
    %c0_194 = arith.constant 0 : index
    %c0_195 = arith.constant 0 : index
    %486 = vector.load %arg16[%c0_194, %c0_195] : memref<8x128xf32, #tpu.memory_space<vmem>>, vector<8x128xf32>
    tpu.vector_store %arg16[%c0_194, %c0_195], %485 {strides = array<i32>} : memref<8x128xf32, #tpu.memory_space<vmem>>, vector<8x128xf32>,
    %cst_196 = arith.constant 0.000000e+00 : f32
    %487 = vector.broadcast %cst_196 : f32 to vector<8x128xf32>
    %488 = arith.maximumf %485, %487 : vector<8x128xf32>
    %c0_197 = arith.constant 0 : index
    %c0_198 = arith.constant 0 : index
    %489 = vector.load %arg17[%c0_197, %c0_198] : memref<8x128xf32, #tpu.memory_space<vmem>>, vector<8x128xf32>
    %490 = arith.addf %489, %488 : vector<8x128xf32>
    %c0_199 = arith.constant 0 : index
    %c0_200 = arith.constant 0 : index
    %491 = vector.load %arg17[%c0_199, %c0_200] : memref<8x128xf32, #tpu.memory_space<vmem>>, vector<8x128xf32>
    tpu.vector_store %arg17[%c0_199, %c0_200], %490 {strides = array<i32>} : memref<8x128xf32, #tpu.memory_space<vmem>>, vector<8x128xf32>,
    %c0_201 = arith.constant 0 : index
    %c0_202 = arith.constant 0 : index
    %492 = vector.load %arg18[%c0_201, %c0_202] : memref<8x128xf32, #tpu.memory_space<vmem>>, vector<8x128xf32>
    %493 = arith.maximumf %492, %488 : vector<8x128xf32>
    %c0_203 = arith.constant 0 : index
    %c0_204 = arith.constant 0 : index
    %494 = vector.load %arg18[%c0_203, %c0_204] : memref<8x128xf32, #tpu.memory_space<vmem>>, vector<8x128xf32>
    tpu.vector_store %arg18[%c0_203, %c0_204], %493 {strides = array<i32>} : memref<8x128xf32, #tpu.memory_space<vmem>>, vector<8x128xf32>,
    %c4_i32_205 = arith.constant 4 : i32
    %c8_i32_206 = arith.constant 8 : i32
    %495 = arith.muli %c4_i32_205, %c8_i32_206 : i32
    %496 = tpu.assume_multiple %495, 8 : i32
    %497 = arith.index_cast %496 : i32 to index
    %c0_207 = arith.constant 0 : index
    %498 = vector.load %arg14[%497, %c0_207] : memref<64x384xf32, #tpu.memory_space<vmem>>, vector<8x384xf32>
    %c0_208 = arith.constant 0 : index
    %c0_209 = arith.constant 0 : index
    %499 = vector.load %arg16[%c0_208, %c0_209] : memref<8x128xf32, #tpu.memory_space<vmem>>, vector<8x128xf32>
    %cst_210 = arith.constant dense<0.000000e+00> : vector<8x384xf32>
    %500 = tpu.matmul %499, %321, %cst_210 {dimension_numbers = #tpu.dot_dimension_numbers<[1], [0], [0], [1], [0, 0, 1, 1], [], []>} : vector<8x128xf32>, vector<128x384xf32>, vector<8x384xf32> -> vector<8x384xf32>
    %501 = vector.extract_strided_slice %498 {offsets = [0, 0], sizes = [8, 128], strides = [1, 1]} : vector<8x384xf32> to vector<8x128xf32>
    %502 = vector.extract_strided_slice %500 {offsets = [0, 0], sizes = [8, 128], strides = [1, 1]} : vector<8x384xf32> to vector<8x128xf32>
    %503 = arith.addf %501, %502 : vector<8x128xf32>
    %504 = arith.negf %503 : vector<8x128xf32>
    %505 = math.exp %504 : vector<8x128xf32>
    %cst_211 = arith.constant 1.000000e+00 : f32
    %506 = vector.broadcast %cst_211 : f32 to vector<8x128xf32>
    %507 = arith.addf %506, %505 : vector<8x128xf32>
    %508 = arith.divf %506, %507 : vector<8x128xf32>
    %509 = vector.extract_strided_slice %498 {offsets = [0, 128], sizes = [8, 128], strides = [1, 1]} : vector<8x384xf32> to vector<8x128xf32>
    %510 = vector.extract_strided_slice %500 {offsets = [0, 128], sizes = [8, 128], strides = [1, 1]} : vector<8x384xf32> to vector<8x128xf32>
    %511 = arith.addf %509, %510 : vector<8x128xf32>
    %512 = arith.negf %511 : vector<8x128xf32>
    %513 = math.exp %512 : vector<8x128xf32>
    %cst_212 = arith.constant 1.000000e+00 : f32
    %514 = vector.broadcast %cst_212 : f32 to vector<8x128xf32>
    %515 = arith.addf %514, %513 : vector<8x128xf32>
    %516 = arith.divf %514, %515 : vector<8x128xf32>
    %517 = vector.extract_strided_slice %498 {offsets = [0, 256], sizes = [8, 128], strides = [1, 1]} : vector<8x384xf32> to vector<8x128xf32>
    %518 = vector.extract_strided_slice %500 {offsets = [0, 256], sizes = [8, 128], strides = [1, 1]} : vector<8x384xf32> to vector<8x128xf32>
    %519 = vector.broadcast %322 : vector<1x128xf32> to vector<8x128xf32>
    %520 = arith.addf %518, %519 : vector<8x128xf32>
    %521 = arith.mulf %508, %520 : vector<8x128xf32>
    %522 = arith.addf %517, %521 : vector<8x128xf32>
    %523 = math.tanh %522 : vector<8x128xf32>
    %cst_213 = arith.constant 1.000000e+00 : f32
    %524 = vector.broadcast %cst_213 : f32 to vector<8x128xf32>
    %525 = arith.subf %524, %516 : vector<8x128xf32>
    %526 = arith.mulf %525, %523 : vector<8x128xf32>
    %527 = arith.mulf %516, %499 : vector<8x128xf32>
    %528 = arith.addf %526, %527 : vector<8x128xf32>
    %c0_214 = arith.constant 0 : index
    %c0_215 = arith.constant 0 : index
    %529 = vector.load %arg16[%c0_214, %c0_215] : memref<8x128xf32, #tpu.memory_space<vmem>>, vector<8x128xf32>
    tpu.vector_store %arg16[%c0_214, %c0_215], %528 {strides = array<i32>} : memref<8x128xf32, #tpu.memory_space<vmem>>, vector<8x128xf32>,
    %cst_216 = arith.constant 0.000000e+00 : f32
    %530 = vector.broadcast %cst_216 : f32 to vector<8x128xf32>
    %531 = arith.maximumf %528, %530 : vector<8x128xf32>
    %c0_217 = arith.constant 0 : index
    %c0_218 = arith.constant 0 : index
    %532 = vector.load %arg17[%c0_217, %c0_218] : memref<8x128xf32, #tpu.memory_space<vmem>>, vector<8x128xf32>
    %533 = arith.addf %532, %531 : vector<8x128xf32>
    %c0_219 = arith.constant 0 : index
    %c0_220 = arith.constant 0 : index
    %534 = vector.load %arg17[%c0_219, %c0_220] : memref<8x128xf32, #tpu.memory_space<vmem>>, vector<8x128xf32>
    tpu.vector_store %arg17[%c0_219, %c0_220], %533 {strides = array<i32>} : memref<8x128xf32, #tpu.memory_space<vmem>>, vector<8x128xf32>,
    %c0_221 = arith.constant 0 : index
    %c0_222 = arith.constant 0 : index
    %535 = vector.load %arg18[%c0_221, %c0_222] : memref<8x128xf32, #tpu.memory_space<vmem>>, vector<8x128xf32>
    %536 = arith.maximumf %535, %531 : vector<8x128xf32>
    %c0_223 = arith.constant 0 : index
    %c0_224 = arith.constant 0 : index
    %537 = vector.load %arg18[%c0_223, %c0_224] : memref<8x128xf32, #tpu.memory_space<vmem>>, vector<8x128xf32>
    tpu.vector_store %arg18[%c0_223, %c0_224], %536 {strides = array<i32>} : memref<8x128xf32, #tpu.memory_space<vmem>>, vector<8x128xf32>,
    %c5_i32_225 = arith.constant 5 : i32
    %c8_i32_226 = arith.constant 8 : i32
    %538 = arith.muli %c5_i32_225, %c8_i32_226 : i32
    %539 = tpu.assume_multiple %538, 8 : i32
    %540 = arith.index_cast %539 : i32 to index
    %c0_227 = arith.constant 0 : index
    %541 = vector.load %arg14[%540, %c0_227] : memref<64x384xf32, #tpu.memory_space<vmem>>, vector<8x384xf32>
    %c0_228 = arith.constant 0 : index
    %c0_229 = arith.constant 0 : index
    %542 = vector.load %arg16[%c0_228, %c0_229] : memref<8x128xf32, #tpu.memory_space<vmem>>, vector<8x128xf32>
    %cst_230 = arith.constant dense<0.000000e+00> : vector<8x384xf32>
    %543 = tpu.matmul %542, %321, %cst_230 {dimension_numbers = #tpu.dot_dimension_numbers<[1], [0], [0], [1], [0, 0, 1, 1], [], []>} : vector<8x128xf32>, vector<128x384xf32>, vector<8x384xf32> -> vector<8x384xf32>
    %544 = vector.extract_strided_slice %541 {offsets = [0, 0], sizes = [8, 128], strides = [1, 1]} : vector<8x384xf32> to vector<8x128xf32>
    %545 = vector.extract_strided_slice %543 {offsets = [0, 0], sizes = [8, 128], strides = [1, 1]} : vector<8x384xf32> to vector<8x128xf32>
    %546 = arith.addf %544, %545 : vector<8x128xf32>
    %547 = arith.negf %546 : vector<8x128xf32>
    %548 = math.exp %547 : vector<8x128xf32>
    %cst_231 = arith.constant 1.000000e+00 : f32
    %549 = vector.broadcast %cst_231 : f32 to vector<8x128xf32>
    %550 = arith.addf %549, %548 : vector<8x128xf32>
    %551 = arith.divf %549, %550 : vector<8x128xf32>
    %552 = vector.extract_strided_slice %541 {offsets = [0, 128], sizes = [8, 128], strides = [1, 1]} : vector<8x384xf32> to vector<8x128xf32>
    %553 = vector.extract_strided_slice %543 {offsets = [0, 128], sizes = [8, 128], strides = [1, 1]} : vector<8x384xf32> to vector<8x128xf32>
    %554 = arith.addf %552, %553 : vector<8x128xf32>
    %555 = arith.negf %554 : vector<8x128xf32>
    %556 = math.exp %555 : vector<8x128xf32>
    %cst_232 = arith.constant 1.000000e+00 : f32
    %557 = vector.broadcast %cst_232 : f32 to vector<8x128xf32>
    %558 = arith.addf %557, %556 : vector<8x128xf32>
    %559 = arith.divf %557, %558 : vector<8x128xf32>
    %560 = vector.extract_strided_slice %541 {offsets = [0, 256], sizes = [8, 128], strides = [1, 1]} : vector<8x384xf32> to vector<8x128xf32>
    %561 = vector.extract_strided_slice %543 {offsets = [0, 256], sizes = [8, 128], strides = [1, 1]} : vector<8x384xf32> to vector<8x128xf32>
    %562 = vector.broadcast %322 : vector<1x128xf32> to vector<8x128xf32>
    %563 = arith.addf %561, %562 : vector<8x128xf32>
    %564 = arith.mulf %551, %563 : vector<8x128xf32>
    %565 = arith.addf %560, %564 : vector<8x128xf32>
    %566 = math.tanh %565 : vector<8x128xf32>
    %cst_233 = arith.constant 1.000000e+00 : f32
    %567 = vector.broadcast %cst_233 : f32 to vector<8x128xf32>
    %568 = arith.subf %567, %559 : vector<8x128xf32>
    %569 = arith.mulf %568, %566 : vector<8x128xf32>
    %570 = arith.mulf %559, %542 : vector<8x128xf32>
    %571 = arith.addf %569, %570 : vector<8x128xf32>
    %c0_234 = arith.constant 0 : index
    %c0_235 = arith.constant 0 : index
    %572 = vector.load %arg16[%c0_234, %c0_235] : memref<8x128xf32, #tpu.memory_space<vmem>>, vector<8x128xf32>
    tpu.vector_store %arg16[%c0_234, %c0_235], %571 {strides = array<i32>} : memref<8x128xf32, #tpu.memory_space<vmem>>, vector<8x128xf32>,
    %cst_236 = arith.constant 0.000000e+00 : f32
    %573 = vector.broadcast %cst_236 : f32 to vector<8x128xf32>
    %574 = arith.maximumf %571, %573 : vector<8x128xf32>
    %c0_237 = arith.constant 0 : index
    %c0_238 = arith.constant 0 : index
    %575 = vector.load %arg17[%c0_237, %c0_238] : memref<8x128xf32, #tpu.memory_space<vmem>>, vector<8x128xf32>
    %576 = arith.addf %575, %574 : vector<8x128xf32>
    %c0_239 = arith.constant 0 : index
    %c0_240 = arith.constant 0 : index
    %577 = vector.load %arg17[%c0_239, %c0_240] : memref<8x128xf32, #tpu.memory_space<vmem>>, vector<8x128xf32>
    tpu.vector_store %arg17[%c0_239, %c0_240], %576 {strides = array<i32>} : memref<8x128xf32, #tpu.memory_space<vmem>>, vector<8x128xf32>,
    %c0_241 = arith.constant 0 : index
    %c0_242 = arith.constant 0 : index
    %578 = vector.load %arg18[%c0_241, %c0_242] : memref<8x128xf32, #tpu.memory_space<vmem>>, vector<8x128xf32>
    %579 = arith.maximumf %578, %574 : vector<8x128xf32>
    %c0_243 = arith.constant 0 : index
    %c0_244 = arith.constant 0 : index
    %580 = vector.load %arg18[%c0_243, %c0_244] : memref<8x128xf32, #tpu.memory_space<vmem>>, vector<8x128xf32>
    tpu.vector_store %arg18[%c0_243, %c0_244], %579 {strides = array<i32>} : memref<8x128xf32, #tpu.memory_space<vmem>>, vector<8x128xf32>,
    %c6_i32_245 = arith.constant 6 : i32
    %c8_i32_246 = arith.constant 8 : i32
    %581 = arith.muli %c6_i32_245, %c8_i32_246 : i32
    %582 = tpu.assume_multiple %581, 8 : i32
    %583 = arith.index_cast %582 : i32 to index
    %c0_247 = arith.constant 0 : index
    %584 = vector.load %arg14[%583, %c0_247] : memref<64x384xf32, #tpu.memory_space<vmem>>, vector<8x384xf32>
    %c0_248 = arith.constant 0 : index
    %c0_249 = arith.constant 0 : index
    %585 = vector.load %arg16[%c0_248, %c0_249] : memref<8x128xf32, #tpu.memory_space<vmem>>, vector<8x128xf32>
    %cst_250 = arith.constant dense<0.000000e+00> : vector<8x384xf32>
    %586 = tpu.matmul %585, %321, %cst_250 {dimension_numbers = #tpu.dot_dimension_numbers<[1], [0], [0], [1], [0, 0, 1, 1], [], []>} : vector<8x128xf32>, vector<128x384xf32>, vector<8x384xf32> -> vector<8x384xf32>
    %587 = vector.extract_strided_slice %584 {offsets = [0, 0], sizes = [8, 128], strides = [1, 1]} : vector<8x384xf32> to vector<8x128xf32>
    %588 = vector.extract_strided_slice %586 {offsets = [0, 0], sizes = [8, 128], strides = [1, 1]} : vector<8x384xf32> to vector<8x128xf32>
    %589 = arith.addf %587, %588 : vector<8x128xf32>
    %590 = arith.negf %589 : vector<8x128xf32>
    %591 = math.exp %590 : vector<8x128xf32>
    %cst_251 = arith.constant 1.000000e+00 : f32
    %592 = vector.broadcast %cst_251 : f32 to vector<8x128xf32>
    %593 = arith.addf %592, %591 : vector<8x128xf32>
    %594 = arith.divf %592, %593 : vector<8x128xf32>
    %595 = vector.extract_strided_slice %584 {offsets = [0, 128], sizes = [8, 128], strides = [1, 1]} : vector<8x384xf32> to vector<8x128xf32>
    %596 = vector.extract_strided_slice %586 {offsets = [0, 128], sizes = [8, 128], strides = [1, 1]} : vector<8x384xf32> to vector<8x128xf32>
    %597 = arith.addf %595, %596 : vector<8x128xf32>
    %598 = arith.negf %597 : vector<8x128xf32>
    %599 = math.exp %598 : vector<8x128xf32>
    %cst_252 = arith.constant 1.000000e+00 : f32
    %600 = vector.broadcast %cst_252 : f32 to vector<8x128xf32>
    %601 = arith.addf %600, %599 : vector<8x128xf32>
    %602 = arith.divf %600, %601 : vector<8x128xf32>
    %603 = vector.extract_strided_slice %584 {offsets = [0, 256], sizes = [8, 128], strides = [1, 1]} : vector<8x384xf32> to vector<8x128xf32>
    %604 = vector.extract_strided_slice %586 {offsets = [0, 256], sizes = [8, 128], strides = [1, 1]} : vector<8x384xf32> to vector<8x128xf32>
    %605 = vector.broadcast %322 : vector<1x128xf32> to vector<8x128xf32>
    %606 = arith.addf %604, %605 : vector<8x128xf32>
    %607 = arith.mulf %594, %606 : vector<8x128xf32>
    %608 = arith.addf %603, %607 : vector<8x128xf32>
    %609 = math.tanh %608 : vector<8x128xf32>
    %cst_253 = arith.constant 1.000000e+00 : f32
    %610 = vector.broadcast %cst_253 : f32 to vector<8x128xf32>
    %611 = arith.subf %610, %602 : vector<8x128xf32>
    %612 = arith.mulf %611, %609 : vector<8x128xf32>
    %613 = arith.mulf %602, %585 : vector<8x128xf32>
    %614 = arith.addf %612, %613 : vector<8x128xf32>
    %c0_254 = arith.constant 0 : index
    %c0_255 = arith.constant 0 : index
    %615 = vector.load %arg16[%c0_254, %c0_255] : memref<8x128xf32, #tpu.memory_space<vmem>>, vector<8x128xf32>
    tpu.vector_store %arg16[%c0_254, %c0_255], %614 {strides = array<i32>} : memref<8x128xf32, #tpu.memory_space<vmem>>, vector<8x128xf32>,
    %cst_256 = arith.constant 0.000000e+00 : f32
    %616 = vector.broadcast %cst_256 : f32 to vector<8x128xf32>
    %617 = arith.maximumf %614, %616 : vector<8x128xf32>
    %c0_257 = arith.constant 0 : index
    %c0_258 = arith.constant 0 : index
    %618 = vector.load %arg17[%c0_257, %c0_258] : memref<8x128xf32, #tpu.memory_space<vmem>>, vector<8x128xf32>
    %619 = arith.addf %618, %617 : vector<8x128xf32>
    %c0_259 = arith.constant 0 : index
    %c0_260 = arith.constant 0 : index
    %620 = vector.load %arg17[%c0_259, %c0_260] : memref<8x128xf32, #tpu.memory_space<vmem>>, vector<8x128xf32>
    tpu.vector_store %arg17[%c0_259, %c0_260], %619 {strides = array<i32>} : memref<8x128xf32, #tpu.memory_space<vmem>>, vector<8x128xf32>,
    %c0_261 = arith.constant 0 : index
    %c0_262 = arith.constant 0 : index
    %621 = vector.load %arg18[%c0_261, %c0_262] : memref<8x128xf32, #tpu.memory_space<vmem>>, vector<8x128xf32>
    %622 = arith.maximumf %621, %617 : vector<8x128xf32>
    %c0_263 = arith.constant 0 : index
    %c0_264 = arith.constant 0 : index
    %623 = vector.load %arg18[%c0_263, %c0_264] : memref<8x128xf32, #tpu.memory_space<vmem>>, vector<8x128xf32>
    tpu.vector_store %arg18[%c0_263, %c0_264], %622 {strides = array<i32>} : memref<8x128xf32, #tpu.memory_space<vmem>>, vector<8x128xf32>,
    %c7_i32_265 = arith.constant 7 : i32
    %c8_i32_266 = arith.constant 8 : i32
    %624 = arith.muli %c7_i32_265, %c8_i32_266 : i32
    %625 = tpu.assume_multiple %624, 8 : i32
    %626 = arith.index_cast %625 : i32 to index
    %c0_267 = arith.constant 0 : index
    %627 = vector.load %arg14[%626, %c0_267] : memref<64x384xf32, #tpu.memory_space<vmem>>, vector<8x384xf32>
    %c0_268 = arith.constant 0 : index
    %c0_269 = arith.constant 0 : index
    %628 = vector.load %arg16[%c0_268, %c0_269] : memref<8x128xf32, #tpu.memory_space<vmem>>, vector<8x128xf32>
    %cst_270 = arith.constant dense<0.000000e+00> : vector<8x384xf32>
    %629 = tpu.matmul %628, %321, %cst_270 {dimension_numbers = #tpu.dot_dimension_numbers<[1], [0], [0], [1], [0, 0, 1, 1], [], []>} : vector<8x128xf32>, vector<128x384xf32>, vector<8x384xf32> -> vector<8x384xf32>
    %630 = vector.extract_strided_slice %627 {offsets = [0, 0], sizes = [8, 128], strides = [1, 1]} : vector<8x384xf32> to vector<8x128xf32>
    %631 = vector.extract_strided_slice %629 {offsets = [0, 0], sizes = [8, 128], strides = [1, 1]} : vector<8x384xf32> to vector<8x128xf32>
    %632 = arith.addf %630, %631 : vector<8x128xf32>
    %633 = arith.negf %632 : vector<8x128xf32>
    %634 = math.exp %633 : vector<8x128xf32>
    %cst_271 = arith.constant 1.000000e+00 : f32
    %635 = vector.broadcast %cst_271 : f32 to vector<8x128xf32>
    %636 = arith.addf %635, %634 : vector<8x128xf32>
    %637 = arith.divf %635, %636 : vector<8x128xf32>
    %638 = vector.extract_strided_slice %627 {offsets = [0, 128], sizes = [8, 128], strides = [1, 1]} : vector<8x384xf32> to vector<8x128xf32>
    %639 = vector.extract_strided_slice %629 {offsets = [0, 128], sizes = [8, 128], strides = [1, 1]} : vector<8x384xf32> to vector<8x128xf32>
    %640 = arith.addf %638, %639 : vector<8x128xf32>
    %641 = arith.negf %640 : vector<8x128xf32>
    %642 = math.exp %641 : vector<8x128xf32>
    %cst_272 = arith.constant 1.000000e+00 : f32
    %643 = vector.broadcast %cst_272 : f32 to vector<8x128xf32>
    %644 = arith.addf %643, %642 : vector<8x128xf32>
    %645 = arith.divf %643, %644 : vector<8x128xf32>
    %646 = vector.extract_strided_slice %627 {offsets = [0, 256], sizes = [8, 128], strides = [1, 1]} : vector<8x384xf32> to vector<8x128xf32>
    %647 = vector.extract_strided_slice %629 {offsets = [0, 256], sizes = [8, 128], strides = [1, 1]} : vector<8x384xf32> to vector<8x128xf32>
    %648 = vector.broadcast %322 : vector<1x128xf32> to vector<8x128xf32>
    %649 = arith.addf %647, %648 : vector<8x128xf32>
    %650 = arith.mulf %637, %649 : vector<8x128xf32>
    %651 = arith.addf %646, %650 : vector<8x128xf32>
    %652 = math.tanh %651 : vector<8x128xf32>
    %cst_273 = arith.constant 1.000000e+00 : f32
    %653 = vector.broadcast %cst_273 : f32 to vector<8x128xf32>
    %654 = arith.subf %653, %645 : vector<8x128xf32>
    %655 = arith.mulf %654, %652 : vector<8x128xf32>
    %656 = arith.mulf %645, %628 : vector<8x128xf32>
    %657 = arith.addf %655, %656 : vector<8x128xf32>
    %c0_274 = arith.constant 0 : index
    %c0_275 = arith.constant 0 : index
    %658 = vector.load %arg16[%c0_274, %c0_275] : memref<8x128xf32, #tpu.memory_space<vmem>>, vector<8x128xf32>
    tpu.vector_store %arg16[%c0_274, %c0_275], %657 {strides = array<i32>} : memref<8x128xf32, #tpu.memory_space<vmem>>, vector<8x128xf32>,
    %cst_276 = arith.constant 0.000000e+00 : f32
    %659 = vector.broadcast %cst_276 : f32 to vector<8x128xf32>
    %660 = arith.maximumf %657, %659 : vector<8x128xf32>
    %c0_277 = arith.constant 0 : index
    %c0_278 = arith.constant 0 : index
    %661 = vector.load %arg17[%c0_277, %c0_278] : memref<8x128xf32, #tpu.memory_space<vmem>>, vector<8x128xf32>
    %662 = arith.addf %661, %660 : vector<8x128xf32>
    %c0_279 = arith.constant 0 : index
    %c0_280 = arith.constant 0 : index
    %663 = vector.load %arg17[%c0_279, %c0_280] : memref<8x128xf32, #tpu.memory_space<vmem>>, vector<8x128xf32>
    tpu.vector_store %arg17[%c0_279, %c0_280], %662 {strides = array<i32>} : memref<8x128xf32, #tpu.memory_space<vmem>>, vector<8x128xf32>,
    %c0_281 = arith.constant 0 : index
    %c0_282 = arith.constant 0 : index
    %664 = vector.load %arg18[%c0_281, %c0_282] : memref<8x128xf32, #tpu.memory_space<vmem>>, vector<8x128xf32>
    %665 = arith.maximumf %664, %660 : vector<8x128xf32>
    %c0_283 = arith.constant 0 : index
    %c0_284 = arith.constant 0 : index
    %666 = vector.load %arg18[%c0_283, %c0_284] : memref<8x128xf32, #tpu.memory_space<vmem>>, vector<8x128xf32>
    tpu.vector_store %arg18[%c0_283, %c0_284], %665 {strides = array<i32>} : memref<8x128xf32, #tpu.memory_space<vmem>>, vector<8x128xf32>,
    %c8_i32_285 = arith.constant 8 : i32
    %c0_286 = arith.constant 0 : index
    %c0_287 = arith.constant 0 : index
    %667 = vector.load %arg17[%c0_286, %c0_287] : memref<8x128xf32, #tpu.memory_space<vmem>>, vector<8x128xf32>
    %cst_288 = arith.constant 1.250000e-01 : f32
    %668 = vector.broadcast %cst_288 : f32 to vector<8x128xf32>
    %669 = arith.mulf %667, %668 : vector<8x128xf32>
    %c0_289 = arith.constant 0 : index
    %c0_290 = arith.constant 0 : index
    %670 = vector.load %arg10[%c0_289, %c0_290] : memref<128x128xf32, #tpu.memory_space<vmem>>, vector<128x128xf32>
    %cst_291 = arith.constant dense<0.000000e+00> : vector<8x128xf32>
    %671 = tpu.matmul %669, %670, %cst_291 {dimension_numbers = #tpu.dot_dimension_numbers<[1], [0], [0], [1], [0, 0, 1, 1], [], []>} : vector<8x128xf32>, vector<128x128xf32>, vector<8x128xf32> -> vector<8x128xf32>
    %c0_292 = arith.constant 0 : index
    %c0_293 = arith.constant 0 : index
    %672 = vector.load %arg18[%c0_292, %c0_293] : memref<8x128xf32, #tpu.memory_space<vmem>>, vector<8x128xf32>
    %c0_294 = arith.constant 0 : index
    %c0_295 = arith.constant 0 : index
    %673 = vector.load %arg11[%c0_294, %c0_295] : memref<128x128xf32, #tpu.memory_space<vmem>>, vector<128x128xf32>
    %cst_296 = arith.constant dense<0.000000e+00> : vector<8x128xf32>
    %674 = tpu.matmul %672, %673, %cst_296 {dimension_numbers = #tpu.dot_dimension_numbers<[1], [0], [0], [1], [0, 0, 1, 1], [], []>} : vector<8x128xf32>, vector<128x128xf32>, vector<8x128xf32> -> vector<8x128xf32>
    %675 = arith.addf %671, %674 : vector<8x128xf32>
    %c0_297 = arith.constant 0 : index
    %c0_298 = arith.constant 0 : index
    %676 = vector.load %arg12[%c0_297, %c0_298] : memref<1x128xf32, #tpu.memory_space<vmem>>, vector<1x128xf32>
    %677 = vector.broadcast %676 : vector<1x128xf32> to vector<8x128xf32>
    %678 = arith.addf %675, %677 : vector<8x128xf32>
    %c0_299 = arith.constant 0 : index
    %c0_300 = arith.constant 0 : index
    %679 = vector.load %arg13[%c0_299, %c0_300] : memref<8x128xf32, #tpu.memory_space<vmem>>, vector<8x128xf32>
    tpu.vector_store %arg13[%c0_299, %c0_300], %678 {strides = array<i32>} : memref<8x128xf32, #tpu.memory_space<vmem>>, vector<8x128xf32>,
    return
  }
  func.func @transform_0(%arg0: i32) -> (i32, i32, i32) {
    %c0_i32 = arith.constant 0 : i32
    %c0_i32_0 = arith.constant 0 : i32
    %c0_i32_1 = arith.constant 0 : i32
    return %c0_i32, %arg0, %c0_i32_0 : i32, i32, i32
  }
  func.func @transform_1(%arg0: i32) -> (i32, i32) {
    %c0_i32 = arith.constant 0 : i32
    %c0_i32_0 = arith.constant 0 : i32
    %c0_i32_1 = arith.constant 0 : i32
    return %c0_i32, %c0_i32_0 : i32, i32
  }
  func.func @transform_2(%arg0: i32) -> (i32, i32) {
    %c0_i32 = arith.constant 0 : i32
    %c0_i32_0 = arith.constant 0 : i32
    %c0_i32_1 = arith.constant 0 : i32
    return %c0_i32, %c0_i32_0 : i32, i32
  }
  func.func @transform_3(%arg0: i32) -> (i32, i32) {
    %c0_i32 = arith.constant 0 : i32
    %c0_i32_0 = arith.constant 0 : i32
    %c0_i32_1 = arith.constant 0 : i32
    return %c0_i32, %c0_i32_0 : i32, i32
  }
  func.func @transform_4(%arg0: i32) -> (i32, i32) {
    %c0_i32 = arith.constant 0 : i32
    %c0_i32_0 = arith.constant 0 : i32
    %c0_i32_1 = arith.constant 0 : i32
    return %c0_i32, %c0_i32_0 : i32, i32
  }
  func.func @transform_5(%arg0: i32) -> (i32, i32) {
    %c0_i32 = arith.constant 0 : i32
    %c0_i32_0 = arith.constant 0 : i32
    %c0_i32_1 = arith.constant 0 : i32
    return %c0_i32, %c0_i32_0 : i32, i32
  }
  func.func @transform_6(%arg0: i32) -> (i32, i32) {
    %c0_i32 = arith.constant 0 : i32
    %c0_i32_0 = arith.constant 0 : i32
    %c0_i32_1 = arith.constant 0 : i32
    return %c0_i32, %c0_i32_0 : i32, i32
  }
  func.func @transform_7(%arg0: i32) -> (i32, i32) {
    %c0_i32 = arith.constant 0 : i32
    %c0_i32_0 = arith.constant 0 : i32
    %c0_i32_1 = arith.constant 0 : i32
    return %c0_i32, %c0_i32_0 : i32, i32
  }
  func.func @transform_8(%arg0: i32) -> (i32, i32) {
    %c0_i32 = arith.constant 0 : i32
    %c0_i32_0 = arith.constant 0 : i32
    %c0_i32_1 = arith.constant 0 : i32
    return %c0_i32, %c0_i32_0 : i32, i32
  }
  func.func @transform_9(%arg0: i32) -> (i32, i32) {
    %c0_i32 = arith.constant 0 : i32
    %c0_i32_0 = arith.constant 0 : i32
    %c0_i32_1 = arith.constant 0 : i32
    return %c0_i32, %c0_i32_0 : i32, i32
  }
  func.func @transform_10(%arg0: i32) -> (i32, i32) {
    %c0_i32 = arith.constant 0 : i32
    %c0_i32_0 = arith.constant 0 : i32
    %c0_i32_1 = arith.constant 0 : i32
    return %c0_i32, %c0_i32_0 : i32, i32
  }
  func.func @transform_11(%arg0: i32) -> (i32, i32) {
    %c0_i32 = arith.constant 0 : i32
    %c0_i32_0 = arith.constant 0 : i32
    %c0_i32_1 = arith.constant 0 : i32
    return %c0_i32, %c0_i32_0 : i32, i32
  }
  func.func @transform_12(%arg0: i32) -> (i32, i32) {
    %c0_i32 = arith.constant 0 : i32
    %c0_i32_0 = arith.constant 0 : i32
    return %arg0, %c0_i32 : i32, i32
  }
}

</mosaic_0001>

<llo_original>
// kernel: motion_discriminator_forward.1
$region0: #{motion_discriminator_forward.1}
  #allocation0 [shape = 'u32[]', space=smem, size = 0x4, offset = 0x4, fixed_abs, tag = 'smem constant byte address 0x4 - core index']
  #allocation1 [shape = 'u32[72,128]{1,0:T(1,128)}', space=vmem, size = 0x9000, scoped, tag = 'internal scratch']
  #allocation2 [shape = 'f32[64,384]{1,0:T(8,128)}', space=vmem, size = 0x18000, scoped, tag = 'scratch operand']
  #allocation3 [shape = 'f32[64,128]{1,0:T(8,128)}', space=vmem, size = 0x8000, scoped, tag = 'scratch operand']
  #allocation4 [shape = 'f32[8,128]{1,0:T(8,128)}', space=vmem, size = 0x1000, scoped, tag = 'scratch operand']
  #allocation5 [shape = 'f32[8,128]{1,0:T(8,128)}', space=vmem, size = 0x1000, scoped, tag = 'scratch operand']
  #allocation6 [shape = 'f32[8,128]{1,0:T(8,128)}', space=vmem, size = 0x1000, scoped, tag = 'scratch operand']
  %s0 = inlined_call_operand.vmem [shape: f32[8,8,128], index: 0, kind: input, shape index: {}]
  %s1 = inlined_call_operand.hbm [shape: f32[128,384], index: 1, kind: input, shape index: {}]
  %s2 = inlined_call_operand.hbm [shape: f32[128,384], index: 2, kind: input, shape index: {}]
  %s3 = inlined_call_operand.vmem [shape: f32[1,384], index: 3, kind: input, shape index: {}]
  %s4 = inlined_call_operand.vmem [shape: f32[1,128], index: 4, kind: input, shape index: {}]
  %s5 = inlined_call_operand.hbm [shape: f32[128,384], index: 5, kind: input, shape index: {}]
  %s6 = inlined_call_operand.hbm [shape: f32[128,384], index: 6, kind: input, shape index: {}]
  %s7 = inlined_call_operand.vmem [shape: f32[1,384], index: 7, kind: input, shape index: {}]
  %s8 = inlined_call_operand.vmem [shape: f32[1,128], index: 8, kind: input, shape index: {}]
  %s9 = inlined_call_operand.hbm [shape: f32[128,128], index: 9, kind: input, shape index: {}]
  %s10 = inlined_call_operand.hbm [shape: f32[128,128], index: 10, kind: input, shape index: {}]
  %s11 = inlined_call_operand.vmem [shape: f32[1,128], index: 11, kind: input, shape index: {}]
  %s12 = inlined_call_operand.vmem [shape: f32[8,128], index: 12, kind: output, shape index: {}]
  %s13 = sld [smem:[#allocation0]]
  $region82: #{motion_discriminator_forward.1} parent=0
    _
  %s15 = ssub.s32 1, %s13
  %s16 = scalar_select 0, %s15, %s13
  $region1: #{motion_discriminator_forward.1} parent=0
    #allocation7 [shape = 'u8[196608]{0}', space=vmem, size = 0x30000, scoped, tag = 'input window, operand 1, single buffered']
    #allocation8 [shape = 's32[1]{0}', space=sflag, size = 0x4, scoped, tag = 'scoped memory for motion_discriminator_forward.1']
    #allocation9 [shape = 'u8[196608]{0}', space=vmem, size = 0x30000, scoped, tag = 'input window, operand 2, single buffered']
    #allocation10 [shape = 's32[1]{0}', space=sflag, size = 0x4, scoped, tag = 'scoped memory for motion_discriminator_forward.1']
    #allocation11 [shape = 'u8[196608]{0}', space=vmem, size = 0x30000, scoped, tag = 'input window, operand 5, single buffered']
    #allocation12 [shape = 'u8[196608]{0}', space=vmem, size = 0x30000, scoped, tag = 'input window, operand 6, single buffered']
    #allocation13 [shape = 's32[1]{0}', space=sflag, size = 0x4, scoped, tag = 'scoped memory for motion_discriminator_forward.1']
    #allocation14 [shape = 'u8[65536]{0}', space=vmem, size = 0x10000, scoped, tag = 'input window, operand 9, single buffered']
    #allocation15 [shape = 'u8[65536]{0}', space=vmem, size = 0x10000, scoped, tag = 'input window, operand 10, single buffered']
    #allocation16 [shape = 's32[1]{0}', space=sflag, size = 0x4, scoped, tag = 'scoped memory for motion_discriminator_forward.1']
    %17 = vsyncpa [#allocation8], 0
    %18 = vsyncpa [#allocation10], 0
    %19 = vsyncpa [#allocation13], 0
    %20 = vsyncpa [#allocation16], 0
    // Predicated region
    $region2: #{motion_discriminator_forward.1} parent=1 // pred_check
      _
    $region3: #{motion_discriminator_forward.1} parent=1 // pred_check_branch
      %22 = sbr.rel (0) target = $region5
    $region4: #{motion_discriminator_forward.1} parent=1 // pred_region
      _
    $region5: #{motion_discriminator_forward.1} parent=1 // pred_fallthru
      _
    // Predicated region
    $region6: #{motion_discriminator_forward.1} parent=1 // pred_check
      _
    $region7: #{motion_discriminator_forward.1} parent=1 // pred_check_branch
      %24 = sbr.rel (0) target = $region9
    $region8: #{motion_discriminator_forward.1} parent=1 // pred_region
      %26 = vsyncadd [#allocation8], 0
      %s27 = sshll.u32 %s1, 4
      %s28 = int_to_ptr.hbm [resolvable:$true] %s27
      %s29 = sshll.u32 [#allocation7], 4
      %s30 = int_to_ptr.vmem [resolvable:$true] %s29
      %35 = dma.hbm_to_vmem [thread:$0]  %s28, 6144, %s30, [#allocation8], 384, 384, 24
    $region9: #{motion_discriminator_forward.1} parent=1 // pred_fallthru
      _
    // Predicated region
    $region10: #{motion_discriminator_forward.1} parent=1 // pred_check
      _
    $region11: #{motion_discriminator_forward.1} parent=1 // pred_check_branch
      %37 = sbr.rel (0) target = $region13
    $region12: #{motion_discriminator_forward.1} parent=1 // pred_region
      %39 = vsyncadd [#allocation10], 0
      %s40 = sshll.u32 %s2, 4
      %s41 = int_to_ptr.hbm [resolvable:$true] %s40
      %s42 = sshll.u32 [#allocation9], 4
      %s43 = int_to_ptr.vmem [resolvable:$true] %s42
      %48 = dma.hbm_to_vmem [thread:$0]  %s41, 6144, %s43, [#allocation10], 384, 384, 24
    $region13: #{motion_discriminator_forward.1} parent=1 // pred_fallthru
      _
    // Predicated region
    $region14: #{motion_discriminator_forward.1} parent=1 // pred_check
      _
    $region15: #{motion_discriminator_forward.1} parent=1 // pred_check_branch
      %50 = sbr.rel (0) target = $region17
    $region16: #{motion_discriminator_forward.1} parent=1 // pred_region
      _
    $region17: #{motion_discriminator_forward.1} parent=1 // pred_fallthru
      _
    // Predicated region
    $region18: #{motion_discriminator_forward.1} parent=1 // pred_check
      _
    $region19: #{motion_discriminator_forward.1} parent=1 // pred_check_branch
      %52 = sbr.rel (0) target = $region21
    $region20: #{motion_discriminator_forward.1} parent=1 // pred_region
      _
    $region21: #{motion_discriminator_forward.1} parent=1 // pred_fallthru
      _
    // Predicated region
    $region22: #{motion_discriminator_forward.1} parent=1 // pred_check
      _
    $region23: #{motion_discriminator_forward.1} parent=1 // pred_check_branch
      %54 = sbr.rel (0) target = $region25
    $region24: #{motion_discriminator_forward.1} parent=1 // pred_region
      %56 = vsyncadd [#allocation10], 0
      %s57 = sshll.u32 %s5, 4
      %s58 = int_to_ptr.hbm [resolvable:$true] %s57
      %s59 = sshll.u32 [#allocation11], 4
      %s60 = int_to_ptr.vmem [resolvable:$true] %s59
      %65 = dma.hbm_to_vmem [thread:$0]  %s58, 6144, %s60, [#allocation10], 384, 384, 24
    $region25: #{motion_discriminator_forward.1} parent=1 // pred_fallthru
      _
    // Predicated region
    $region26: #{motion_discriminator_forward.1} parent=1 // pred_check
      _
    $region27: #{motion_discriminator_forward.1} parent=1 // pred_check_branch
      %67 = sbr.rel (0) target = $region29
    $region28: #{motion_discriminator_forward.1} parent=1 // pred_region
      %69 = vsyncadd [#allocation13], 0
      %s70 = sshll.u32 %s6, 4
      %s71 = int_to_ptr.hbm [resolvable:$true] %s70
      %s72 = sshll.u32 [#allocation12], 4
      %s73 = int_to_ptr.vmem [resolvable:$true] %s72
      %78 = dma.hbm_to_vmem [thread:$0]  %s71, 6144, %s73, [#allocation13], 384, 384, 24
    $region29: #{motion_discriminator_forward.1} parent=1 // pred_fallthru
      _
    // Predicated region
    $region30: #{motion_discriminator_forward.1} parent=1 // pred_check
      _
    $region31: #{motion_discriminator_forward.1} parent=1 // pred_check_branch
      %80 = sbr.rel (0) target = $region33
    $region32: #{motion_discriminator_forward.1} parent=1 // pred_region
      _
    $region33: #{motion_discriminator_forward.1} parent=1 // pred_fallthru
      _
    // Predicated region
    $region34: #{motion_discriminator_forward.1} parent=1 // pred_check
      _
    $region35: #{motion_discriminator_forward.1} parent=1 // pred_check_branch
      %82 = sbr.rel (0) target = $region37
    $region36: #{motion_discriminator_forward.1} parent=1 // pred_region
      _
    $region37: #{motion_discriminator_forward.1} parent=1 // pred_fallthru
      _
    // Predicated region
    $region38: #{motion_discriminator_forward.1} parent=1 // pred_check
      _
    $region39: #{motion_discriminator_forward.1} parent=1 // pred_check_branch
      %84 = sbr.rel (0) target = $region41
    $region40: #{motion_discriminator_forward.1} parent=1 // pred_region
      %86 = vsyncadd [#allocation13], 0
      %s87 = sshll.u32 %s9, 4
      %s88 = int_to_ptr.hbm [resolvable:$true] %s87
      %s89 = sshll.u32 [#allocation14], 4
      %s90 = int_to_ptr.vmem [resolvable:$true] %s89
      %95 = dma.hbm_to_vmem [thread:$0]  %s88, 2048, %s90, [#allocation13], 128, 128, 8
    $region41: #{motion_discriminator_forward.1} parent=1 // pred_fallthru
      _
    // Predicated region
    $region42: #{motion_discriminator_forward.1} parent=1 // pred_check
      _
    $region43: #{motion_discriminator_forward.1} parent=1 // pred_check_branch
      %97 = sbr.rel (0) target = $region45
    $region44: #{motion_discriminator_forward.1} parent=1 // pred_region
      %99 = vsyncadd [#allocation16], 0
      %s100 = sshll.u32 %s10, 4
      %s101 = int_to_ptr.hbm [resolvable:$true] %s100
      %s102 = sshll.u32 [#allocation15], 4
      %s103 = int_to_ptr.vmem [resolvable:$true] %s102
      %108 = dma.hbm_to_vmem [thread:$0]  %s101, 2048, %s103, [#allocation16], 128, 128, 8
    $region45: #{motion_discriminator_forward.1} parent=1 // pred_fallthru
      _
    // Predicated region
    $region46: #{motion_discriminator_forward.1} parent=1 // pred_check
      _
    $region47: #{motion_discriminator_forward.1} parent=1 // pred_check_branch
      %110 = sbr.rel (0) target = $region49
    $region48: #{motion_discriminator_forward.1} parent=1 // pred_region
      _
    $region49: #{motion_discriminator_forward.1} parent=1 // pred_fallthru
      _
    // Predicated region
    $region50: #{motion_discriminator_forward.1} parent=1 // pred_check
      _
    $region51: #{motion_discriminator_forward.1} parent=1 // pred_check_branch
      %112 = sbr.rel (0) target = $region53
    $region52: #{motion_discriminator_forward.1} parent=1 // pred_region
      %114 = dma.done [#allocation8], 6144
    $region53: #{motion_discriminator_forward.1} parent=1 // pred_fallthru
      _
    // Predicated region
    $region54: #{motion_discriminator_forward.1} parent=1 // pred_check
      _
    $region55: #{motion_discriminator_forward.1} parent=1 // pred_check_branch
      %116 = sbr.rel (0) target = $region57
    $region56: #{motion_discriminator_forward.1} parent=1 // pred_region
      %118 = dma.done [#allocation10], 6144
    $region57: #{motion_discriminator_forward.1} parent=1 // pred_fallthru
      _
    // Predicated region
    $region58: #{motion_discriminator_forward.1} parent=1 // pred_check
      _
    $region59: #{motion_discriminator_forward.1} parent=1 // pred_check_branch
      %120 = sbr.rel (0) target = $region61
    $region60: #{motion_discriminator_forward.1} parent=1 // pred_region
      %122 = dma.done [#allocation10], 6144
    $region61: #{motion_discriminator_forward.1} parent=1 // pred_fallthru
      _
    // Predicated region
    $region62: #{motion_discriminator_forward.1} parent=1 // pred_check
      _
    $region63: #{motion_discriminator_forward.1} parent=1 // pred_check_branch
      %124 = sbr.rel (0) target = $region65
    $region64: #{motion_discriminator_forward.1} parent=1 // pred_region
      %126 = dma.done [#allocation13], 6144
    $region65: #{motion_discriminator_forward.1} parent=1 // pred_fallthru
      _
    // Predicated region
    $region66: #{motion_discriminator_forward.1} parent=1 // pred_check
      _
    $region67: #{motion_discriminator_forward.1} parent=1 // pred_check_branch
      %128 = sbr.rel (0) target = $region69
    $region68: #{motion_discriminator_forward.1} parent=1 // pred_region
      %130 = dma.done [#allocation13], 2048
    $region69: #{motion_discriminator_forward.1} parent=1 // pred_fallthru
      _
    // Predicated region
    $region70: #{motion_discriminator_forward.1} parent=1 // pred_check
      _
    $region71: #{motion_discriminator_forward.1} parent=1 // pred_check_branch
      %132 = sbr.rel (0) target = $region73
    $region72: #{motion_discriminator_forward.1} parent=1 // pred_region
      %134 = dma.done [#allocation16], 2048
    $region73: #{motion_discriminator_forward.1} parent=1 // pred_fallthru
      _
    %v135 = vld [vmem:[%s0] sm:$0xff]
    %v136 = vld [vmem:[%s0 + $0x8] sm:$0xff]
    %v137 = vld [vmem:[%s0 + $0x10] sm:$0xff]
    %v138 = vld [vmem:[%s0 + $0x18] sm:$0xff]
    %v139 = vld [vmem:[%s0 + $0x20] sm:$0xff]
    %v140 = vld [vmem:[%s0 + $0x28] sm:$0xff]
    %v141 = vld [vmem:[%s0 + $0x30] sm:$0xff]
    %v142 = vld [vmem:[%s0 + $0x38] sm:$0xff]
    %v143 = vld [vmem:[#allocation7] sm:$0xff]
    %v144 = vld [vmem:[#allocation7 + $0x8] sm:$0xff]
    %v145 = vld [vmem:[#allocation7 + $0x10] sm:$0xff]
    %v146 = vld [vmem:[#allocation7 + $0x18] sm:$0xff]
    %v147 = vld [vmem:[#allocation7 + $0x20] sm:$0xff]
    %v148 = vld [vmem:[#allocation7 + $0x28] sm:$0xff]
    %v149 = vld [vmem:[#allocation7 + $0x30] sm:$0xff]
    %v150 = vld [vmem:[#allocation7 + $0x38] sm:$0xff]
    %v151 = vld [vmem:[#allocation7 + $0x40] sm:$0xff]
    %v152 = vld [vmem:[#allocation7 + $0x48] sm:$0xff]
    %v153 = vld [vmem:[#allocation7 + $0x50] sm:$0xff]
    %v154 = vld [vmem:[#allocation7 + $0x58] sm:$0xff]
    %v155 = vld [vmem:[#allocation7 + $0x60] sm:$0xff]
    %v156 = vld [vmem:[#allocation7 + $0x68] sm:$0xff]
    %v157 = vld [vmem:[#allocation7 + $0x70] sm:$0xff]
    %v158 = vld [vmem:[#allocation7 + $0x78] sm:$0xff]
    %v159 = vld [vmem:[#allocation7 + $0x80] sm:$0xff]
    %v160 = vld [vmem:[#allocation7 + $0x88] sm:$0xff]
    %v161 = vld [vmem:[#allocation7 + $0x90] sm:$0xff]
    %v162 = vld [vmem:[#allocation7 + $0x98] sm:$0xff]
    %v163 = vld [vmem:[#allocation7 + $0xa0] sm:$0xff]
    %v164 = vld [vmem:[#allocation7 + $0xa8] sm:$0xff]
    %v165 = vld [vmem:[#allocation7 + $0xb0] sm:$0xff]
    %v166 = vld [vmem:[#allocation7 + $0xb8] sm:$0xff]
    %v167 = vld [vmem:[#allocation7 + $0xc0] sm:$0xff]
    %v168 = vld [vmem:[#allocation7 + $0xc8] sm:$0xff]
    %v169 = vld [vmem:[#allocation7 + $0xd0] sm:$0xff]
    %v170 = vld [vmem:[#allocation7 + $0xd8] sm:$0xff]
    %v171 = vld [vmem:[#allocation7 + $0xe0] sm:$0xff]
    %v172 = vld [vmem:[#allocation7 + $0xe8] sm:$0xff]
    %v173 = vld [vmem:[#allocation7 + $0xf0] sm:$0xff]
    %v174 = vld [vmem:[#allocation7 + $0xf8] sm:$0xff]
    %v175 = vld [vmem:[#allocation7 + $0x100] sm:$0xff]
    %v176 = vld [vmem:[#allocation7 + $0x108] sm:$0xff]
    %v177 = vld [vmem:[#allocation7 + $0x110] sm:$0xff]
    %v178 = vld [vmem:[#allocation7 + $0x118] sm:$0xff]
    %v179 = vld [vmem:[#allocation7 + $0x120] sm:$0xff]
    %v180 = vld [vmem:[#allocation7 + $0x128] sm:$0xff]
    %v181 = vld [vmem:[#allocation7 + $0x130] sm:$0xff]
    %v182 = vld [vmem:[#allocation7 + $0x138] sm:$0xff]
    %v183 = vld [vmem:[#allocation7 + $0x140] sm:$0xff]
    %v184 = vld [vmem:[#allocation7 + $0x148] sm:$0xff]
    %v185 = vld [vmem:[#allocation7 + $0x150] sm:$0xff]
    %v186 = vld [vmem:[#allocation7 + $0x158] sm:$0xff]
    %v187 = vld [vmem:[#allocation7 + $0x160] sm:$0xff]
    %v188 = vld [vmem:[#allocation7 + $0x168] sm:$0xff]
    %v189 = vld [vmem:[#allocation7 + $0x170] sm:$0xff]
    %v190 = vld [vmem:[#allocation7 + $0x178] sm:$0xff]
    %v191 = vld [vmem:[%s3] sm:$0x7]
    %v193 = vperm.slane %v191, 0
    %v194 = vperm.slane %v191, 1
    %v195 = vperm.slane %v191, 2
    %199 = vmatpush.msra.mxu0 %v188
    %200 = vmatpush.msra.mxu0 %v185
    %201 = vmatpush.msra.mxu0 %v182
    %202 = vmatpush.msra.mxu0 %v179
    %203 = vmatpush.msra.mxu0 %v176
    %204 = vmatpush.msra.mxu0 %v173
    %205 = vmatpush.msra.mxu0 %v170
    %206 = vmatpush.msra.mxu0 %v167
    %207 = vmatpush.msra.mxu0 %v164
    %208 = vmatpush.msra.mxu0 %v161
    %209 = vmatpush.msra.mxu0 %v158
    %210 = vmatpush.msra.mxu0 %v155
    %211 = vmatpush.msra.mxu0 %v152
    %212 = vmatpush.msra.mxu0 %v149
    %213 = vmatpush.msra.mxu0 %v146
    %214 = vmatpush.msra.mxu0 %v143
    %215 = vmatmul.f32.gmra.mxu0 %v135
    %v216 = vpop.f32.mrf.mxu0
    %v217 = vadd.f32 %v193, %v216
    %218 = vmatmul.f32.gmra.mxu0 %v136
    %v219 = vpop.f32.mrf.mxu0
    %v220 = vadd.f32 %v193, %v219
    %221 = vmatmul.f32.gmra.mxu0 %v137
    %v222 = vpop.f32.mrf.mxu0
    %v223 = vadd.f32 %v193, %v222
    %224 = vmatmul.f32.gmra.mxu0 %v138
    %v225 = vpop.f32.mrf.mxu0
    %v226 = vadd.f32 %v193, %v225
    %227 = vmatmul.f32.gmra.mxu0 %v139
    %v228 = vpop.f32.mrf.mxu0
    %v229 = vadd.f32 %v193, %v228
    %230 = vmatmul.f32.gmra.mxu0 %v140
    %v231 = vpop.f32.mrf.mxu0
    %v232 = vadd.f32 %v193, %v231
    %233 = vmatmul.f32.gmra.mxu0 %v141
    %v234 = vpop.f32.mrf.mxu0
    %v235 = vadd.f32 %v193, %v234
    %236 = vmatmul.f32.gmra.mxu0 %v142
    %v237 = vpop.f32.mrf.mxu0
    %v238 = vadd.f32 %v193, %v237
    %239 = vdwg.mxu0
    %240 = vmatpush.msra.mxu0 %v189
    %241 = vmatpush.msra.mxu0 %v186
    %242 = vmatpush.msra.mxu0 %v183
    %243 = vmatpush.msra.mxu0 %v180
    %244 = vmatpush.msra.mxu0 %v177
    %245 = vmatpush.msra.mxu0 %v174
    %246 = vmatpush.msra.mxu0 %v171
    %247 = vmatpush.msra.mxu0 %v168
    %248 = vmatpush.msra.mxu0 %v165
    %249 = vmatpush.msra.mxu0 %v162
    %250 = vmatpush.msra.mxu0 %v159
    %251 = vmatpush.msra.mxu0 %v156
    %252 = vmatpush.msra.mxu0 %v153
    %253 = vmatpush.msra.mxu0 %v150
    %254 = vmatpush.msra.mxu0 %v147
    %255 = vmatpush.msra.mxu0 %v144
    %256 = vmatmul.f32.gmra.mxu0 %v135
    %v257 = vpop.f32.mrf.mxu0
    %v258 = vadd.f32 %v194, %v257
    %259 = vmatmul.f32.gmra.mxu0 %v136
    %v260 = vpop.f32.mrf.mxu0
    %v261 = vadd.f32 %v194, %v260
    %262 = vmatmul.f32.gmra.mxu0 %v137
    %v263 = vpop.f32.mrf.mxu0
    %v264 = vadd.f32 %v194, %v263
    %265 = vmatmul.f32.gmra.mxu0 %v138
    %v266 = vpop.f32.mrf.mxu0
    %v267 = vadd.f32 %v194, %v266
    %268 = vmatmul.f32.gmra.mxu0 %v139
    %v269 = vpop.f32.mrf.mxu0
    %v270 = vadd.f32 %v194, %v269
    %271 = vmatmul.f32.gmra.mxu0 %v140
    %v272 = vpop.f32.mrf.mxu0
    %v273 = vadd.f32 %v194, %v272
    %274 = vmatmul.f32.gmra.mxu0 %v141
    %v275 = vpop.f32.mrf.mxu0
    %v276 = vadd.f32 %v194, %v275
    %277 = vmatmul.f32.gmra.mxu0 %v142
    %v278 = vpop.f32.mrf.mxu0
    %v279 = vadd.f32 %v194, %v278
    %280 = vdwg.mxu0
    %281 = vmatpush.msra.mxu0 %v190
    %282 = vmatpush.msra.mxu0 %v187
    %283 = vmatpush.msra.mxu0 %v184
    %284 = vmatpush.msra.mxu0 %v181
    %285 = vmatpush.msra.mxu0 %v178
    %286 = vmatpush.msra.mxu0 %v175
    %287 = vmatpush.msra.mxu0 %v172
    %288 = vmatpush.msra.mxu0 %v169
    %289 = vmatpush.msra.mxu0 %v166
    %290 = vmatpush.msra.mxu0 %v163
    %291 = vmatpush.msra.mxu0 %v160
    %292 = vmatpush.msra.mxu0 %v157
    %293 = vmatpush.msra.mxu0 %v154
    %294 = vmatpush.msra.mxu0 %v151
    %295 = vmatpush.msra.mxu0 %v148
    %296 = vmatpush.msra.mxu0 %v145
    %297 = vmatmul.f32.gmra.mxu0 %v135
    %v298 = vpop.f32.mrf.mxu0
    %v299 = vadd.f32 %v195, %v298
    %300 = vmatmul.f32.gmra.mxu0 %v136
    %v301 = vpop.f32.mrf.mxu0
    %v302 = vadd.f32 %v195, %v301
    %303 = vmatmul.f32.gmra.mxu0 %v137
    %v304 = vpop.f32.mrf.mxu0
    %v305 = vadd.f32 %v195, %v304
    %306 = vmatmul.f32.gmra.mxu0 %v138
    %v307 = vpop.f32.mrf.mxu0
    %v308 = vadd.f32 %v195, %v307
    %309 = vmatmul.f32.gmra.mxu0 %v139
    %v310 = vpop.f32.mrf.mxu0
    %v311 = vadd.f32 %v195, %v310
    %312 = vmatmul.f32.gmra.mxu0 %v140
    %v313 = vpop.f32.mrf.mxu0
    %v314 = vadd.f32 %v195, %v313
    %315 = vmatmul.f32.gmra.mxu0 %v141
    %v316 = vpop.f32.mrf.mxu0
    %v317 = vadd.f32 %v195, %v316
    %318 = vmatmul.f32.gmra.mxu0 %v142
    %v319 = vpop.f32.mrf.mxu0
    %v320 = vadd.f32 %v195, %v319
    %321 = vdwg.mxu0
    %322 = vst [vmem:[#allocation2] sm:$0xff] %v217
    %323 = vst [vmem:[#allocation2 + $0x8] sm:$0xff] %v258
    %324 = vst [vmem:[#allocation2 + $0x10] sm:$0xff] %v299
    %325 = vst [vmem:[#allocation2 + $0x18] sm:$0xff] %v220
    %326 = vst [vmem:[#allocation2 + $0x20] sm:$0xff] %v261
    %327 = vst [vmem:[#allocation2 + $0x28] sm:$0xff] %v302
    %328 = vst [vmem:[#allocation2 + $0x30] sm:$0xff] %v223
    %329 = vst [vmem:[#allocation2 + $0x38] sm:$0xff] %v264
    %330 = vst [vmem:[#allocation2 + $0x40] sm:$0xff] %v305
    %331 = vst [vmem:[#allocation2 + $0x48] sm:$0xff] %v226
    %332 = vst [vmem:[#allocation2 + $0x50] sm:$0xff] %v267
    %333 = vst [vmem:[#allocation2 + $0x58] sm:$0xff] %v308
    %334 = vst [vmem:[#allocation2 + $0x60] sm:$0xff] %v229
    %335 = vst [vmem:[#allocation2 + $0x68] sm:$0xff] %v270
    %336 = vst [vmem:[#allocation2 + $0x70] sm:$0xff] %v311
    %337 = vst [vmem:[#allocation2 + $0x78] sm:$0xff] %v232
    %338 = vst [vmem:[#allocation2 + $0x80] sm:$0xff] %v273
    %339 = vst [vmem:[#allocation2 + $0x88] sm:$0xff] %v314
    %340 = vst [vmem:[#allocation2 + $0x90] sm:$0xff] %v235
    %341 = vst [vmem:[#allocation2 + $0x98] sm:$0xff] %v276
    %342 = vst [vmem:[#allocation2 + $0xa0] sm:$0xff] %v317
    %343 = vst [vmem:[#allocation2 + $0xa8] sm:$0xff] %v238
    %344 = vst [vmem:[#allocation2 + $0xb0] sm:$0xff] %v279
    %345 = vst [vmem:[#allocation2 + $0xb8] sm:$0xff] %v320
    %346 = vst [vmem:[#allocation4] sm:$0xff] 0.0
    %v347 = vld [vmem:[#allocation9] sm:$0xff]
    %v348 = vld [vmem:[#allocation9 + $0x8] sm:$0xff]
    %v349 = vld [vmem:[#allocation9 + $0x10] sm:$0xff]
    %v350 = vld [vmem:[#allocation9 + $0x18] sm:$0xff]
    %v351 = vld [vmem:[#allocation9 + $0x20] sm:$0xff]
    %v352 = vld [vmem:[#allocation9 + $0x28] sm:$0xff]
    %v353 = vld [vmem:[#allocation9 + $0x30] sm:$0xff]
    %v354 = vld [vmem:[#allocation9 + $0x38] sm:$0xff]
    %v355 = vld [vmem:[#allocation9 + $0x40] sm:$0xff]
    %v356 = vld [vmem:[#allocation9 + $0x48] sm:$0xff]
    %v357 = vld [vmem:[#allocation9 + $0x50] sm:$0xff]
    %v358 = vld [vmem:[#allocation9 + $0x58] sm:$0xff]
    %v359 = vld [vmem:[#allocation9 + $0x60] sm:$0xff]
    %v360 = vld [vmem:[#allocation9 + $0x68] sm:$0xff]
    %v361 = vld [vmem:[#allocation9 + $0x70] sm:$0xff]
    %v362 = vld [vmem:[#allocation9 + $0x78] sm:$0xff]
    %v363 = vld [vmem:[#allocation9 + $0x80] sm:$0xff]
    %v364 = vld [vmem:[#allocation9 + $0x88] sm:$0xff]
    %v365 = vld [vmem:[#allocation9 + $0x90] sm:$0xff]
    %v366 = vld [vmem:[#allocation9 + $0x98] sm:$0xff]
    %v367 = vld [vmem:[#allocation9 + $0xa0] sm:$0xff]
    %v368 = vld [vmem:[#allocation9 + $0xa8] sm:$0xff]
    %v369 = vld [vmem:[#allocation9 + $0xb0] sm:$0xff]
    %v370 = vld [vmem:[#allocation9 + $0xb8] sm:$0xff]
    %v371 = vld [vmem:[#allocation9 + $0xc0] sm:$0xff]
    %v372 = vld [vmem:[#allocation9 + $0xc8] sm:$0xff]
    %v373 = vld [vmem:[#allocation9 + $0xd0] sm:$0xff]
    %v374 = vld [vmem:[#allocation9 + $0xd8] sm:$0xff]
    %v375 = vld [vmem:[#allocation9 + $0xe0] sm:$0xff]
    %v376 = vld [vmem:[#allocation9 + $0xe8] sm:$0xff]
    %v377 = vld [vmem:[#allocation9 + $0xf0] sm:$0xff]
    %v378 = vld [vmem:[#allocation9 + $0xf8] sm:$0xff]
    %v379 = vld [vmem:[#allocation9 + $0x100] sm:$0xff]
    %v380 = vld [vmem:[#allocation9 + $0x108] sm:$0xff]
    %v381 = vld [vmem:[#allocation9 + $0x110] sm:$0xff]
    %v382 = vld [vmem:[#allocation9 + $0x118] sm:$0xff]
    %v383 = vld [vmem:[#allocation9 + $0x120] sm:$0xff]
    %v384 = vld [vmem:[#allocation9 + $0x128] sm:$0xff]
    %v385 = vld [vmem:[#allocation9 + $0x130] sm:$0xff]
    %v386 = vld [vmem:[#allocation9 + $0x138] sm:$0xff]
    %v387 = vld [vmem:[#allocation9 + $0x140] sm:$0xff]
    %v388 = vld [vmem:[#allocation9 + $0x148] sm:$0xff]
    %v389 = vld [vmem:[#allocation9 + $0x150] sm:$0xff]
    %v390 = vld [vmem:[#allocation9 + $0x158] sm:$0xff]
    %v391 = vld [vmem:[#allocation9 + $0x160] sm:$0xff]
    %v392 = vld [vmem:[#allocation9 + $0x168] sm:$0xff]
    %v393 = vld [vmem:[#allocation9 + $0x170] sm:$0xff]
    %v394 = vld [vmem:[#allocation9 + $0x178] sm:$0xff]
    %v395 = vld [vmem:[%s4] sm:$0x1]
    %s396 = smul.u32 0, 3
    %s397 = smul.addr %s396, 8
    %s398 = scalar_lea.vmem [#allocation2], %s397
    %v399 = vld [vmem:[%s398] sm:$0xff]
    %v400 = vld [vmem:[%s398 + $0x8] sm:$0xff]
    %v401 = vld [vmem:[%s398 + $0x10] sm:$0xff]
    %v402 = vld [vmem:[#allocation4] sm:$0xff]
    %403 = vmatpush.msra.mxu0 %v392
    %404 = vmatpush.msra.mxu0 %v389
    %405 = vmatpush.msra.mxu0 %v386
    %406 = vmatpush.msra.mxu0 %v383
    %407 = vmatpush.msra.mxu0 %v380
    %408 = vmatpush.msra.mxu0 %v377
    %409 = vmatpush.msra.mxu0 %v374
    %410 = vmatpush.msra.mxu0 %v371
    %411 = vmatpush.msra.mxu0 %v368
    %412 = vmatpush.msra.mxu0 %v365
    %413 = vmatpush.msra.mxu0 %v362
    %414 = vmatpush.msra.mxu0 %v359
    %415 = vmatpush.msra.mxu0 %v356
    %416 = vmatpush.msra.mxu0 %v353
    %417 = vmatpush.msra.mxu0 %v350
    %418 = vmatpush.msra.mxu0 %v347
    %419 = vmatmul.f32.gmra.mxu0 %v402
    %v420 = vpop.f32.mrf.mxu0
    %v421 = vadd.f32 0.0, %v420
    %422 = vdwg.mxu0
    %423 = vmatpush.msra.mxu0 %v393
    %424 = vmatpush.msra.mxu0 %v390
    %425 = vmatpush.msra.mxu0 %v387
    %426 = vmatpush.msra.mxu0 %v384
    %427 = vmatpush.msra.mxu0 %v381
    %428 = vmatpush.msra.mxu0 %v378
    %429 = vmatpush.msra.mxu0 %v375
    %430 = vmatpush.msra.mxu0 %v372
    %431 = vmatpush.msra.mxu0 %v369
    %432 = vmatpush.msra.mxu0 %v366
    %433 = vmatpush.msra.mxu0 %v363
    %434 = vmatpush.msra.mxu0 %v360
    %435 = vmatpush.msra.mxu0 %v357
    %436 = vmatpush.msra.mxu0 %v354
    %437 = vmatpush.msra.mxu0 %v351
    %438 = vmatpush.msra.mxu0 %v348
    %439 = vmatmul.f32.gmra.mxu0 %v402
    %v440 = vpop.f32.mrf.mxu0
    %v441 = vadd.f32 0.0, %v440
    %442 = vdwg.mxu0
    %443 = vmatpush.msra.mxu0 %v394
    %444 = vmatpush.msra.mxu0 %v391
    %445 = vmatpush.msra.mxu0 %v388
    %446 = vmatpush.msra.mxu0 %v385
    %447 = vmatpush.msra.mxu0 %v382
    %448 = vmatpush.msra.mxu0 %v379
    %449 = vmatpush.msra.mxu0 %v376
    %450 = vmatpush.msra.mxu0 %v373
    %451 = vmatpush.msra.mxu0 %v370
    %452 = vmatpush.msra.mxu0 %v367
    %453 = vmatpush.msra.mxu0 %v364
    %454 = vmatpush.msra.mxu0 %v361
    %455 = vmatpush.msra.mxu0 %v358
    %456 = vmatpush.msra.mxu0 %v355
    %457 = vmatpush.msra.mxu0 %v352
    %458 = vmatpush.msra.mxu0 %v349
    %459 = vmatmul.f32.gmra.mxu0 %v402
    %v460 = vpop.f32.mrf.mxu0
    %v461 = vadd.f32 0.0, %v460
    %462 = vdwg.mxu0
    %v463 = vadd.f32 %v399, %v421
    %v464 = vxor.u32 %v463, 2147483648
    %v465 = vmul.f32 %v464, 1.442695
    %v466 = vpow.pop %v465
    %v467 = vadd.f32 %v466, 1.0
    %v468 = vrcp.pop %v467
    %v469 = vmul.f32 %v467, %v468
    %v470 = vsub.f32 1.0, %v469
    %v471 = vmul.f32 %v468, %v470
    %v472 = vadd.f32 %v468, %v471
    %vm473 = vweird.f32 %v467
    %vm474 = vweird.f32 %v468
    %vm475 = vmor %vm473, %vm474
    %v476 = vsel %vm475, %v468, %v472
    %v477 = vand.u32 2147483647, %v467
    %vm478 = vcmp.eq.f32.partialorder %v477, 8.507059e+37
    %v479 = vand.u32 %v467, 2147483648
    %v480 = vor.u32 1.1754944e-38, %v479
    %v481 = vsel %vm478, %v480, %v476
    %v482 = vmul.f32 1.0, %v481
    %v483 = vadd.f32 %v400, %v441
    %v484 = vxor.u32 %v483, 2147483648
    %v485 = vmul.f32 %v484, 1.442695
    %v486 = vpow.pop %v485
    %v487 = vadd.f32 %v486, 1.0
    %v488 = vrcp.pop %v487
    %v489 = vmul.f32 %v487, %v488
    %v490 = vsub.f32 1.0, %v489
    %v491 = vmul.f32 %v488, %v490
    %v492 = vadd.f32 %v488, %v491
    %vm493 = vweird.f32 %v487
    %vm494 = vweird.f32 %v488
    %vm495 = vmor %vm493, %vm494
    %v496 = vsel %vm495, %v488, %v492
    %v497 = vand.u32 2147483647, %v487
    %vm498 = vcmp.eq.f32.partialorder %v497, 8.507059e+37
    %v499 = vand.u32 %v487, 2147483648
    %v500 = vor.u32 1.1754944e-38, %v499
    %v501 = vsel %vm498, %v500, %v496
    %v502 = vmul.f32 1.0, %v501
    %v504 = vperm.slane %v395, 0
    %v506 = vadd.f32 %v461, %v504
    %v507 = vmul.f32 %v482, %v506
    %v508 = vadd.f32 %v401, %v507
    %v509 = vtanh.pop %v508
    %v510 = vsub.f32 1.0, %v502
    %v511 = vmul.f32 %v510, %v509
    %v512 = vmul.f32 %v502, %v402
    %v513 = vadd.f32 %v511, %v512
    %514 = vst [vmem:[#allocation4] sm:$0xff] %v513
    %515 = vst [vmem:[#allocation3] sm:$0xff] %v513
    %s516 = smul.u32 1, 3
    %s517 = smul.addr %s516, 8
    %s518 = scalar_lea.vmem [#allocation2], %s517
    %v519 = vld [vmem:[%s518] sm:$0xff]
    %v520 = vld [vmem:[%s518 + $0x8] sm:$0xff]
    %v521 = vld [vmem:[%s518 + $0x10] sm:$0xff]
    %v522 = vld [vmem:[#allocation4] sm:$0xff]
    %523 = vmatpush.msra.mxu0 %v392
    %524 = vmatpush.msra.mxu0 %v389
    %525 = vmatpush.msra.mxu0 %v386
    %526 = vmatpush.msra.mxu0 %v383
    %527 = vmatpush.msra.mxu0 %v380
    %528 = vmatpush.msra.mxu0 %v377
    %529 = vmatpush.msra.mxu0 %v374
    %530 = vmatpush.msra.mxu0 %v371
    %531 = vmatpush.msra.mxu0 %v368
    %532 = vmatpush.msra.mxu0 %v365
    %533 = vmatpush.msra.mxu0 %v362
    %534 = vmatpush.msra.mxu0 %v359
    %535 = vmatpush.msra.mxu0 %v356
    %536 = vmatpush.msra.mxu0 %v353
    %537 = vmatpush.msra.mxu0 %v350
    %538 = vmatpush.msra.mxu0 %v347
    %539 = vmatmul.f32.gmra.mxu0 %v522
    %v540 = vpop.f32.mrf.mxu0
    %v541 = vadd.f32 0.0, %v540
    %542 = vdwg.mxu0
    %543 = vmatpush.msra.mxu0 %v393
    %544 = vmatpush.msra.mxu0 %v390
    %545 = vmatpush.msra.mxu0 %v387
    %546 = vmatpush.msra.mxu0 %v384
    %547 = vmatpush.msra.mxu0 %v381
    %548 = vmatpush.msra.mxu0 %v378
    %549 = vmatpush.msra.mxu0 %v375
    %550 = vmatpush.msra.mxu0 %v372
    %551 = vmatpush.msra.mxu0 %v369
    %552 = vmatpush.msra.mxu0 %v366
    %553 = vmatpush.msra.mxu0 %v363
    %554 = vmatpush.msra.mxu0 %v360
    %555 = vmatpush.msra.mxu0 %v357
    %556 = vmatpush.msra.mxu0 %v354
    %557 = vmatpush.msra.mxu0 %v351
    %558 = vmatpush.msra.mxu0 %v348
    %559 = vmatmul.f32.gmra.mxu0 %v522
    %v560 = vpop.f32.mrf.mxu0
    %v561 = vadd.f32 0.0, %v560
    %562 = vdwg.mxu0
    %563 = vmatpush.msra.mxu0 %v394
    %564 = vmatpush.msra.mxu0 %v391
    %565 = vmatpush.msra.mxu0 %v388
    %566 = vmatpush.msra.mxu0 %v385
    %567 = vmatpush.msra.mxu0 %v382
    %568 = vmatpush.msra.mxu0 %v379
    %569 = vmatpush.msra.mxu0 %v376
    %570 = vmatpush.msra.mxu0 %v373
    %571 = vmatpush.msra.mxu0 %v370
    %572 = vmatpush.msra.mxu0 %v367
    %573 = vmatpush.msra.mxu0 %v364
    %574 = vmatpush.msra.mxu0 %v361
    %575 = vmatpush.msra.mxu0 %v358
    %576 = vmatpush.msra.mxu0 %v355
    %577 = vmatpush.msra.mxu0 %v352
    %578 = vmatpush.msra.mxu0 %v349
    %579 = vmatmul.f32.gmra.mxu0 %v522
    %v580 = vpop.f32.mrf.mxu0
    %v581 = vadd.f32 0.0, %v580
    %582 = vdwg.mxu0
    %v583 = vadd.f32 %v519, %v541
    %v584 = vxor.u32 %v583, 2147483648
    %v585 = vmul.f32 %v584, 1.442695
    %v586 = vpow.pop %v585
    %v587 = vadd.f32 %v586, 1.0
    %v588 = vrcp.pop %v587
    %v589 = vmul.f32 %v587, %v588
    %v590 = vsub.f32 1.0, %v589
    %v591 = vmul.f32 %v588, %v590
    %v592 = vadd.f32 %v588, %v591
    %vm593 = vweird.f32 %v587
    %vm594 = vweird.f32 %v588
    %vm595 = vmor %vm593, %vm594
    %v596 = vsel %vm595, %v588, %v592
    %v597 = vand.u32 2147483647, %v587
    %vm598 = vcmp.eq.f32.partialorder %v597, 8.507059e+37
    %v599 = vand.u32 %v587, 2147483648
    %v600 = vor.u32 1.1754944e-38, %v599
    %v601 = vsel %vm598, %v600, %v596
    %v602 = vmul.f32 1.0, %v601
    %v603 = vadd.f32 %v520, %v561
    %v604 = vxor.u32 %v603, 2147483648
    %v605 = vmul.f32 %v604, 1.442695
    %v606 = vpow.pop %v605
    %v607 = vadd.f32 %v606, 1.0
    %v608 = vrcp.pop %v607
    %v609 = vmul.f32 %v607, %v608
    %v610 = vsub.f32 1.0, %v609
    %v611 = vmul.f32 %v608, %v610
    %v612 = vadd.f32 %v608, %v611
    %vm613 = vweird.f32 %v607
    %vm614 = vweird.f32 %v608
    %vm615 = vmor %vm613, %vm614
    %v616 = vsel %vm615, %v608, %v612
    %v617 = vand.u32 2147483647, %v607
    %vm618 = vcmp.eq.f32.partialorder %v617, 8.507059e+37
    %v619 = vand.u32 %v607, 2147483648
    %v620 = vor.u32 1.1754944e-38, %v619
    %v621 = vsel %vm618, %v620, %v616
    %v622 = vmul.f32 1.0, %v621
    %v623 = vadd.f32 %v581, %v504
    %v624 = vmul.f32 %v602, %v623
    %v625 = vadd.f32 %v521, %v624
    %v626 = vtanh.pop %v625
    %v627 = vsub.f32 1.0, %v622
    %v628 = vmul.f32 %v627, %v626
    %v629 = vmul.f32 %v622, %v522
    %v630 = vadd.f32 %v628, %v629
    %631 = vst [vmem:[#allocation4] sm:$0xff] %v630
    %s632 = scalar_lea.vmem [#allocation3], 8
    %633 = vst [vmem:[%s632] sm:$0xff] %v630
    %s634 = smul.u32 2, 3
    %s635 = smul.addr %s634, 8
    %s636 = scalar_lea.vmem [#allocation2], %s635
    %v637 = vld [vmem:[%s636] sm:$0xff]
    %v638 = vld [vmem:[%s636 + $0x8] sm:$0xff]
    %v639 = vld [vmem:[%s636 + $0x10] sm:$0xff]
    %v640 = vld [vmem:[#allocation4] sm:$0xff]
    %641 = vmatpush.msra.mxu0 %v392
    %642 = vmatpush.msra.mxu0 %v389
    %643 = vmatpush.msra.mxu0 %v386
    %644 = vmatpush.msra.mxu0 %v383
    %645 = vmatpush.msra.mxu0 %v380
    %646 = vmatpush.msra.mxu0 %v377
    %647 = vmatpush.msra.mxu0 %v374
    %648 = vmatpush.msra.mxu0 %v371
    %649 = vmatpush.msra.mxu0 %v368
    %650 = vmatpush.msra.mxu0 %v365
    %651 = vmatpush.msra.mxu0 %v362
    %652 = vmatpush.msra.mxu0 %v359
    %653 = vmatpush.msra.mxu0 %v356
    %654 = vmatpush.msra.mxu0 %v353
    %655 = vmatpush.msra.mxu0 %v350
    %656 = vmatpush.msra.mxu0 %v347
    %657 = vmatmul.f32.gmra.mxu0 %v640
    %v658 = vpop.f32.mrf.mxu0
    %v659 = vadd.f32 0.0, %v658
    %660 = vdwg.mxu0
    %661 = vmatpush.msra.mxu0 %v393
    %662 = vmatpush.msra.mxu0 %v390
    %663 = vmatpush.msra.mxu0 %v387
    %664 = vmatpush.msra.mxu0 %v384
    %665 = vmatpush.msra.mxu0 %v381
    %666 = vmatpush.msra.mxu0 %v378
    %667 = vmatpush.msra.mxu0 %v375
    %668 = vmatpush.msra.mxu0 %v372
    %669 = vmatpush.msra.mxu0 %v369
    %670 = vmatpush.msra.mxu0 %v366
    %671 = vmatpush.msra.mxu0 %v363
    %672 = vmatpush.msra.mxu0 %v360
    %673 = vmatpush.msra.mxu0 %v357
    %674 = vmatpush.msra.mxu0 %v354
    %675 = vmatpush.msra.mxu0 %v351
    %676 = vmatpush.msra.mxu0 %v348
    %677 = vmatmul.f32.gmra.mxu0 %v640
    %v678 = vpop.f32.mrf.mxu0
    %v679 = vadd.f32 0.0, %v678
    %680 = vdwg.mxu0
    %681 = vmatpush.msra.mxu0 %v394
    %682 = vmatpush.msra.mxu0 %v391
    %683 = vmatpush.msra.mxu0 %v388
    %684 = vmatpush.msra.mxu0 %v385
    %685 = vmatpush.msra.mxu0 %v382
    %686 = vmatpush.msra.mxu0 %v379
    %687 = vmatpush.msra.mxu0 %v376
    %688 = vmatpush.msra.mxu0 %v373
    %689 = vmatpush.msra.mxu0 %v370
    %690 = vmatpush.msra.mxu0 %v367
    %691 = vmatpush.msra.mxu0 %v364
    %692 = vmatpush.msra.mxu0 %v361
    %693 = vmatpush.msra.mxu0 %v358
    %694 = vmatpush.msra.mxu0 %v355
    %695 = vmatpush.msra.mxu0 %v352
    %696 = vmatpush.msra.mxu0 %v349
    %697 = vmatmul.f32.gmra.mxu0 %v640
    %v698 = vpop.f32.mrf.mxu0
    %v699 = vadd.f32 0.0, %v698
    %700 = vdwg.mxu0
    %v701 = vadd.f32 %v637, %v659
    %v702 = vxor.u32 %v701, 2147483648
    %v703 = vmul.f32 %v702, 1.442695
    %v704 = vpow.pop %v703
    %v705 = vadd.f32 %v704, 1.0
    %v706 = vrcp.pop %v705
    %v707 = vmul.f32 %v705, %v706
    %v708 = vsub.f32 1.0, %v707
    %v709 = vmul.f32 %v706, %v708
    %v710 = vadd.f32 %v706, %v709
    %vm711 = vweird.f32 %v705
    %vm712 = vweird.f32 %v706
    %vm713 = vmor %vm711, %vm712
    %v714 = vsel %vm713, %v706, %v710
    %v715 = vand.u32 2147483647, %v705
    %vm716 = vcmp.eq.f32.partialorder %v715, 8.507059e+37
    %v717 = vand.u32 %v705, 2147483648
    %v718 = vor.u32 1.1754944e-38, %v717
    %v719 = vsel %vm716, %v718, %v714
    %v720 = vmul.f32 1.0, %v719
    %v721 = vadd.f32 %v638, %v679
    %v722 = vxor.u32 %v721, 2147483648
    %v723 = vmul.f32 %v722, 1.442695
    %v724 = vpow.pop %v723
    %v725 = vadd.f32 %v724, 1.0
    %v726 = vrcp.pop %v725
    %v727 = vmul.f32 %v725, %v726
    %v728 = vsub.f32 1.0, %v727
    %v729 = vmul.f32 %v726, %v728
    %v730 = vadd.f32 %v726, %v729
    %vm731 = vweird.f32 %v725
    %vm732 = vweird.f32 %v726
    %vm733 = vmor %vm731, %vm732
    %v734 = vsel %vm733, %v726, %v730
    %v735 = vand.u32 2147483647, %v725
    %vm736 = vcmp.eq.f32.partialorder %v735, 8.507059e+37
    %v737 = vand.u32 %v725, 2147483648
    %v738 = vor.u32 1.1754944e-38, %v737
    %v739 = vsel %vm736, %v738, %v734
    %v740 = vmul.f32 1.0, %v739
    %v741 = vadd.f32 %v699, %v504
    %v742 = vmul.f32 %v720, %v741
    %v743 = vadd.f32 %v639, %v742
    %v744 = vtanh.pop %v743
    %v745 = vsub.f32 1.0, %v740
    %v746 = vmul.f32 %v745, %v744
    %v747 = vmul.f32 %v740, %v640
    %v748 = vadd.f32 %v746, %v747
    %749 = vst [vmem:[#allocation4] sm:$0xff] %v748
    %s750 = scalar_lea.vmem [#allocation3], 16
    %751 = vst [vmem:[%s750] sm:$0xff] %v748
    %s752 = smul.u32 3, 3
    %s753 = smul.addr %s752, 8
    %s754 = scalar_lea.vmem [#allocation2], %s753
    %v755 = vld [vmem:[%s754] sm:$0xff]
    %v756 = vld [vmem:[%s754 + $0x8] sm:$0xff]
    %v757 = vld [vmem:[%s754 + $0x10] sm:$0xff]
    %v758 = vld [vmem:[#allocation4] sm:$0xff]
    %759 = vmatpush.msra.mxu0 %v392
    %760 = vmatpush.msra.mxu0 %v389
    %761 = vmatpush.msra.mxu0 %v386
    %762 = vmatpush.msra.mxu0 %v383
    %763 = vmatpush.msra.mxu0 %v380
    %764 = vmatpush.msra.mxu0 %v377
    %765 = vmatpush.msra.mxu0 %v374
    %766 = vmatpush.msra.mxu0 %v371
    %767 = vmatpush.msra.mxu0 %v368
    %768 = vmatpush.msra.mxu0 %v365
    %769 = vmatpush.msra.mxu0 %v362
    %770 = vmatpush.msra.mxu0 %v359
    %771 = vmatpush.msra.mxu0 %v356
    %772 = vmatpush.msra.mxu0 %v353
    %773 = vmatpush.msra.mxu0 %v350
    %774 = vmatpush.msra.mxu0 %v347
    %775 = vmatmul.f32.gmra.mxu0 %v758
    %v776 = vpop.f32.mrf.mxu0
    %v777 = vadd.f32 0.0, %v776
    %778 = vdwg.mxu0
    %779 = vmatpush.msra.mxu0 %v393
    %780 = vmatpush.msra.mxu0 %v390
    %781 = vmatpush.msra.mxu0 %v387
    %782 = vmatpush.msra.mxu0 %v384
    %783 = vmatpush.msra.mxu0 %v381
    %784 = vmatpush.msra.mxu0 %v378
    %785 = vmatpush.msra.mxu0 %v375
    %786 = vmatpush.msra.mxu0 %v372
    %787 = vmatpush.msra.mxu0 %v369
    %788 = vmatpush.msra.mxu0 %v366
    %789 = vmatpush.msra.mxu0 %v363
    %790 = vmatpush.msra.mxu0 %v360
    %791 = vmatpush.msra.mxu0 %v357
    %792 = vmatpush.msra.mxu0 %v354
    %793 = vmatpush.msra.mxu0 %v351
    %794 = vmatpush.msra.mxu0 %v348
    %795 = vmatmul.f32.gmra.mxu0 %v758
    %v796 = vpop.f32.mrf.mxu0
    %v797 = vadd.f32 0.0, %v796
    %798 = vdwg.mxu0
    %799 = vmatpush.msra.mxu0 %v394
    %800 = vmatpush.msra.mxu0 %v391
    %801 = vmatpush.msra.mxu0 %v388
    %802 = vmatpush.msra.mxu0 %v385
    %803 = vmatpush.msra.mxu0 %v382
    %804 = vmatpush.msra.mxu0 %v379
    %805 = vmatpush.msra.mxu0 %v376
    %806 = vmatpush.msra.mxu0 %v373
    %807 = vmatpush.msra.mxu0 %v370
    %808 = vmatpush.msra.mxu0 %v367
    %809 = vmatpush.msra.mxu0 %v364
    %810 = vmatpush.msra.mxu0 %v361
    %811 = vmatpush.msra.mxu0 %v358
    %812 = vmatpush.msra.mxu0 %v355
    %813 = vmatpush.msra.mxu0 %v352
    %814 = vmatpush.msra.mxu0 %v349
    %815 = vmatmul.f32.gmra.mxu0 %v758
    %v816 = vpop.f32.mrf.mxu0
    %v817 = vadd.f32 0.0, %v816
    %818 = vdwg.mxu0
    %v819 = vadd.f32 %v755, %v777
    %v820 = vxor.u32 %v819, 2147483648
    %v821 = vmul.f32 %v820, 1.442695
    %v822 = vpow.pop %v821
    %v823 = vadd.f32 %v822, 1.0
    %v824 = vrcp.pop %v823
    %v825 = vmul.f32 %v823, %v824
    %v826 = vsub.f32 1.0, %v825
    %v827 = vmul.f32 %v824, %v826
    %v828 = vadd.f32 %v824, %v827
    %vm829 = vweird.f32 %v823
    %vm830 = vweird.f32 %v824
    %vm831 = vmor %vm829, %vm830
    %v832 = vsel %vm831, %v824, %v828
    %v833 = vand.u32 2147483647, %v823
    %vm834 = vcmp.eq.f32.partialorder %v833, 8.507059e+37
    %v835 = vand.u32 %v823, 2147483648
    %v836 = vor.u32 1.1754944e-38, %v835
    %v837 = vsel %vm834, %v836, %v832
    %v838 = vmul.f32 1.0, %v837
    %v839 = vadd.f32 %v756, %v797
    %v840 = vxor.u32 %v839, 2147483648
    %v841 = vmul.f32 %v840, 1.442695
    %v842 = vpow.pop %v841
    %v843 = vadd.f32 %v842, 1.0
    %v844 = vrcp.pop %v843
    %v845 = vmul.f32 %v843, %v844
    %v846 = vsub.f32 1.0, %v845
    %v847 = vmul.f32 %v844, %v846
    %v848 = vadd.f32 %v844, %v847
    %vm849 = vweird.f32 %v843
    %vm850 = vweird.f32 %v844
    %vm851 = vmor %vm849, %vm850
    %v852 = vsel %vm851, %v844, %v848
    %v853 = vand.u32 2147483647, %v843
    %vm854 = vcmp.eq.f32.partialorder %v853, 8.507059e+37
    %v855 = vand.u32 %v843, 2147483648
    %v856 = vor.u32 1.1754944e-38, %v855
    %v857 = vsel %vm854, %v856, %v852
    %v858 = vmul.f32 1.0, %v857
    %v859 = vadd.f32 %v817, %v504
    %v860 = vmul.f32 %v838, %v859
    %v861 = vadd.f32 %v757, %v860
    %v862 = vtanh.pop %v861
    %v863 = vsub.f32 1.0, %v858
    %v864 = vmul.f32 %v863, %v862
    %v865 = vmul.f32 %v858, %v758
    %v866 = vadd.f32 %v864, %v865
    %867 = vst [vmem:[#allocation4] sm:$0xff] %v866
    %s868 = scalar_lea.vmem [#allocation3], 24
    %869 = vst [vmem:[%s868] sm:$0xff] %v866
    %s870 = smul.u32 4, 3
    %s871 = smul.addr %s870, 8
    %s872 = scalar_lea.vmem [#allocation2], %s871
    %v873 = vld [vmem:[%s872] sm:$0xff]
    %v874 = vld [vmem:[%s872 + $0x8] sm:$0xff]
    %v875 = vld [vmem:[%s872 + $0x10] sm:$0xff]
    %v876 = vld [vmem:[#allocation4] sm:$0xff]
    %877 = vmatpush.msra.mxu0 %v392
    %878 = vmatpush.msra.mxu0 %v389
    %879 = vmatpush.msra.mxu0 %v386
    %880 = vmatpush.msra.mxu0 %v383
    %881 = vmatpush.msra.mxu0 %v380
    %882 = vmatpush.msra.mxu0 %v377
    %883 = vmatpush.msra.mxu0 %v374
    %884 = vmatpush.msra.mxu0 %v371
    %885 = vmatpush.msra.mxu0 %v368
    %886 = vmatpush.msra.mxu0 %v365
    %887 = vmatpush.msra.mxu0 %v362
    %888 = vmatpush.msra.mxu0 %v359
    %889 = vmatpush.msra.mxu0 %v356
    %890 = vmatpush.msra.mxu0 %v353
    %891 = vmatpush.msra.mxu0 %v350
    %892 = vmatpush.msra.mxu0 %v347
    %893 = vmatmul.f32.gmra.mxu0 %v876
    %v894 = vpop.f32.mrf.mxu0
    %v895 = vadd.f32 0.0, %v894
    %896 = vdwg.mxu0
    %897 = vmatpush.msra.mxu0 %v393
    %898 = vmatpush.msra.mxu0 %v390
    %899 = vmatpush.msra.mxu0 %v387
    %900 = vmatpush.msra.mxu0 %v384
    %901 = vmatpush.msra.mxu0 %v381
    %902 = vmatpush.msra.mxu0 %v378
    %903 = vmatpush.msra.mxu0 %v375
    %904 = vmatpush.msra.mxu0 %v372
    %905 = vmatpush.msra.mxu0 %v369
    %906 = vmatpush.msra.mxu0 %v366
    %907 = vmatpush.msra.mxu0 %v363
    %908 = vmatpush.msra.mxu0 %v360
    %909 = vmatpush.msra.mxu0 %v357
    %910 = vmatpush.msra.mxu0 %v354
    %911 = vmatpush.msra.mxu0 %v351
    %912 = vmatpush.msra.mxu0 %v348
    %913 = vmatmul.f32.gmra.mxu0 %v876
    %v914 = vpop.f32.mrf.mxu0
    %v915 = vadd.f32 0.0, %v914
    %916 = vdwg.mxu0
    %917 = vmatpush.msra.mxu0 %v394
    %918 = vmatpush.msra.mxu0 %v391
    %919 = vmatpush.msra.mxu0 %v388
    %920 = vmatpush.msra.mxu0 %v385
    %921 = vmatpush.msra.mxu0 %v382
    %922 = vmatpush.msra.mxu0 %v379
    %923 = vmatpush.msra.mxu0 %v376
    %924 = vmatpush.msra.mxu0 %v373
    %925 = vmatpush.msra.mxu0 %v370
    %926 = vmatpush.msra.mxu0 %v367
    %927 = vmatpush.msra.mxu0 %v364
    %928 = vmatpush.msra.mxu0 %v361
    %929 = vmatpush.msra.mxu0 %v358
    %930 = vmatpush.msra.mxu0 %v355
    %931 = vmatpush.msra.mxu0 %v352
    %932 = vmatpush.msra.mxu0 %v349
    %933 = vmatmul.f32.gmra.mxu0 %v876
    %v934 = vpop.f32.mrf.mxu0
    %v935 = vadd.f32 0.0, %v934
    %936 = vdwg.mxu0
    %v937 = vadd.f32 %v873, %v895
    %v938 = vxor.u32 %v937, 2147483648
    %v939 = vmul.f32 %v938, 1.442695
    %v940 = vpow.pop %v939
    %v941 = vadd.f32 %v940, 1.0
    %v942 = vrcp.pop %v941
    %v943 = vmul.f32 %v941, %v942
    %v944 = vsub.f32 1.0, %v943
    %v945 = vmul.f32 %v942, %v944
    %v946 = vadd.f32 %v942, %v945
    %vm947 = vweird.f32 %v941
    %vm948 = vweird.f32 %v942
    %vm949 = vmor %vm947, %vm948
    %v950 = vsel %vm949, %v942, %v946
    %v951 = vand.u32 2147483647, %v941
    %vm952 = vcmp.eq.f32.partialorder %v951, 8.507059e+37
    %v953 = vand.u32 %v941, 2147483648
    %v954 = vor.u32 1.1754944e-38, %v953
    %v955 = vsel %vm952, %v954, %v950
    %v956 = vmul.f32 1.0, %v955
    %v957 = vadd.f32 %v874, %v915
    %v958 = vxor.u32 %v957, 2147483648
    %v959 = vmul.f32 %v958, 1.442695
    %v960 = vpow.pop %v959
    %v961 = vadd.f32 %v960, 1.0
    %v962 = vrcp.pop %v961
    %v963 = vmul.f32 %v961, %v962
    %v964 = vsub.f32 1.0, %v963
    %v965 = vmul.f32 %v962, %v964
    %v966 = vadd.f32 %v962, %v965
    %vm967 = vweird.f32 %v961
    %vm968 = vweird.f32 %v962
    %vm969 = vmor %vm967, %vm968
    %v970 = vsel %vm969, %v962, %v966
    %v971 = vand.u32 2147483647, %v961
    %vm972 = vcmp.eq.f32.partialorder %v971, 8.507059e+37
    %v973 = vand.u32 %v961, 2147483648
    %v974 = vor.u32 1.1754944e-38, %v973
    %v975 = vsel %vm972, %v974, %v970
    %v976 = vmul.f32 1.0, %v975
    %v977 = vadd.f32 %v935, %v504
    %v978 = vmul.f32 %v956, %v977
    %v979 = vadd.f32 %v875, %v978
    %v980 = vtanh.pop %v979
    %v981 = vsub.f32 1.0, %v976
    %v982 = vmul.f32 %v981, %v980
    %v983 = vmul.f32 %v976, %v876
    %v984 = vadd.f32 %v982, %v983
    %985 = vst [vmem:[#allocation4] sm:$0xff] %v984
    %s986 = scalar_lea.vmem [#allocation3], 32
    %987 = vst [vmem:[%s986] sm:$0xff] %v984
    %s988 = smul.u32 5, 3
    %s989 = smul.addr %s988, 8
    %s990 = scalar_lea.vmem [#allocation2], %s989
    %v991 = vld [vmem:[%s990] sm:$0xff]
    %v992 = vld [vmem:[%s990 + $0x8] sm:$0xff]
    %v993 = vld [vmem:[%s990 + $0x10] sm:$0xff]
    %v994 = vld [vmem:[#allocation4] sm:$0xff]
    %995 = vmatpush.msra.mxu0 %v392
    %996 = vmatpush.msra.mxu0 %v389
    %997 = vmatpush.msra.mxu0 %v386
    %998 = vmatpush.msra.mxu0 %v383
    %999 = vmatpush.msra.mxu0 %v380
    %1000 = vmatpush.msra.mxu0 %v377
    %1001 = vmatpush.msra.mxu0 %v374
    %1002 = vmatpush.msra.mxu0 %v371
    %1003 = vmatpush.msra.mxu0 %v368
    %1004 = vmatpush.msra.mxu0 %v365
    %1005 = vmatpush.msra.mxu0 %v362
    %1006 = vmatpush.msra.mxu0 %v359
    %1007 = vmatpush.msra.mxu0 %v356
    %1008 = vmatpush.msra.mxu0 %v353
    %1009 = vmatpush.msra.mxu0 %v350
    %1010 = vmatpush.msra.mxu0 %v347
    %1011 = vmatmul.f32.gmra.mxu0 %v994
    %v1012 = vpop.f32.mrf.mxu0
    %v1013 = vadd.f32 0.0, %v1012
    %1014 = vdwg.mxu0
    %1015 = vmatpush.msra.mxu0 %v393
    %1016 = vmatpush.msra.mxu0 %v390
    %1017 = vmatpush.msra.mxu0 %v387
    %1018 = vmatpush.msra.mxu0 %v384
    %1019 = vmatpush.msra.mxu0 %v381
    %1020 = vmatpush.msra.mxu0 %v378
    %1021 = vmatpush.msra.mxu0 %v375
    %1022 = vmatpush.msra.mxu0 %v372
    %1023 = vmatpush.msra.mxu0 %v369
    %1024 = vmatpush.msra.mxu0 %v366
    %1025 = vmatpush.msra.mxu0 %v363
    %1026 = vmatpush.msra.mxu0 %v360
    %1027 = vmatpush.msra.mxu0 %v357
    %1028 = vmatpush.msra.mxu0 %v354
    %1029 = vmatpush.msra.mxu0 %v351
    %1030 = vmatpush.msra.mxu0 %v348
    %1031 = vmatmul.f32.gmra.mxu0 %v994
    %v1032 = vpop.f32.mrf.mxu0
    %v1033 = vadd.f32 0.0, %v1032
    %1034 = vdwg.mxu0
    %1035 = vmatpush.msra.mxu0 %v394
    %1036 = vmatpush.msra.mxu0 %v391
    %1037 = vmatpush.msra.mxu0 %v388
    %1038 = vmatpush.msra.mxu0 %v385
    %1039 = vmatpush.msra.mxu0 %v382
    %1040 = vmatpush.msra.mxu0 %v379
    %1041 = vmatpush.msra.mxu0 %v376
    %1042 = vmatpush.msra.mxu0 %v373
    %1043 = vmatpush.msra.mxu0 %v370
    %1044 = vmatpush.msra.mxu0 %v367
    %1045 = vmatpush.msra.mxu0 %v364
    %1046 = vmatpush.msra.mxu0 %v361
    %1047 = vmatpush.msra.mxu0 %v358
    %1048 = vmatpush.msra.mxu0 %v355
    %1049 = vmatpush.msra.mxu0 %v352
    %1050 = vmatpush.msra.mxu0 %v349
    %1051 = vmatmul.f32.gmra.mxu0 %v994
    %v1052 = vpop.f32.mrf.mxu0
    %v1053 = vadd.f32 0.0, %v1052
    %1054 = vdwg.mxu0
    %v1055 = vadd.f32 %v991, %v1013
    %v1056 = vxor.u32 %v1055, 2147483648
    %v1057 = vmul.f32 %v1056, 1.442695
    %v1058 = vpow.pop %v1057
    %v1059 = vadd.f32 %v1058, 1.0
    %v1060 = vrcp.pop %v1059
    %v1061 = vmul.f32 %v1059, %v1060
    %v1062 = vsub.f32 1.0, %v1061
    %v1063 = vmul.f32 %v1060, %v1062
    %v1064 = vadd.f32 %v1060, %v1063
    %vm1065 = vweird.f32 %v1059
    %vm1066 = vweird.f32 %v1060
    %vm1067 = vmor %vm1065, %vm1066
    %v1068 = vsel %vm1067, %v1060, %v1064
    %v1069 = vand.u32 2147483647, %v1059
    %vm1070 = vcmp.eq.f32.partialorder %v1069, 8.507059e+37
    %v1071 = vand.u32 %v1059, 2147483648
    %v1072 = vor.u32 1.1754944e-38, %v1071
    %v1073 = vsel %vm1070, %v1072, %v1068
    %v1074 = vmul.f32 1.0, %v1073
    %v1075 = vadd.f32 %v992, %v1033
    %v1076 = vxor.u32 %v1075, 2147483648
    %v1077 = vmul.f32 %v1076, 1.442695
    %v1078 = vpow.pop %v1077
    %v1079 = vadd.f32 %v1078, 1.0
    %v1080 = vrcp.pop %v1079
    %v1081 = vmul.f32 %v1079, %v1080
    %v1082 = vsub.f32 1.0, %v1081
    %v1083 = vmul.f32 %v1080, %v1082
    %v1084 = vadd.f32 %v1080, %v1083
    %vm1085 = vweird.f32 %v1079
    %vm1086 = vweird.f32 %v1080
    %vm1087 = vmor %vm1085, %vm1086
    %v1088 = vsel %vm1087, %v1080, %v1084
    %v1089 = vand.u32 2147483647, %v1079
    %vm1090 = vcmp.eq.f32.partialorder %v1089, 8.507059e+37
    %v1091 = vand.u32 %v1079, 2147483648
    %v1092 = vor.u32 1.1754944e-38, %v1091
    %v1093 = vsel %vm1090, %v1092, %v1088
    %v1094 = vmul.f32 1.0, %v1093
    %v1095 = vadd.f32 %v1053, %v504
    %v1096 = vmul.f32 %v1074, %v1095
    %v1097 = vadd.f32 %v993, %v1096
    %v1098 = vtanh.pop %v1097
    %v1099 = vsub.f32 1.0, %v1094
    %v1100 = vmul.f32 %v1099, %v1098
    %v1101 = vmul.f32 %v1094, %v994
    %v1102 = vadd.f32 %v1100, %v1101
    %1103 = vst [vmem:[#allocation4] sm:$0xff] %v1102
    %s1104 = scalar_lea.vmem [#allocation3], 40
    %1105 = vst [vmem:[%s1104] sm:$0xff] %v1102
    %s1106 = smul.u32 6, 3
    %s1107 = smul.addr %s1106, 8
    %s1108 = scalar_lea.vmem [#allocation2], %s1107
    %v1109 = vld [vmem:[%s1108] sm:$0xff]
    %v1110 = vld [vmem:[%s1108 + $0x8] sm:$0xff]
    %v1111 = vld [vmem:[%s1108 + $0x10] sm:$0xff]
    %v1112 = vld [vmem:[#allocation4] sm:$0xff]
    %1113 = vmatpush.msra.mxu0 %v392
    %1114 = vmatpush.msra.mxu0 %v389
    %1115 = vmatpush.msra.mxu0 %v386
    %1116 = vmatpush.msra.mxu0 %v383
    %1117 = vmatpush.msra.mxu0 %v380
    %1118 = vmatpush.msra.mxu0 %v377
    %1119 = vmatpush.msra.mxu0 %v374
    %1120 = vmatpush.msra.mxu0 %v371
    %1121 = vmatpush.msra.mxu0 %v368
    %1122 = vmatpush.msra.mxu0 %v365
    %1123 = vmatpush.msra.mxu0 %v362
    %1124 = vmatpush.msra.mxu0 %v359
    %1125 = vmatpush.msra.mxu0 %v356
    %1126 = vmatpush.msra.mxu0 %v353
    %1127 = vmatpush.msra.mxu0 %v350
    %1128 = vmatpush.msra.mxu0 %v347
    %1129 = vmatmul.f32.gmra.mxu0 %v1112
    %v1130 = vpop.f32.mrf.mxu0
    %v1131 = vadd.f32 0.0, %v1130
    %1132 = vdwg.mxu0
    %1133 = vmatpush.msra.mxu0 %v393
    %1134 = vmatpush.msra.mxu0 %v390
    %1135 = vmatpush.msra.mxu0 %v387
    %1136 = vmatpush.msra.mxu0 %v384
    %1137 = vmatpush.msra.mxu0 %v381
    %1138 = vmatpush.msra.mxu0 %v378
    %1139 = vmatpush.msra.mxu0 %v375
    %1140 = vmatpush.msra.mxu0 %v372
    %1141 = vmatpush.msra.mxu0 %v369
    %1142 = vmatpush.msra.mxu0 %v366
    %1143 = vmatpush.msra.mxu0 %v363
    %1144 = vmatpush.msra.mxu0 %v360
    %1145 = vmatpush.msra.mxu0 %v357
    %1146 = vmatpush.msra.mxu0 %v354
    %1147 = vmatpush.msra.mxu0 %v351
    %1148 = vmatpush.msra.mxu0 %v348
    %1149 = vmatmul.f32.gmra.mxu0 %v1112
    %v1150 = vpop.f32.mrf.mxu0
    %v1151 = vadd.f32 0.0, %v1150
    %1152 = vdwg.mxu0
    %1153 = vmatpush.msra.mxu0 %v394
    %1154 = vmatpush.msra.mxu0 %v391
    %1155 = vmatpush.msra.mxu0 %v388
    %1156 = vmatpush.msra.mxu0 %v385
    %1157 = vmatpush.msra.mxu0 %v382
    %1158 = vmatpush.msra.mxu0 %v379
    %1159 = vmatpush.msra.mxu0 %v376
    %1160 = vmatpush.msra.mxu0 %v373
    %1161 = vmatpush.msra.mxu0 %v370
    %1162 = vmatpush.msra.mxu0 %v367
    %1163 = vmatpush.msra.mxu0 %v364
    %1164 = vmatpush.msra.mxu0 %v361
    %1165 = vmatpush.msra.mxu0 %v358
    %1166 = vmatpush.msra.mxu0 %v355
    %1167 = vmatpush.msra.mxu0 %v352
    %1168 = vmatpush.msra.mxu0 %v349
    %1169 = vmatmul.f32.gmra.mxu0 %v1112
    %v1170 = vpop.f32.mrf.mxu0
    %v1171 = vadd.f32 0.0, %v1170
    %1172 = vdwg.mxu0
    %v1173 = vadd.f32 %v1109, %v1131
    %v1174 = vxor.u32 %v1173, 2147483648
    %v1175 = vmul.f32 %v1174, 1.442695
    %v1176 = vpow.pop %v1175
    %v1177 = vadd.f32 %v1176, 1.0
    %v1178 = vrcp.pop %v1177
    %v1179 = vmul.f32 %v1177, %v1178
    %v1180 = vsub.f32 1.0, %v1179
    %v1181 = vmul.f32 %v1178, %v1180
    %v1182 = vadd.f32 %v1178, %v1181
    %vm1183 = vweird.f32 %v1177
    %vm1184 = vweird.f32 %v1178
    %vm1185 = vmor %vm1183, %vm1184
    %v1186 = vsel %vm1185, %v1178, %v1182
    %v1187 = vand.u32 2147483647, %v1177
    %vm1188 = vcmp.eq.f32.partialorder %v1187, 8.507059e+37
    %v1189 = vand.u32 %v1177, 2147483648
    %v1190 = vor.u32 1.1754944e-38, %v1189
    %v1191 = vsel %vm1188, %v1190, %v1186
    %v1192 = vmul.f32 1.0, %v1191
    %v1193 = vadd.f32 %v1110, %v1151
    %v1194 = vxor.u32 %v1193, 2147483648
    %v1195 = vmul.f32 %v1194, 1.442695
    %v1196 = vpow.pop %v1195
    %v1197 = vadd.f32 %v1196, 1.0
    %v1198 = vrcp.pop %v1197
    %v1199 = vmul.f32 %v1197, %v1198
    %v1200 = vsub.f32 1.0, %v1199
    %v1201 = vmul.f32 %v1198, %v1200
    %v1202 = vadd.f32 %v1198, %v1201
    %vm1203 = vweird.f32 %v1197
    %vm1204 = vweird.f32 %v1198
    %vm1205 = vmor %vm1203, %vm1204
    %v1206 = vsel %vm1205, %v1198, %v1202
    %v1207 = vand.u32 2147483647, %v1197
    %vm1208 = vcmp.eq.f32.partialorder %v1207, 8.507059e+37
    %v1209 = vand.u32 %v1197, 2147483648
    %v1210 = vor.u32 1.1754944e-38, %v1209
    %v1211 = vsel %vm1208, %v1210, %v1206
    %v1212 = vmul.f32 1.0, %v1211
    %v1213 = vadd.f32 %v1171, %v504
    %v1214 = vmul.f32 %v1192, %v1213
    %v1215 = vadd.f32 %v1111, %v1214
    %v1216 = vtanh.pop %v1215
    %v1217 = vsub.f32 1.0, %v1212
    %v1218 = vmul.f32 %v1217, %v1216
    %v1219 = vmul.f32 %v1212, %v1112
    %v1220 = vadd.f32 %v1218, %v1219
    %1221 = vst [vmem:[#allocation4] sm:$0xff] %v1220
    %s1222 = scalar_lea.vmem [#allocation3], 48
    %1223 = vst [vmem:[%s1222] sm:$0xff] %v1220
    %s1224 = smul.u32 7, 3
    %s1225 = smul.addr %s1224, 8
    %s1226 = scalar_lea.vmem [#allocation2], %s1225
    %v1227 = vld [vmem:[%s1226] sm:$0xff]
    %v1228 = vld [vmem:[%s1226 + $0x8] sm:$0xff]
    %v1229 = vld [vmem:[%s1226 + $0x10] sm:$0xff]
    %v1230 = vld [vmem:[#allocation4] sm:$0xff]
    %1231 = vmatpush.msra.mxu0 %v392
    %1232 = vmatpush.msra.mxu0 %v389
    %1233 = vmatpush.msra.mxu0 %v386
    %1234 = vmatpush.msra.mxu0 %v383
    %1235 = vmatpush.msra.mxu0 %v380
    %1236 = vmatpush.msra.mxu0 %v377
    %1237 = vmatpush.msra.mxu0 %v374
    %1238 = vmatpush.msra.mxu0 %v371
    %1239 = vmatpush.msra.mxu0 %v368
    %1240 = vmatpush.msra.mxu0 %v365
    %1241 = vmatpush.msra.mxu0 %v362
    %1242 = vmatpush.msra.mxu0 %v359
    %1243 = vmatpush.msra.mxu0 %v356
    %1244 = vmatpush.msra.mxu0 %v353
    %1245 = vmatpush.msra.mxu0 %v350
    %1246 = vmatpush.msra.mxu0 %v347
    %1247 = vmatmul.f32.gmra.mxu0 %v1230
    %v1248 = vpop.f32.mrf.mxu0
    %v1249 = vadd.f32 0.0, %v1248
    %1250 = vdwg.mxu0
    %1251 = vmatpush.msra.mxu0 %v393
    %1252 = vmatpush.msra.mxu0 %v390
    %1253 = vmatpush.msra.mxu0 %v387
    %1254 = vmatpush.msra.mxu0 %v384
    %1255 = vmatpush.msra.mxu0 %v381
    %1256 = vmatpush.msra.mxu0 %v378
    %1257 = vmatpush.msra.mxu0 %v375
    %1258 = vmatpush.msra.mxu0 %v372
    %1259 = vmatpush.msra.mxu0 %v369
    %1260 = vmatpush.msra.mxu0 %v366
    %1261 = vmatpush.msra.mxu0 %v363
    %1262 = vmatpush.msra.mxu0 %v360
    %1263 = vmatpush.msra.mxu0 %v357
    %1264 = vmatpush.msra.mxu0 %v354
    %1265 = vmatpush.msra.mxu0 %v351
    %1266 = vmatpush.msra.mxu0 %v348
    %1267 = vmatmul.f32.gmra.mxu0 %v1230
    %v1268 = vpop.f32.mrf.mxu0
    %v1269 = vadd.f32 0.0, %v1268
    %1270 = vdwg.mxu0
    %1271 = vmatpush.msra.mxu0 %v394
    %1272 = vmatpush.msra.mxu0 %v391
    %1273 = vmatpush.msra.mxu0 %v388
    %1274 = vmatpush.msra.mxu0 %v385
    %1275 = vmatpush.msra.mxu0 %v382
    %1276 = vmatpush.msra.mxu0 %v379
    %1277 = vmatpush.msra.mxu0 %v376
    %1278 = vmatpush.msra.mxu0 %v373
    %1279 = vmatpush.msra.mxu0 %v370
    %1280 = vmatpush.msra.mxu0 %v367
    %1281 = vmatpush.msra.mxu0 %v364
    %1282 = vmatpush.msra.mxu0 %v361
    %1283 = vmatpush.msra.mxu0 %v358
    %1284 = vmatpush.msra.mxu0 %v355
    %1285 = vmatpush.msra.mxu0 %v352
    %1286 = vmatpush.msra.mxu0 %v349
    %1287 = vmatmul.f32.gmra.mxu0 %v1230
    %v1288 = vpop.f32.mrf.mxu0
    %v1289 = vadd.f32 0.0, %v1288
    %1290 = vdwg.mxu0
    %v1291 = vadd.f32 %v1227, %v1249
    %v1292 = vxor.u32 %v1291, 2147483648
    %v1293 = vmul.f32 %v1292, 1.442695
    %v1294 = vpow.pop %v1293
    %v1295 = vadd.f32 %v1294, 1.0
    %v1296 = vrcp.pop %v1295
    %v1297 = vmul.f32 %v1295, %v1296
    %v1298 = vsub.f32 1.0, %v1297
    %v1299 = vmul.f32 %v1296, %v1298
    %v1300 = vadd.f32 %v1296, %v1299
    %vm1301 = vweird.f32 %v1295
    %vm1302 = vweird.f32 %v1296
    %vm1303 = vmor %vm1301, %vm1302
    %v1304 = vsel %vm1303, %v1296, %v1300
    %v1305 = vand.u32 2147483647, %v1295
    %vm1306 = vcmp.eq.f32.partialorder %v1305, 8.507059e+37
    %v1307 = vand.u32 %v1295, 2147483648
    %v1308 = vor.u32 1.1754944e-38, %v1307
    %v1309 = vsel %vm1306, %v1308, %v1304
    %v1310 = vmul.f32 1.0, %v1309
    %v1311 = vadd.f32 %v1228, %v1269
    %v1312 = vxor.u32 %v1311, 2147483648
    %v1313 = vmul.f32 %v1312, 1.442695
    %v1314 = vpow.pop %v1313
    %v1315 = vadd.f32 %v1314, 1.0
    %v1316 = vrcp.pop %v1315
    %v1317 = vmul.f32 %v1315, %v1316
    %v1318 = vsub.f32 1.0, %v1317
    %v1319 = vmul.f32 %v1316, %v1318
    %v1320 = vadd.f32 %v1316, %v1319
    %vm1321 = vweird.f32 %v1315
    %vm1322 = vweird.f32 %v1316
    %vm1323 = vmor %vm1321, %vm1322
    %v1324 = vsel %vm1323, %v1316, %v1320
    %v1325 = vand.u32 2147483647, %v1315
    %vm1326 = vcmp.eq.f32.partialorder %v1325, 8.507059e+37
    %v1327 = vand.u32 %v1315, 2147483648
    %v1328 = vor.u32 1.1754944e-38, %v1327
    %v1329 = vsel %vm1326, %v1328, %v1324
    %v1330 = vmul.f32 1.0, %v1329
    %v1331 = vadd.f32 %v1289, %v504
    %v1332 = vmul.f32 %v1310, %v1331
    %v1333 = vadd.f32 %v1229, %v1332
    %v1334 = vtanh.pop %v1333
    %v1335 = vsub.f32 1.0, %v1330
    %v1336 = vmul.f32 %v1335, %v1334
    %v1337 = vmul.f32 %v1330, %v1230
    %v1338 = vadd.f32 %v1336, %v1337
    %1339 = vst [vmem:[#allocation4] sm:$0xff] %v1338
    %s1340 = scalar_lea.vmem [#allocation3], 56
    %1341 = vst [vmem:[%s1340] sm:$0xff] %v1338
    %v1342 = vld [vmem:[#allocation3] sm:$0xff]
    %v1343 = vld [vmem:[#allocation3 + $0x8] sm:$0xff]
    %v1344 = vld [vmem:[#allocation3 + $0x10] sm:$0xff]
    %v1345 = vld [vmem:[#allocation3 + $0x18] sm:$0xff]
    %v1346 = vld [vmem:[#allocation3 + $0x20] sm:$0xff]
    %v1347 = vld [vmem:[#allocation3 + $0x28] sm:$0xff]
    %v1348 = vld [vmem:[#allocation3 + $0x30] sm:$0xff]
    %v1349 = vld [vmem:[#allocation3 + $0x38] sm:$0xff]
    %v1350 = vld [vmem:[#allocation11] sm:$0xff]
    %v1351 = vld [vmem:[#allocation11 + $0x8] sm:$0xff]
    %v1352 = vld [vmem:[#allocation11 + $0x10] sm:$0xff]
    %v1353 = vld [vmem:[#allocation11 + $0x18] sm:$0xff]
    %v1354 = vld [vmem:[#allocation11 + $0x20] sm:$0xff]
    %v1355 = vld [vmem:[#allocation11 + $0x28] sm:$0xff]
    %v1356 = vld [vmem:[#allocation11 + $0x30] sm:$0xff]
    %v1357 = vld [vmem:[#allocation11 + $0x38] sm:$0xff]
    %v1358 = vld [vmem:[#allocation11 + $0x40] sm:$0xff]
    %v1359 = vld [vmem:[#allocation11 + $0x48] sm:$0xff]
    %v1360 = vld [vmem:[#allocation11 + $0x50] sm:$0xff]
    %v1361 = vld [vmem:[#allocation11 + $0x58] sm:$0xff]
    %v1362 = vld [vmem:[#allocation11 + $0x60] sm:$0xff]
    %v1363 = vld [vmem:[#allocation11 + $0x68] sm:$0xff]
    %v1364 = vld [vmem:[#allocation11 + $0x70] sm:$0xff]
    %v1365 = vld [vmem:[#allocation11 + $0x78] sm:$0xff]
    %v1366 = vld [vmem:[#allocation11 + $0x80] sm:$0xff]
    %v1367 = vld [vmem:[#allocation11 + $0x88] sm:$0xff]
    %v1368 = vld [vmem:[#allocation11 + $0x90] sm:$0xff]
    %v1369 = vld [vmem:[#allocation11 + $0x98] sm:$0xff]
    %v1370 = vld [vmem:[#allocation11 + $0xa0] sm:$0xff]
    %v1371 = vld [vmem:[#allocation11 + $0xa8] sm:$0xff]
    %v1372 = vld [vmem:[#allocation11 + $0xb0] sm:$0xff]
    %v1373 = vld [vmem:[#allocation11 + $0xb8] sm:$0xff]
    %v1374 = vld [vmem:[#allocation11 + $0xc0] sm:$0xff]
    %v1375 = vld [vmem:[#allocation11 + $0xc8] sm:$0xff]
    %v1376 = vld [vmem:[#allocation11 + $0xd0] sm:$0xff]
    %v1377 = vld [vmem:[#allocation11 + $0xd8] sm:$0xff]
    %v1378 = vld [vmem:[#allocation11 + $0xe0] sm:$0xff]
    %v1379 = vld [vmem:[#allocation11 + $0xe8] sm:$0xff]
    %v1380 = vld [vmem:[#allocation11 + $0xf0] sm:$0xff]
    %v1381 = vld [vmem:[#allocation11 + $0xf8] sm:$0xff]
    %v1382 = vld [vmem:[#allocation11 + $0x100] sm:$0xff]
    %v1383 = vld [vmem:[#allocation11 + $0x108] sm:$0xff]
    %v1384 = vld [vmem:[#allocation11 + $0x110] sm:$0xff]
    %v1385 = vld [vmem:[#allocation11 + $0x118] sm:$0xff]
    %v1386 = vld [vmem:[#allocation11 + $0x120] sm:$0xff]
    %v1387 = vld [vmem:[#allocation11 + $0x128] sm:$0xff]
    %v1388 = vld [vmem:[#allocation11 + $0x130] sm:$0xff]
    %v1389 = vld [vmem:[#allocation11 + $0x138] sm:$0xff]
    %v1390 = vld [vmem:[#allocation11 + $0x140] sm:$0xff]
    %v1391 = vld [vmem:[#allocation11 + $0x148] sm:$0xff]
    %v1392 = vld [vmem:[#allocation11 + $0x150] sm:$0xff]
    %v1393 = vld [vmem:[#allocation11 + $0x158] sm:$0xff]
    %v1394 = vld [vmem:[#allocation11 + $0x160] sm:$0xff]
    %v1395 = vld [vmem:[#allocation11 + $0x168] sm:$0xff]
    %v1396 = vld [vmem:[#allocation11 + $0x170] sm:$0xff]
    %v1397 = vld [vmem:[#allocation11 + $0x178] sm:$0xff]
    %v1398 = vld [vmem:[%s7] sm:$0x7]
    %v1400 = vperm.slane %v1398, 0
    %v1401 = vperm.slane %v1398, 1
    %v1402 = vperm.slane %v1398, 2
    %1406 = vmatpush.msra.mxu0 %v1395
    %1407 = vmatpush.msra.mxu0 %v1392
    %1408 = vmatpush.msra.mxu0 %v1389
    %1409 = vmatpush.msra.mxu0 %v1386
    %1410 = vmatpush.msra.mxu0 %v1383
    %1411 = vmatpush.msra.mxu0 %v1380
    %1412 = vmatpush.msra.mxu0 %v1377
    %1413 = vmatpush.msra.mxu0 %v1374
    %1414 = vmatpush.msra.mxu0 %v1371
    %1415 = vmatpush.msra.mxu0 %v1368
    %1416 = vmatpush.msra.mxu0 %v1365
    %1417 = vmatpush.msra.mxu0 %v1362
    %1418 = vmatpush.msra.mxu0 %v1359
    %1419 = vmatpush.msra.mxu0 %v1356
    %1420 = vmatpush.msra.mxu0 %v1353
    %1421 = vmatpush.msra.mxu0 %v1350
    %1422 = vmatmul.f32.gmra.mxu0 %v1342
    %v1423 = vpop.f32.mrf.mxu0
    %v1424 = vadd.f32 %v1400, %v1423
    %1425 = vmatmul.f32.gmra.mxu0 %v1343
    %v1426 = vpop.f32.mrf.mxu0
    %v1427 = vadd.f32 %v1400, %v1426
    %1428 = vmatmul.f32.gmra.mxu0 %v1344
    %v1429 = vpop.f32.mrf.mxu0
    %v1430 = vadd.f32 %v1400, %v1429
    %1431 = vmatmul.f32.gmra.mxu0 %v1345
    %v1432 = vpop.f32.mrf.mxu0
    %v1433 = vadd.f32 %v1400, %v1432
    %1434 = vmatmul.f32.gmra.mxu0 %v1346
    %v1435 = vpop.f32.mrf.mxu0
    %v1436 = vadd.f32 %v1400, %v1435
    %1437 = vmatmul.f32.gmra.mxu0 %v1347
    %v1438 = vpop.f32.mrf.mxu0
    %v1439 = vadd.f32 %v1400, %v1438
    %1440 = vmatmul.f32.gmra.mxu0 %v1348
    %v1441 = vpop.f32.mrf.mxu0
    %v1442 = vadd.f32 %v1400, %v1441
    %1443 = vmatmul.f32.gmra.mxu0 %v1349
    %v1444 = vpop.f32.mrf.mxu0
    %v1445 = vadd.f32 %v1400, %v1444
    %1446 = vdwg.mxu0
    %1447 = vmatpush.msra.mxu0 %v1396
    %1448 = vmatpush.msra.mxu0 %v1393
    %1449 = vmatpush.msra.mxu0 %v1390
    %1450 = vmatpush.msra.mxu0 %v1387
    %1451 = vmatpush.msra.mxu0 %v1384
    %1452 = vmatpush.msra.mxu0 %v1381
    %1453 = vmatpush.msra.mxu0 %v1378
    %1454 = vmatpush.msra.mxu0 %v1375
    %1455 = vmatpush.msra.mxu0 %v1372
    %1456 = vmatpush.msra.mxu0 %v1369
    %1457 = vmatpush.msra.mxu0 %v1366
    %1458 = vmatpush.msra.mxu0 %v1363
    %1459 = vmatpush.msra.mxu0 %v1360
    %1460 = vmatpush.msra.mxu0 %v1357
    %1461 = vmatpush.msra.mxu0 %v1354
    %1462 = vmatpush.msra.mxu0 %v1351
    %1463 = vmatmul.f32.gmra.mxu0 %v1342
    %v1464 = vpop.f32.mrf.mxu0
    %v1465 = vadd.f32 %v1401, %v1464
    %1466 = vmatmul.f32.gmra.mxu0 %v1343
    %v1467 = vpop.f32.mrf.mxu0
    %v1468 = vadd.f32 %v1401, %v1467
    %1469 = vmatmul.f32.gmra.mxu0 %v1344
    %v1470 = vpop.f32.mrf.mxu0
    %v1471 = vadd.f32 %v1401, %v1470
    %1472 = vmatmul.f32.gmra.mxu0 %v1345
    %v1473 = vpop.f32.mrf.mxu0
    %v1474 = vadd.f32 %v1401, %v1473
    %1475 = vmatmul.f32.gmra.mxu0 %v1346
    %v1476 = vpop.f32.mrf.mxu0
    %v1477 = vadd.f32 %v1401, %v1476
    %1478 = vmatmul.f32.gmra.mxu0 %v1347
    %v1479 = vpop.f32.mrf.mxu0
    %v1480 = vadd.f32 %v1401, %v1479
    %1481 = vmatmul.f32.gmra.mxu0 %v1348
    %v1482 = vpop.f32.mrf.mxu0
    %v1483 = vadd.f32 %v1401, %v1482
    %1484 = vmatmul.f32.gmra.mxu0 %v1349
    %v1485 = vpop.f32.mrf.mxu0
    %v1486 = vadd.f32 %v1401, %v1485
    %1487 = vdwg.mxu0
    %1488 = vmatpush.msra.mxu0 %v1397
    %1489 = vmatpush.msra.mxu0 %v1394
    %1490 = vmatpush.msra.mxu0 %v1391
    %1491 = vmatpush.msra.mxu0 %v1388
    %1492 = vmatpush.msra.mxu0 %v1385
    %1493 = vmatpush.msra.mxu0 %v1382
    %1494 = vmatpush.msra.mxu0 %v1379
    %1495 = vmatpush.msra.mxu0 %v1376
    %1496 = vmatpush.msra.mxu0 %v1373
    %1497 = vmatpush.msra.mxu0 %v1370
    %1498 = vmatpush.msra.mxu0 %v1367
    %1499 = vmatpush.msra.mxu0 %v1364
    %1500 = vmatpush.msra.mxu0 %v1361
    %1501 = vmatpush.msra.mxu0 %v1358
    %1502 = vmatpush.msra.mxu0 %v1355
    %1503 = vmatpush.msra.mxu0 %v1352
    %1504 = vmatmul.f32.gmra.mxu0 %v1342
    %v1505 = vpop.f32.mrf.mxu0
    %v1506 = vadd.f32 %v1402, %v1505
    %1507 = vmatmul.f32.gmra.mxu0 %v1343
    %v1508 = vpop.f32.mrf.mxu0
    %v1509 = vadd.f32 %v1402, %v1508
    %1510 = vmatmul.f32.gmra.mxu0 %v1344
    %v1511 = vpop.f32.mrf.mxu0
    %v1512 = vadd.f32 %v1402, %v1511
    %1513 = vmatmul.f32.gmra.mxu0 %v1345
    %v1514 = vpop.f32.mrf.mxu0
    %v1515 = vadd.f32 %v1402, %v1514
    %1516 = vmatmul.f32.gmra.mxu0 %v1346
    %v1517 = vpop.f32.mrf.mxu0
    %v1518 = vadd.f32 %v1402, %v1517
    %1519 = vmatmul.f32.gmra.mxu0 %v1347
    %v1520 = vpop.f32.mrf.mxu0
    %v1521 = vadd.f32 %v1402, %v1520
    %1522 = vmatmul.f32.gmra.mxu0 %v1348
    %v1523 = vpop.f32.mrf.mxu0
    %v1524 = vadd.f32 %v1402, %v1523
    %1525 = vmatmul.f32.gmra.mxu0 %v1349
    %v1526 = vpop.f32.mrf.mxu0
    %v1527 = vadd.f32 %v1402, %v1526
    %1528 = vdwg.mxu0
    %1529 = vst [vmem:[#allocation2] sm:$0xff] %v1424
    %1530 = vst [vmem:[#allocation2 + $0x8] sm:$0xff] %v1465
    %1531 = vst [vmem:[#allocation2 + $0x10] sm:$0xff] %v1506
    %1532 = vst [vmem:[#allocation2 + $0x18] sm:$0xff] %v1427
    %1533 = vst [vmem:[#allocation2 + $0x20] sm:$0xff] %v1468
    %1534 = vst [vmem:[#allocation2 + $0x28] sm:$0xff] %v1509
    %1535 = vst [vmem:[#allocation2 + $0x30] sm:$0xff] %v1430
    %1536 = vst [vmem:[#allocation2 + $0x38] sm:$0xff] %v1471
    %1537 = vst [vmem:[#allocation2 + $0x40] sm:$0xff] %v1512
    %1538 = vst [vmem:[#allocation2 + $0x48] sm:$0xff] %v1433
    %1539 = vst [vmem:[#allocation2 + $0x50] sm:$0xff] %v1474
    %1540 = vst [vmem:[#allocation2 + $0x58] sm:$0xff] %v1515
    %1541 = vst [vmem:[#allocation2 + $0x60] sm:$0xff] %v1436
    %1542 = vst [vmem:[#allocation2 + $0x68] sm:$0xff] %v1477
    %1543 = vst [vmem:[#allocation2 + $0x70] sm:$0xff] %v1518
    %1544 = vst [vmem:[#allocation2 + $0x78] sm:$0xff] %v1439
    %1545 = vst [vmem:[#allocation2 + $0x80] sm:$0xff] %v1480
    %1546 = vst [vmem:[#allocation2 + $0x88] sm:$0xff] %v1521
    %1547 = vst [vmem:[#allocation2 + $0x90] sm:$0xff] %v1442
    %1548 = vst [vmem:[#allocation2 + $0x98] sm:$0xff] %v1483
    %1549 = vst [vmem:[#allocation2 + $0xa0] sm:$0xff] %v1524
    %1550 = vst [vmem:[#allocation2 + $0xa8] sm:$0xff] %v1445
    %1551 = vst [vmem:[#allocation2 + $0xb0] sm:$0xff] %v1486
    %1552 = vst [vmem:[#allocation2 + $0xb8] sm:$0xff] %v1527
    %1553 = vst [vmem:[#allocation4] sm:$0xff] 0.0
    %1554 = vst [vmem:[#allocation5] sm:$0xff] 0.0
    %1555 = vst [vmem:[#allocation6] sm:$0xff] 0.0
    %v1556 = vld [vmem:[#allocation12] sm:$0xff]
    %v1557 = vld [vmem:[#allocation12 + $0x8] sm:$0xff]
    %v1558 = vld [vmem:[#allocation12 + $0x10] sm:$0xff]
    %v1559 = vld [vmem:[#allocation12 + $0x18] sm:$0xff]
    %v1560 = vld [vmem:[#allocation12 + $0x20] sm:$0xff]
    %v1561 = vld [vmem:[#allocation12 + $0x28] sm:$0xff]
    %v1562 = vld [vmem:[#allocation12 + $0x30] sm:$0xff]
    %v1563 = vld [vmem:[#allocation12 + $0x38] sm:$0xff]
    %v1564 = vld [vmem:[#allocation12 + $0x40] sm:$0xff]
    %v1565 = vld [vmem:[#allocation12 + $0x48] sm:$0xff]
    %v1566 = vld [vmem:[#allocation12 + $0x50] sm:$0xff]
    %v1567 = vld [vmem:[#allocation12 + $0x58] sm:$0xff]
    %v1568 = vld [vmem:[#allocation12 + $0x60] sm:$0xff]
    %v1569 = vld [vmem:[#allocation12 + $0x68] sm:$0xff]
    %v1570 = vld [vmem:[#allocation12 + $0x70] sm:$0xff]
    %v1571 = vld [vmem:[#allocation12 + $0x78] sm:$0xff]
    %v1572 = vld [vmem:[#allocation12 + $0x80] sm:$0xff]
    %v1573 = vld [vmem:[#allocation12 + $0x88] sm:$0xff]
    %v1574 = vld [vmem:[#allocation12 + $0x90] sm:$0xff]
    %v1575 = vld [vmem:[#allocation12 + $0x98] sm:$0xff]
    %v1576 = vld [vmem:[#allocation12 + $0xa0] sm:$0xff]
    %v1577 = vld [vmem:[#allocation12 + $0xa8] sm:$0xff]
    %v1578 = vld [vmem:[#allocation12 + $0xb0] sm:$0xff]
    %v1579 = vld [vmem:[#allocation12 + $0xb8] sm:$0xff]
    %v1580 = vld [vmem:[#allocation12 + $0xc0] sm:$0xff]
    %v1581 = vld [vmem:[#allocation12 + $0xc8] sm:$0xff]
    %v1582 = vld [vmem:[#allocation12 + $0xd0] sm:$0xff]
    %v1583 = vld [vmem:[#allocation12 + $0xd8] sm:$0xff]
    %v1584 = vld [vmem:[#allocation12 + $0xe0] sm:$0xff]
    %v1585 = vld [vmem:[#allocation12 + $0xe8] sm:$0xff]
    %v1586 = vld [vmem:[#allocation12 + $0xf0] sm:$0xff]
    %v1587 = vld [vmem:[#allocation12 + $0xf8] sm:$0xff]
    %v1588 = vld [vmem:[#allocation12 + $0x100] sm:$0xff]
    %v1589 = vld [vmem:[#allocation12 + $0x108] sm:$0xff]
    %v1590 = vld [vmem:[#allocation12 + $0x110] sm:$0xff]
    %v1591 = vld [vmem:[#allocation12 + $0x118] sm:$0xff]
    %v1592 = vld [vmem:[#allocation12 + $0x120] sm:$0xff]
    %v1593 = vld [vmem:[#allocation12 + $0x128] sm:$0xff]
    %v1594 = vld [vmem:[#allocation12 + $0x130] sm:$0xff]
    %v1595 = vld [vmem:[#allocation12 + $0x138] sm:$0xff]
    %v1596 = vld [vmem:[#allocation12 + $0x140] sm:$0xff]
    %v1597 = vld [vmem:[#allocation12 + $0x148] sm:$0xff]
    %v1598 = vld [vmem:[#allocation12 + $0x150] sm:$0xff]
    %v1599 = vld [vmem:[#allocation12 + $0x158] sm:$0xff]
    %v1600 = vld [vmem:[#allocation12 + $0x160] sm:$0xff]
    %v1601 = vld [vmem:[#allocation12 + $0x168] sm:$0xff]
    %v1602 = vld [vmem:[#allocation12 + $0x170] sm:$0xff]
    %v1603 = vld [vmem:[#allocation12 + $0x178] sm:$0xff]
    %v1604 = vld [vmem:[%s8] sm:$0x1]
    %v1605 = vld [vmem:[%s398] sm:$0xff]
    %v1606 = vld [vmem:[%s398 + $0x8] sm:$0xff]
    %v1607 = vld [vmem:[%s398 + $0x10] sm:$0xff]
    %v1608 = vld [vmem:[#allocation4] sm:$0xff]
    %1609 = vmatpush.msra.mxu0 %v1601
    %1610 = vmatpush.msra.mxu0 %v1598
    %1611 = vmatpush.msra.mxu0 %v1595
    %1612 = vmatpush.msra.mxu0 %v1592
    %1613 = vmatpush.msra.mxu0 %v1589
    %1614 = vmatpush.msra.mxu0 %v1586
    %1615 = vmatpush.msra.mxu0 %v1583
    %1616 = vmatpush.msra.mxu0 %v1580
    %1617 = vmatpush.msra.mxu0 %v1577
    %1618 = vmatpush.msra.mxu0 %v1574
    %1619 = vmatpush.msra.mxu0 %v1571
    %1620 = vmatpush.msra.mxu0 %v1568
    %1621 = vmatpush.msra.mxu0 %v1565
    %1622 = vmatpush.msra.mxu0 %v1562
    %1623 = vmatpush.msra.mxu0 %v1559
    %1624 = vmatpush.msra.mxu0 %v1556
    %1625 = vmatmul.f32.gmra.mxu0 %v1608
    %v1626 = vpop.f32.mrf.mxu0
    %v1627 = vadd.f32 0.0, %v1626
    %1628 = vdwg.mxu0
    %1629 = vmatpush.msra.mxu0 %v1602
    %1630 = vmatpush.msra.mxu0 %v1599
    %1631 = vmatpush.msra.mxu0 %v1596
    %1632 = vmatpush.msra.mxu0 %v1593
    %1633 = vmatpush.msra.mxu0 %v1590
    %1634 = vmatpush.msra.mxu0 %v1587
    %1635 = vmatpush.msra.mxu0 %v1584
    %1636 = vmatpush.msra.mxu0 %v1581
    %1637 = vmatpush.msra.mxu0 %v1578
    %1638 = vmatpush.msra.mxu0 %v1575
    %1639 = vmatpush.msra.mxu0 %v1572
    %1640 = vmatpush.msra.mxu0 %v1569
    %1641 = vmatpush.msra.mxu0 %v1566
    %1642 = vmatpush.msra.mxu0 %v1563
    %1643 = vmatpush.msra.mxu0 %v1560
    %1644 = vmatpush.msra.mxu0 %v1557
    %1645 = vmatmul.f32.gmra.mxu0 %v1608
    %v1646 = vpop.f32.mrf.mxu0
    %v1647 = vadd.f32 0.0, %v1646
    %1648 = vdwg.mxu0
    %1649 = vmatpush.msra.mxu0 %v1603
    %1650 = vmatpush.msra.mxu0 %v1600
    %1651 = vmatpush.msra.mxu0 %v1597
    %1652 = vmatpush.msra.mxu0 %v1594
    %1653 = vmatpush.msra.mxu0 %v1591
    %1654 = vmatpush.msra.mxu0 %v1588
    %1655 = vmatpush.msra.mxu0 %v1585
    %1656 = vmatpush.msra.mxu0 %v1582
    %1657 = vmatpush.msra.mxu0 %v1579
    %1658 = vmatpush.msra.mxu0 %v1576
    %1659 = vmatpush.msra.mxu0 %v1573
    %1660 = vmatpush.msra.mxu0 %v1570
    %1661 = vmatpush.msra.mxu0 %v1567
    %1662 = vmatpush.msra.mxu0 %v1564
    %1663 = vmatpush.msra.mxu0 %v1561
    %1664 = vmatpush.msra.mxu0 %v1558
    %1665 = vmatmul.f32.gmra.mxu0 %v1608
    %v1666 = vpop.f32.mrf.mxu0
    %v1667 = vadd.f32 0.0, %v1666
    %1668 = vdwg.mxu0
    %v1669 = vadd.f32 %v1605, %v1627
    %v1670 = vxor.u32 %v1669, 2147483648
    %v1671 = vmul.f32 %v1670, 1.442695
    %v1672 = vpow.pop %v1671
    %v1673 = vadd.f32 %v1672, 1.0
    %v1674 = vrcp.pop %v1673
    %v1675 = vmul.f32 %v1673, %v1674
    %v1676 = vsub.f32 1.0, %v1675
    %v1677 = vmul.f32 %v1674, %v1676
    %v1678 = vadd.f32 %v1674, %v1677
    %vm1679 = vweird.f32 %v1673
    %vm1680 = vweird.f32 %v1674
    %vm1681 = vmor %vm1679, %vm1680
    %v1682 = vsel %vm1681, %v1674, %v1678
    %v1683 = vand.u32 2147483647, %v1673
    %vm1684 = vcmp.eq.f32.partialorder %v1683, 8.507059e+37
    %v1685 = vand.u32 %v1673, 2147483648
    %v1686 = vor.u32 1.1754944e-38, %v1685
    %v1687 = vsel %vm1684, %v1686, %v1682
    %v1688 = vmul.f32 1.0, %v1687
    %v1689 = vadd.f32 %v1606, %v1647
    %v1690 = vxor.u32 %v1689, 2147483648
    %v1691 = vmul.f32 %v1690, 1.442695
    %v1692 = vpow.pop %v1691
    %v1693 = vadd.f32 %v1692, 1.0
    %v1694 = vrcp.pop %v1693
    %v1695 = vmul.f32 %v1693, %v1694
    %v1696 = vsub.f32 1.0, %v1695
    %v1697 = vmul.f32 %v1694, %v1696
    %v1698 = vadd.f32 %v1694, %v1697
    %vm1699 = vweird.f32 %v1693
    %vm1700 = vweird.f32 %v1694
    %vm1701 = vmor %vm1699, %vm1700
    %v1702 = vsel %vm1701, %v1694, %v1698
    %v1703 = vand.u32 2147483647, %v1693
    %vm1704 = vcmp.eq.f32.partialorder %v1703, 8.507059e+37
    %v1705 = vand.u32 %v1693, 2147483648
    %v1706 = vor.u32 1.1754944e-38, %v1705
    %v1707 = vsel %vm1704, %v1706, %v1702
    %v1708 = vmul.f32 1.0, %v1707
    %v1710 = vperm.slane %v1604, 0
    %v1712 = vadd.f32 %v1667, %v1710
    %v1713 = vmul.f32 %v1688, %v1712
    %v1714 = vadd.f32 %v1607, %v1713
    %v1715 = vtanh.pop %v1714
    %v1716 = vsub.f32 1.0, %v1708
    %v1717 = vmul.f32 %v1716, %v1715
    %v1718 = vmul.f32 %v1708, %v1608
    %v1719 = vadd.f32 %v1717, %v1718
    %1720 = vst [vmem:[#allocation4] sm:$0xff] %v1719
    %v1721 = vmax.f32 %v1719, 0.0
    %v1722 = vld [vmem:[#allocation5] sm:$0xff]
    %v1723 = vadd.f32 %v1722, %v1721
    %1724 = vst [vmem:[#allocation5] sm:$0xff] %v1723
    %v1725 = vld [vmem:[#allocation6] sm:$0xff]
    %v1726 = vmax.f32 %v1725, %v1721
    %1727 = vst [vmem:[#allocation6] sm:$0xff] %v1726
    %v1728 = vld [vmem:[%s518] sm:$0xff]
    %v1729 = vld [vmem:[%s518 + $0x8] sm:$0xff]
    %v1730 = vld [vmem:[%s518 + $0x10] sm:$0xff]
    %v1731 = vld [vmem:[#allocation4] sm:$0xff]
    %1732 = vmatpush.msra.mxu0 %v1601
    %1733 = vmatpush.msra.mxu0 %v1598
    %1734 = vmatpush.msra.mxu0 %v1595
    %1735 = vmatpush.msra.mxu0 %v1592
    %1736 = vmatpush.msra.mxu0 %v1589
    %1737 = vmatpush.msra.mxu0 %v1586
    %1738 = vmatpush.msra.mxu0 %v1583
    %1739 = vmatpush.msra.mxu0 %v1580
    %1740 = vmatpush.msra.mxu0 %v1577
    %1741 = vmatpush.msra.mxu0 %v1574
    %1742 = vmatpush.msra.mxu0 %v1571
    %1743 = vmatpush.msra.mxu0 %v1568
    %1744 = vmatpush.msra.mxu0 %v1565
    %1745 = vmatpush.msra.mxu0 %v1562
    %1746 = vmatpush.msra.mxu0 %v1559
    %1747 = vmatpush.msra.mxu0 %v1556
    %1748 = vmatmul.f32.gmra.mxu0 %v1731
    %v1749 = vpop.f32.mrf.mxu0
    %v1750 = vadd.f32 0.0, %v1749
    %1751 = vdwg.mxu0
    %1752 = vmatpush.msra.mxu0 %v1602
    %1753 = vmatpush.msra.mxu0 %v1599
    %1754 = vmatpush.msra.mxu0 %v1596
    %1755 = vmatpush.msra.mxu0 %v1593
    %1756 = vmatpush.msra.mxu0 %v1590
    %1757 = vmatpush.msra.mxu0 %v1587
    %1758 = vmatpush.msra.mxu0 %v1584
    %1759 = vmatpush.msra.mxu0 %v1581
    %1760 = vmatpush.msra.mxu0 %v1578
    %1761 = vmatpush.msra.mxu0 %v1575
    %1762 = vmatpush.msra.mxu0 %v1572
    %1763 = vmatpush.msra.mxu0 %v1569
    %1764 = vmatpush.msra.mxu0 %v1566
    %1765 = vmatpush.msra.mxu0 %v1563
    %1766 = vmatpush.msra.mxu0 %v1560
    %1767 = vmatpush.msra.mxu0 %v1557
    %1768 = vmatmul.f32.gmra.mxu0 %v1731
    %v1769 = vpop.f32.mrf.mxu0
    %v1770 = vadd.f32 0.0, %v1769
    %1771 = vdwg.mxu0
    %1772 = vmatpush.msra.mxu0 %v1603
    %1773 = vmatpush.msra.mxu0 %v1600
    %1774 = vmatpush.msra.mxu0 %v1597
    %1775 = vmatpush.msra.mxu0 %v1594
    %1776 = vmatpush.msra.mxu0 %v1591
    %1777 = vmatpush.msra.mxu0 %v1588
    %1778 = vmatpush.msra.mxu0 %v1585
    %1779 = vmatpush.msra.mxu0 %v1582
    %1780 = vmatpush.msra.mxu0 %v1579
    %1781 = vmatpush.msra.mxu0 %v1576
    %1782 = vmatpush.msra.mxu0 %v1573
    %1783 = vmatpush.msra.mxu0 %v1570
    %1784 = vmatpush.msra.mxu0 %v1567
    %1785 = vmatpush.msra.mxu0 %v1564
    %1786 = vmatpush.msra.mxu0 %v1561
    %1787 = vmatpush.msra.mxu0 %v1558
    %1788 = vmatmul.f32.gmra.mxu0 %v1731
    %v1789 = vpop.f32.mrf.mxu0
    %v1790 = vadd.f32 0.0, %v1789
    %1791 = vdwg.mxu0
    %v1792 = vadd.f32 %v1728, %v1750
    %v1793 = vxor.u32 %v1792, 2147483648
    %v1794 = vmul.f32 %v1793, 1.442695
    %v1795 = vpow.pop %v1794
    %v1796 = vadd.f32 %v1795, 1.0
    %v1797 = vrcp.pop %v1796
    %v1798 = vmul.f32 %v1796, %v1797
    %v1799 = vsub.f32 1.0, %v1798
    %v1800 = vmul.f32 %v1797, %v1799
    %v1801 = vadd.f32 %v1797, %v1800
    %vm1802 = vweird.f32 %v1796
    %vm1803 = vweird.f32 %v1797
    %vm1804 = vmor %vm1802, %vm1803
    %v1805 = vsel %vm1804, %v1797, %v1801
    %v1806 = vand.u32 2147483647, %v1796
    %vm1807 = vcmp.eq.f32.partialorder %v1806, 8.507059e+37
    %v1808 = vand.u32 %v1796, 2147483648
    %v1809 = vor.u32 1.1754944e-38, %v1808
    %v1810 = vsel %vm1807, %v1809, %v1805
    %v1811 = vmul.f32 1.0, %v1810
    %v1812 = vadd.f32 %v1729, %v1770
    %v1813 = vxor.u32 %v1812, 2147483648
    %v1814 = vmul.f32 %v1813, 1.442695
    %v1815 = vpow.pop %v1814
    %v1816 = vadd.f32 %v1815, 1.0
    %v1817 = vrcp.pop %v1816
    %v1818 = vmul.f32 %v1816, %v1817
    %v1819 = vsub.f32 1.0, %v1818
    %v1820 = vmul.f32 %v1817, %v1819
    %v1821 = vadd.f32 %v1817, %v1820
    %vm1822 = vweird.f32 %v1816
    %vm1823 = vweird.f32 %v1817
    %vm1824 = vmor %vm1822, %vm1823
    %v1825 = vsel %vm1824, %v1817, %v1821
    %v1826 = vand.u32 2147483647, %v1816
    %vm1827 = vcmp.eq.f32.partialorder %v1826, 8.507059e+37
    %v1828 = vand.u32 %v1816, 2147483648
    %v1829 = vor.u32 1.1754944e-38, %v1828
    %v1830 = vsel %vm1827, %v1829, %v1825
    %v1831 = vmul.f32 1.0, %v1830
    %v1832 = vadd.f32 %v1790, %v1710
    %v1833 = vmul.f32 %v1811, %v1832
    %v1834 = vadd.f32 %v1730, %v1833
    %v1835 = vtanh.pop %v1834
    %v1836 = vsub.f32 1.0, %v1831
    %v1837 = vmul.f32 %v1836, %v1835
    %v1838 = vmul.f32 %v1831, %v1731
    %v1839 = vadd.f32 %v1837, %v1838
    %1840 = vst [vmem:[#allocation4] sm:$0xff] %v1839
    %v1841 = vmax.f32 %v1839, 0.0
    %v1842 = vld [vmem:[#allocation5] sm:$0xff]
    %v1843 = vadd.f32 %v1842, %v1841
    %1844 = vst [vmem:[#allocation5] sm:$0xff] %v1843
    %v1845 = vld [vmem:[#allocation6] sm:$0xff]
    %v1846 = vmax.f32 %v1845, %v1841
    %1847 = vst [vmem:[#allocation6] sm:$0xff] %v1846
    %v1848 = vld [vmem:[%s636] sm:$0xff]
    %v1849 = vld [vmem:[%s636 + $0x8] sm:$0xff]
    %v1850 = vld [vmem:[%s636 + $0x10] sm:$0xff]
    %v1851 = vld [vmem:[#allocation4] sm:$0xff]
    %1852 = vmatpush.msra.mxu0 %v1601
    %1853 = vmatpush.msra.mxu0 %v1598
    %1854 = vmatpush.msra.mxu0 %v1595
    %1855 = vmatpush.msra.mxu0 %v1592
    %1856 = vmatpush.msra.mxu0 %v1589
    %1857 = vmatpush.msra.mxu0 %v1586
    %1858 = vmatpush.msra.mxu0 %v1583
    %1859 = vmatpush.msra.mxu0 %v1580
    %1860 = vmatpush.msra.mxu0 %v1577
    %1861 = vmatpush.msra.mxu0 %v1574
    %1862 = vmatpush.msra.mxu0 %v1571
    %1863 = vmatpush.msra.mxu0 %v1568
    %1864 = vmatpush.msra.mxu0 %v1565
    %1865 = vmatpush.msra.mxu0 %v1562
    %1866 = vmatpush.msra.mxu0 %v1559
    %1867 = vmatpush.msra.mxu0 %v1556
    %1868 = vmatmul.f32.gmra.mxu0 %v1851
    %v1869 = vpop.f32.mrf.mxu0
    %v1870 = vadd.f32 0.0, %v1869
    %1871 = vdwg.mxu0
    %1872 = vmatpush.msra.mxu0 %v1602
    %1873 = vmatpush.msra.mxu0 %v1599
    %1874 = vmatpush.msra.mxu0 %v1596
    %1875 = vmatpush.msra.mxu0 %v1593
    %1876 = vmatpush.msra.mxu0 %v1590
    %1877 = vmatpush.msra.mxu0 %v1587
    %1878 = vmatpush.msra.mxu0 %v1584
    %1879 = vmatpush.msra.mxu0 %v1581
    %1880 = vmatpush.msra.mxu0 %v1578
    %1881 = vmatpush.msra.mxu0 %v1575
    %1882 = vmatpush.msra.mxu0 %v1572
    %1883 = vmatpush.msra.mxu0 %v1569
    %1884 = vmatpush.msra.mxu0 %v1566
    %1885 = vmatpush.msra.mxu0 %v1563
    %1886 = vmatpush.msra.mxu0 %v1560
    %1887 = vmatpush.msra.mxu0 %v1557
    %1888 = vmatmul.f32.gmra.mxu0 %v1851
    %v1889 = vpop.f32.mrf.mxu0
    %v1890 = vadd.f32 0.0, %v1889
    %1891 = vdwg.mxu0
    %1892 = vmatpush.msra.mxu0 %v1603
    %1893 = vmatpush.msra.mxu0 %v1600
    %1894 = vmatpush.msra.mxu0 %v1597
    %1895 = vmatpush.msra.mxu0 %v1594
    %1896 = vmatpush.msra.mxu0 %v1591
    %1897 = vmatpush.msra.mxu0 %v1588
    %1898 = vmatpush.msra.mxu0 %v1585
    %1899 = vmatpush.msra.mxu0 %v1582
    %1900 = vmatpush.msra.mxu0 %v1579
    %1901 = vmatpush.msra.mxu0 %v1576
    %1902 = vmatpush.msra.mxu0 %v1573
    %1903 = vmatpush.msra.mxu0 %v1570
    %1904 = vmatpush.msra.mxu0 %v1567
    %1905 = vmatpush.msra.mxu0 %v1564
    %1906 = vmatpush.msra.mxu0 %v1561
    %1907 = vmatpush.msra.mxu0 %v1558
    %1908 = vmatmul.f32.gmra.mxu0 %v1851
    %v1909 = vpop.f32.mrf.mxu0
    %v1910 = vadd.f32 0.0, %v1909
    %1911 = vdwg.mxu0
    %v1912 = vadd.f32 %v1848, %v1870
    %v1913 = vxor.u32 %v1912, 2147483648
    %v1914 = vmul.f32 %v1913, 1.442695
    %v1915 = vpow.pop %v1914
    %v1916 = vadd.f32 %v1915, 1.0
    %v1917 = vrcp.pop %v1916
    %v1918 = vmul.f32 %v1916, %v1917
    %v1919 = vsub.f32 1.0, %v1918
    %v1920 = vmul.f32 %v1917, %v1919
    %v1921 = vadd.f32 %v1917, %v1920
    %vm1922 = vweird.f32 %v1916
    %vm1923 = vweird.f32 %v1917
    %vm1924 = vmor %vm1922, %vm1923
    %v1925 = vsel %vm1924, %v1917, %v1921
    %v1926 = vand.u32 2147483647, %v1916
    %vm1927 = vcmp.eq.f32.partialorder %v1926, 8.507059e+37
    %v1928 = vand.u32 %v1916, 2147483648
    %v1929 = vor.u32 1.1754944e-38, %v1928
    %v1930 = vsel %vm1927, %v1929, %v1925
    %v1931 = vmul.f32 1.0, %v1930
    %v1932 = vadd.f32 %v1849, %v1890
    %v1933 = vxor.u32 %v1932, 2147483648
    %v1934 = vmul.f32 %v1933, 1.442695
    %v1935 = vpow.pop %v1934
    %v1936 = vadd.f32 %v1935, 1.0
    %v1937 = vrcp.pop %v1936
    %v1938 = vmul.f32 %v1936, %v1937
    %v1939 = vsub.f32 1.0, %v1938
    %v1940 = vmul.f32 %v1937, %v1939
    %v1941 = vadd.f32 %v1937, %v1940
    %vm1942 = vweird.f32 %v1936
    %vm1943 = vweird.f32 %v1937
    %vm1944 = vmor %vm1942, %vm1943
    %v1945 = vsel %vm1944, %v1937, %v1941
    %v1946 = vand.u32 2147483647, %v1936
    %vm1947 = vcmp.eq.f32.partialorder %v1946, 8.507059e+37
    %v1948 = vand.u32 %v1936, 2147483648
    %v1949 = vor.u32 1.1754944e-38, %v1948
    %v1950 = vsel %vm1947, %v1949, %v1945
    %v1951 = vmul.f32 1.0, %v1950
    %v1952 = vadd.f32 %v1910, %v1710
    %v1953 = vmul.f32 %v1931, %v1952
    %v1954 = vadd.f32 %v1850, %v1953
    %v1955 = vtanh.pop %v1954
    %v1956 = vsub.f32 1.0, %v1951
    %v1957 = vmul.f32 %v1956, %v1955
    %v1958 = vmul.f32 %v1951, %v1851
    %v1959 = vadd.f32 %v1957, %v1958
    %1960 = vst [vmem:[#allocation4] sm:$0xff] %v1959
    %v1961 = vmax.f32 %v1959, 0.0
    %v1962 = vld [vmem:[#allocation5] sm:$0xff]
    %v1963 = vadd.f32 %v1962, %v1961
    %1964 = vst [vmem:[#allocation5] sm:$0xff] %v1963
    %v1965 = vld [vmem:[#allocation6] sm:$0xff]
    %v1966 = vmax.f32 %v1965, %v1961
    %1967 = vst [vmem:[#allocation6] sm:$0xff] %v1966
    %v1968 = vld [vmem:[%s754] sm:$0xff]
    %v1969 = vld [vmem:[%s754 + $0x8] sm:$0xff]
    %v1970 = vld [vmem:[%s754 + $0x10] sm:$0xff]
    %v1971 = vld [vmem:[#allocation4] sm:$0xff]
    %1972 = vmatpush.msra.mxu0 %v1601
    %1973 = vmatpush.msra.mxu0 %v1598
    %1974 = vmatpush.msra.mxu0 %v1595
    %1975 = vmatpush.msra.mxu0 %v1592
    %1976 = vmatpush.msra.mxu0 %v1589
    %1977 = vmatpush.msra.mxu0 %v1586
    %1978 = vmatpush.msra.mxu0 %v1583
    %1979 = vmatpush.msra.mxu0 %v1580
    %1980 = vmatpush.msra.mxu0 %v1577
    %1981 = vmatpush.msra.mxu0 %v1574
    %1982 = vmatpush.msra.mxu0 %v1571
    %1983 = vmatpush.msra.mxu0 %v1568
    %1984 = vmatpush.msra.mxu0 %v1565
    %1985 = vmatpush.msra.mxu0 %v1562
    %1986 = vmatpush.msra.mxu0 %v1559
    %1987 = vmatpush.msra.mxu0 %v1556
    %1988 = vmatmul.f32.gmra.mxu0 %v1971
    %v1989 = vpop.f32.mrf.mxu0
    %v1990 = vadd.f32 0.0, %v1989
    %1991 = vdwg.mxu0
    %1992 = vmatpush.msra.mxu0 %v1602
    %1993 = vmatpush.msra.mxu0 %v1599
    %1994 = vmatpush.msra.mxu0 %v1596
    %1995 = vmatpush.msra.mxu0 %v1593
    %1996 = vmatpush.msra.mxu0 %v1590
    %1997 = vmatpush.msra.mxu0 %v1587
    %1998 = vmatpush.msra.mxu0 %v1584
    %1999 = vmatpush.msra.mxu0 %v1581
    %2000 = vmatpush.msra.mxu0 %v1578
    %2001 = vmatpush.msra.mxu0 %v1575
    %2002 = vmatpush.msra.mxu0 %v1572
    %2003 = vmatpush.msra.mxu0 %v1569
    %2004 = vmatpush.msra.mxu0 %v1566
    %2005 = vmatpush.msra.mxu0 %v1563
    %2006 = vmatpush.msra.mxu0 %v1560
    %2007 = vmatpush.msra.mxu0 %v1557
    %2008 = vmatmul.f32.gmra.mxu0 %v1971
    %v2009 = vpop.f32.mrf.mxu0
    %v2010 = vadd.f32 0.0, %v2009
    %2011 = vdwg.mxu0
    %2012 = vmatpush.msra.mxu0 %v1603
    %2013 = vmatpush.msra.mxu0 %v1600
    %2014 = vmatpush.msra.mxu0 %v1597
    %2015 = vmatpush.msra.mxu0 %v1594
    %2016 = vmatpush.msra.mxu0 %v1591
    %2017 = vmatpush.msra.mxu0 %v1588
    %2018 = vmatpush.msra.mxu0 %v1585
    %2019 = vmatpush.msra.mxu0 %v1582
    %2020 = vmatpush.msra.mxu0 %v1579
    %2021 = vmatpush.msra.mxu0 %v1576
    %2022 = vmatpush.msra.mxu0 %v1573
    %2023 = vmatpush.msra.mxu0 %v1570
    %2024 = vmatpush.msra.mxu0 %v1567
    %2025 = vmatpush.msra.mxu0 %v1564
    %2026 = vmatpush.msra.mxu0 %v1561
    %2027 = vmatpush.msra.mxu0 %v1558
    %2028 = vmatmul.f32.gmra.mxu0 %v1971
    %v2029 = vpop.f32.mrf.mxu0
    %v2030 = vadd.f32 0.0, %v2029
    %2031 = vdwg.mxu0
    %v2032 = vadd.f32 %v1968, %v1990
    %v2033 = vxor.u32 %v2032, 2147483648
    %v2034 = vmul.f32 %v2033, 1.442695
    %v2035 = vpow.pop %v2034
    %v2036 = vadd.f32 %v2035, 1.0
    %v2037 = vrcp.pop %v2036
    %v2038 = vmul.f32 %v2036, %v2037
    %v2039 = vsub.f32 1.0, %v2038
    %v2040 = vmul.f32 %v2037, %v2039
    %v2041 = vadd.f32 %v2037, %v2040
    %vm2042 = vweird.f32 %v2036
    %vm2043 = vweird.f32 %v2037
    %vm2044 = vmor %vm2042, %vm2043
    %v2045 = vsel %vm2044, %v2037, %v2041
    %v2046 = vand.u32 2147483647, %v2036
    %vm2047 = vcmp.eq.f32.partialorder %v2046, 8.507059e+37
    %v2048 = vand.u32 %v2036, 2147483648
    %v2049 = vor.u32 1.1754944e-38, %v2048
    %v2050 = vsel %vm2047, %v2049, %v2045
    %v2051 = vmul.f32 1.0, %v2050
    %v2052 = vadd.f32 %v1969, %v2010
    %v2053 = vxor.u32 %v2052, 2147483648
    %v2054 = vmul.f32 %v2053, 1.442695
    %v2055 = vpow.pop %v2054
    %v2056 = vadd.f32 %v2055, 1.0
    %v2057 = vrcp.pop %v2056
    %v2058 = vmul.f32 %v2056, %v2057
    %v2059 = vsub.f32 1.0, %v2058
    %v2060 = vmul.f32 %v2057, %v2059
    %v2061 = vadd.f32 %v2057, %v2060
    %vm2062 = vweird.f32 %v2056
    %vm2063 = vweird.f32 %v2057
    %vm2064 = vmor %vm2062, %vm2063
    %v2065 = vsel %vm2064, %v2057, %v2061
    %v2066 = vand.u32 2147483647, %v2056
    %vm2067 = vcmp.eq.f32.partialorder %v2066, 8.507059e+37
    %v2068 = vand.u32 %v2056, 2147483648
    %v2069 = vor.u32 1.1754944e-38, %v2068
    %v2070 = vsel %vm2067, %v2069, %v2065
    %v2071 = vmul.f32 1.0, %v2070
    %v2072 = vadd.f32 %v2030, %v1710
    %v2073 = vmul.f32 %v2051, %v2072
    %v2074 = vadd.f32 %v1970, %v2073
    %v2075 = vtanh.pop %v2074
    %v2076 = vsub.f32 1.0, %v2071
    %v2077 = vmul.f32 %v2076, %v2075
    %v2078 = vmul.f32 %v2071, %v1971
    %v2079 = vadd.f32 %v2077, %v2078
    %2080 = vst [vmem:[#allocation4] sm:$0xff] %v2079
    %v2081 = vmax.f32 %v2079, 0.0
    %v2082 = vld [vmem:[#allocation5] sm:$0xff]
    %v2083 = vadd.f32 %v2082, %v2081
    %2084 = vst [vmem:[#allocation5] sm:$0xff] %v2083
    %v2085 = vld [vmem:[#allocation6] sm:$0xff]
    %v2086 = vmax.f32 %v2085, %v2081
    %2087 = vst [vmem:[#allocation6] sm:$0xff] %v2086
    %v2088 = vld [vmem:[%s872] sm:$0xff]
    %v2089 = vld [vmem:[%s872 + $0x8] sm:$0xff]
    %v2090 = vld [vmem:[%s872 + $0x10] sm:$0xff]
    %v2091 = vld [vmem:[#allocation4] sm:$0xff]
    %2092 = vmatpush.msra.mxu0 %v1601
    %2093 = vmatpush.msra.mxu0 %v1598
    %2094 = vmatpush.msra.mxu0 %v1595
    %2095 = vmatpush.msra.mxu0 %v1592
    %2096 = vmatpush.msra.mxu0 %v1589
    %2097 = vmatpush.msra.mxu0 %v1586
    %2098 = vmatpush.msra.mxu0 %v1583
    %2099 = vmatpush.msra.mxu0 %v1580
    %2100 = vmatpush.msra.mxu0 %v1577
    %2101 = vmatpush.msra.mxu0 %v1574
    %2102 = vmatpush.msra.mxu0 %v1571
    %2103 = vmatpush.msra.mxu0 %v1568
    %2104 = vmatpush.msra.mxu0 %v1565
    %2105 = vmatpush.msra.mxu0 %v1562
    %2106 = vmatpush.msra.mxu0 %v1559
    %2107 = vmatpush.msra.mxu0 %v1556
    %2108 = vmatmul.f32.gmra.mxu0 %v2091
    %v2109 = vpop.f32.mrf.mxu0
    %v2110 = vadd.f32 0.0, %v2109
    %2111 = vdwg.mxu0
    %2112 = vmatpush.msra.mxu0 %v1602
    %2113 = vmatpush.msra.mxu0 %v1599
    %2114 = vmatpush.msra.mxu0 %v1596
    %2115 = vmatpush.msra.mxu0 %v1593
    %2116 = vmatpush.msra.mxu0 %v1590
    %2117 = vmatpush.msra.mxu0 %v1587
    %2118 = vmatpush.msra.mxu0 %v1584
    %2119 = vmatpush.msra.mxu0 %v1581
    %2120 = vmatpush.msra.mxu0 %v1578
    %2121 = vmatpush.msra.mxu0 %v1575
    %2122 = vmatpush.msra.mxu0 %v1572
    %2123 = vmatpush.msra.mxu0 %v1569
    %2124 = vmatpush.msra.mxu0 %v1566
    %2125 = vmatpush.msra.mxu0 %v1563
    %2126 = vmatpush.msra.mxu0 %v1560
    %2127 = vmatpush.msra.mxu0 %v1557
    %2128 = vmatmul.f32.gmra.mxu0 %v2091
    %v2129 = vpop.f32.mrf.mxu0
    %v2130 = vadd.f32 0.0, %v2129
    %2131 = vdwg.mxu0
    %2132 = vmatpush.msra.mxu0 %v1603
    %2133 = vmatpush.msra.mxu0 %v1600
    %2134 = vmatpush.msra.mxu0 %v1597
    %2135 = vmatpush.msra.mxu0 %v1594
    %2136 = vmatpush.msra.mxu0 %v1591
    %2137 = vmatpush.msra.mxu0 %v1588
    %2138 = vmatpush.msra.mxu0 %v1585
    %2139 = vmatpush.msra.mxu0 %v1582
    %2140 = vmatpush.msra.mxu0 %v1579
    %2141 = vmatpush.msra.mxu0 %v1576
    %2142 = vmatpush.msra.mxu0 %v1573
    %2143 = vmatpush.msra.mxu0 %v1570
    %2144 = vmatpush.msra.mxu0 %v1567
    %2145 = vmatpush.msra.mxu0 %v1564
    %2146 = vmatpush.msra.mxu0 %v1561
    %2147 = vmatpush.msra.mxu0 %v1558
    %2148 = vmatmul.f32.gmra.mxu0 %v2091
    %v2149 = vpop.f32.mrf.mxu0
    %v2150 = vadd.f32 0.0, %v2149
    %2151 = vdwg.mxu0
    %v2152 = vadd.f32 %v2088, %v2110
    %v2153 = vxor.u32 %v2152, 2147483648
    %v2154 = vmul.f32 %v2153, 1.442695
    %v2155 = vpow.pop %v2154
    %v2156 = vadd.f32 %v2155, 1.0
    %v2157 = vrcp.pop %v2156
    %v2158 = vmul.f32 %v2156, %v2157
    %v2159 = vsub.f32 1.0, %v2158
    %v2160 = vmul.f32 %v2157, %v2159
    %v2161 = vadd.f32 %v2157, %v2160
    %vm2162 = vweird.f32 %v2156
    %vm2163 = vweird.f32 %v2157
    %vm2164 = vmor %vm2162, %vm2163
    %v2165 = vsel %vm2164, %v2157, %v2161
    %v2166 = vand.u32 2147483647, %v2156
    %vm2167 = vcmp.eq.f32.partialorder %v2166, 8.507059e+37
    %v2168 = vand.u32 %v2156, 2147483648
    %v2169 = vor.u32 1.1754944e-38, %v2168
    %v2170 = vsel %vm2167, %v2169, %v2165
    %v2171 = vmul.f32 1.0, %v2170
    %v2172 = vadd.f32 %v2089, %v2130
    %v2173 = vxor.u32 %v2172, 2147483648
    %v2174 = vmul.f32 %v2173, 1.442695
    %v2175 = vpow.pop %v2174
    %v2176 = vadd.f32 %v2175, 1.0
    %v2177 = vrcp.pop %v2176
    %v2178 = vmul.f32 %v2176, %v2177
    %v2179 = vsub.f32 1.0, %v2178
    %v2180 = vmul.f32 %v2177, %v2179
    %v2181 = vadd.f32 %v2177, %v2180
    %vm2182 = vweird.f32 %v2176
    %vm2183 = vweird.f32 %v2177
    %vm2184 = vmor %vm2182, %vm2183
    %v2185 = vsel %vm2184, %v2177, %v2181
    %v2186 = vand.u32 2147483647, %v2176
    %vm2187 = vcmp.eq.f32.partialorder %v2186, 8.507059e+37
    %v2188 = vand.u32 %v2176, 2147483648
    %v2189 = vor.u32 1.1754944e-38, %v2188
    %v2190 = vsel %vm2187, %v2189, %v2185
    %v2191 = vmul.f32 1.0, %v2190
    %v2192 = vadd.f32 %v2150, %v1710
    %v2193 = vmul.f32 %v2171, %v2192
    %v2194 = vadd.f32 %v2090, %v2193
    %v2195 = vtanh.pop %v2194
    %v2196 = vsub.f32 1.0, %v2191
    %v2197 = vmul.f32 %v2196, %v2195
    %v2198 = vmul.f32 %v2191, %v2091
    %v2199 = vadd.f32 %v2197, %v2198
    %2200 = vst [vmem:[#allocation4] sm:$0xff] %v2199
    %v2201 = vmax.f32 %v2199, 0.0
    %v2202 = vld [vmem:[#allocation5] sm:$0xff]
    %v2203 = vadd.f32 %v2202, %v2201
    %2204 = vst [vmem:[#allocation5] sm:$0xff] %v2203
    %v2205 = vld [vmem:[#allocation6] sm:$0xff]
    %v2206 = vmax.f32 %v2205, %v2201
    %2207 = vst [vmem:[#allocation6] sm:$0xff] %v2206
    %v2208 = vld [vmem:[%s990] sm:$0xff]
    %v2209 = vld [vmem:[%s990 + $0x8] sm:$0xff]
    %v2210 = vld [vmem:[%s990 + $0x10] sm:$0xff]
    %v2211 = vld [vmem:[#allocation4] sm:$0xff]
    %2212 = vmatpush.msra.mxu0 %v1601
    %2213 = vmatpush.msra.mxu0 %v1598
    %2214 = vmatpush.msra.mxu0 %v1595
    %2215 = vmatpush.msra.mxu0 %v1592
    %2216 = vmatpush.msra.mxu0 %v1589
    %2217 = vmatpush.msra.mxu0 %v1586
    %2218 = vmatpush.msra.mxu0 %v1583
    %2219 = vmatpush.msra.mxu0 %v1580
    %2220 = vmatpush.msra.mxu0 %v1577
    %2221 = vmatpush.msra.mxu0 %v1574
    %2222 = vmatpush.msra.mxu0 %v1571
    %2223 = vmatpush.msra.mxu0 %v1568
    %2224 = vmatpush.msra.mxu0 %v1565
    %2225 = vmatpush.msra.mxu0 %v1562
    %2226 = vmatpush.msra.mxu0 %v1559
    %2227 = vmatpush.msra.mxu0 %v1556
    %2228 = vmatmul.f32.gmra.mxu0 %v2211
    %v2229 = vpop.f32.mrf.mxu0
    %v2230 = vadd.f32 0.0, %v2229
    %2231 = vdwg.mxu0
    %2232 = vmatpush.msra.mxu0 %v1602
    %2233 = vmatpush.msra.mxu0 %v1599
    %2234 = vmatpush.msra.mxu0 %v1596
    %2235 = vmatpush.msra.mxu0 %v1593
    %2236 = vmatpush.msra.mxu0 %v1590
    %2237 = vmatpush.msra.mxu0 %v1587
    %2238 = vmatpush.msra.mxu0 %v1584
    %2239 = vmatpush.msra.mxu0 %v1581
    %2240 = vmatpush.msra.mxu0 %v1578
    %2241 = vmatpush.msra.mxu0 %v1575
    %2242 = vmatpush.msra.mxu0 %v1572
    %2243 = vmatpush.msra.mxu0 %v1569
    %2244 = vmatpush.msra.mxu0 %v1566
    %2245 = vmatpush.msra.mxu0 %v1563
    %2246 = vmatpush.msra.mxu0 %v1560
    %2247 = vmatpush.msra.mxu0 %v1557
    %2248 = vmatmul.f32.gmra.mxu0 %v2211
    %v2249 = vpop.f32.mrf.mxu0
    %v2250 = vadd.f32 0.0, %v2249
    %2251 = vdwg.mxu0
    %2252 = vmatpush.msra.mxu0 %v1603
    %2253 = vmatpush.msra.mxu0 %v1600
    %2254 = vmatpush.msra.mxu0 %v1597
    %2255 = vmatpush.msra.mxu0 %v1594
    %2256 = vmatpush.msra.mxu0 %v1591
    %2257 = vmatpush.msra.mxu0 %v1588
    %2258 = vmatpush.msra.mxu0 %v1585
    %2259 = vmatpush.msra.mxu0 %v1582
    %2260 = vmatpush.msra.mxu0 %v1579
    %2261 = vmatpush.msra.mxu0 %v1576
    %2262 = vmatpush.msra.mxu0 %v1573
    %2263 = vmatpush.msra.mxu0 %v1570
    %2264 = vmatpush.msra.mxu0 %v1567
    %2265 = vmatpush.msra.mxu0 %v1564
    %2266 = vmatpush.msra.mxu0 %v1561
    %2267 = vmatpush.msra.mxu0 %v1558
    %2268 = vmatmul.f32.gmra.mxu0 %v2211
    %v2269 = vpop.f32.mrf.mxu0
    %v2270 = vadd.f32 0.0, %v2269
    %2271 = vdwg.mxu0
    %v2272 = vadd.f32 %v2208, %v2230
    %v2273 = vxor.u32 %v2272, 2147483648
    %v2274 = vmul.f32 %v2273, 1.442695
    %v2275 = vpow.pop %v2274
    %v2276 = vadd.f32 %v2275, 1.0
    %v2277 = vrcp.pop %v2276
    %v2278 = vmul.f32 %v2276, %v2277
    %v2279 = vsub.f32 1.0, %v2278
    %v2280 = vmul.f32 %v2277, %v2279
    %v2281 = vadd.f32 %v2277, %v2280
    %vm2282 = vweird.f32 %v2276
    %vm2283 = vweird.f32 %v2277
    %vm2284 = vmor %vm2282, %vm2283
    %v2285 = vsel %vm2284, %v2277, %v2281
    %v2286 = vand.u32 2147483647, %v2276
    %vm2287 = vcmp.eq.f32.partialorder %v2286, 8.507059e+37
    %v2288 = vand.u32 %v2276, 2147483648
    %v2289 = vor.u32 1.1754944e-38, %v2288
    %v2290 = vsel %vm2287, %v2289, %v2285
    %v2291 = vmul.f32 1.0, %v2290
    %v2292 = vadd.f32 %v2209, %v2250
    %v2293 = vxor.u32 %v2292, 2147483648
    %v2294 = vmul.f32 %v2293, 1.442695
    %v2295 = vpow.pop %v2294
    %v2296 = vadd.f32 %v2295, 1.0
    %v2297 = vrcp.pop %v2296
    %v2298 = vmul.f32 %v2296, %v2297
    %v2299 = vsub.f32 1.0, %v2298
    %v2300 = vmul.f32 %v2297, %v2299
    %v2301 = vadd.f32 %v2297, %v2300
    %vm2302 = vweird.f32 %v2296
    %vm2303 = vweird.f32 %v2297
    %vm2304 = vmor %vm2302, %vm2303
    %v2305 = vsel %vm2304, %v2297, %v2301
    %v2306 = vand.u32 2147483647, %v2296
    %vm2307 = vcmp.eq.f32.partialorder %v2306, 8.507059e+37
    %v2308 = vand.u32 %v2296, 2147483648
    %v2309 = vor.u32 1.1754944e-38, %v2308
    %v2310 = vsel %vm2307, %v2309, %v2305
    %v2311 = vmul.f32 1.0, %v2310
    %v2312 = vadd.f32 %v2270, %v1710
    %v2313 = vmul.f32 %v2291, %v2312
    %v2314 = vadd.f32 %v2210, %v2313
    %v2315 = vtanh.pop %v2314
    %v2316 = vsub.f32 1.0, %v2311
    %v2317 = vmul.f32 %v2316, %v2315
    %v2318 = vmul.f32 %v2311, %v2211
    %v2319 = vadd.f32 %v2317, %v2318
    %2320 = vst [vmem:[#allocation4] sm:$0xff] %v2319
    %v2321 = vmax.f32 %v2319, 0.0
    %v2322 = vld [vmem:[#allocation5] sm:$0xff]
    %v2323 = vadd.f32 %v2322, %v2321
    %2324 = vst [vmem:[#allocation5] sm:$0xff] %v2323
    %v2325 = vld [vmem:[#allocation6] sm:$0xff]
    %v2326 = vmax.f32 %v2325, %v2321
    %2327 = vst [vmem:[#allocation6] sm:$0xff] %v2326
    %v2328 = vld [vmem:[%s1108] sm:$0xff]
    %v2329 = vld [vmem:[%s1108 + $0x8] sm:$0xff]
    %v2330 = vld [vmem:[%s1108 + $0x10] sm:$0xff]
    %v2331 = vld [vmem:[#allocation4] sm:$0xff]
    %2332 = vmatpush.msra.mxu0 %v1601
    %2333 = vmatpush.msra.mxu0 %v1598
    %2334 = vmatpush.msra.mxu0 %v1595
    %2335 = vmatpush.msra.mxu0 %v1592
    %2336 = vmatpush.msra.mxu0 %v1589
    %2337 = vmatpush.msra.mxu0 %v1586
    %2338 = vmatpush.msra.mxu0 %v1583
    %2339 = vmatpush.msra.mxu0 %v1580
    %2340 = vmatpush.msra.mxu0 %v1577
    %2341 = vmatpush.msra.mxu0 %v1574
    %2342 = vmatpush.msra.mxu0 %v1571
    %2343 = vmatpush.msra.mxu0 %v1568
    %2344 = vmatpush.msra.mxu0 %v1565
    %2345 = vmatpush.msra.mxu0 %v1562
    %2346 = vmatpush.msra.mxu0 %v1559
    %2347 = vmatpush.msra.mxu0 %v1556
    %2348 = vmatmul.f32.gmra.mxu0 %v2331
    %v2349 = vpop.f32.mrf.mxu0
    %v2350 = vadd.f32 0.0, %v2349
    %2351 = vdwg.mxu0
    %2352 = vmatpush.msra.mxu0 %v1602
    %2353 = vmatpush.msra.mxu0 %v1599
    %2354 = vmatpush.msra.mxu0 %v1596
    %2355 = vmatpush.msra.mxu0 %v1593
    %2356 = vmatpush.msra.mxu0 %v1590
    %2357 = vmatpush.msra.mxu0 %v1587
    %2358 = vmatpush.msra.mxu0 %v1584
    %2359 = vmatpush.msra.mxu0 %v1581
    %2360 = vmatpush.msra.mxu0 %v1578
    %2361 = vmatpush.msra.mxu0 %v1575
    %2362 = vmatpush.msra.mxu0 %v1572
    %2363 = vmatpush.msra.mxu0 %v1569
    %2364 = vmatpush.msra.mxu0 %v1566
    %2365 = vmatpush.msra.mxu0 %v1563
    %2366 = vmatpush.msra.mxu0 %v1560
    %2367 = vmatpush.msra.mxu0 %v1557
    %2368 = vmatmul.f32.gmra.mxu0 %v2331
    %v2369 = vpop.f32.mrf.mxu0
    %v2370 = vadd.f32 0.0, %v2369
    %2371 = vdwg.mxu0
    %2372 = vmatpush.msra.mxu0 %v1603
    %2373 = vmatpush.msra.mxu0 %v1600
    %2374 = vmatpush.msra.mxu0 %v1597
    %2375 = vmatpush.msra.mxu0 %v1594
    %2376 = vmatpush.msra.mxu0 %v1591
    %2377 = vmatpush.msra.mxu0 %v1588
    %2378 = vmatpush.msra.mxu0 %v1585
    %2379 = vmatpush.msra.mxu0 %v1582
    %2380 = vmatpush.msra.mxu0 %v1579
    %2381 = vmatpush.msra.mxu0 %v1576
    %2382 = vmatpush.msra.mxu0 %v1573
    %2383 = vmatpush.msra.mxu0 %v1570
    %2384 = vmatpush.msra.mxu0 %v1567
    %2385 = vmatpush.msra.mxu0 %v1564
    %2386 = vmatpush.msra.mxu0 %v1561
    %2387 = vmatpush.msra.mxu0 %v1558
    %2388 = vmatmul.f32.gmra.mxu0 %v2331
    %v2389 = vpop.f32.mrf.mxu0
    %v2390 = vadd.f32 0.0, %v2389
    %2391 = vdwg.mxu0
    %v2392 = vadd.f32 %v2328, %v2350
    %v2393 = vxor.u32 %v2392, 2147483648
    %v2394 = vmul.f32 %v2393, 1.442695
    %v2395 = vpow.pop %v2394
    %v2396 = vadd.f32 %v2395, 1.0
    %v2397 = vrcp.pop %v2396
    %v2398 = vmul.f32 %v2396, %v2397
    %v2399 = vsub.f32 1.0, %v2398
    %v2400 = vmul.f32 %v2397, %v2399
    %v2401 = vadd.f32 %v2397, %v2400
    %vm2402 = vweird.f32 %v2396
    %vm2403 = vweird.f32 %v2397
    %vm2404 = vmor %vm2402, %vm2403
    %v2405 = vsel %vm2404, %v2397, %v2401
    %v2406 = vand.u32 2147483647, %v2396
    %vm2407 = vcmp.eq.f32.partialorder %v2406, 8.507059e+37
    %v2408 = vand.u32 %v2396, 2147483648
    %v2409 = vor.u32 1.1754944e-38, %v2408
    %v2410 = vsel %vm2407, %v2409, %v2405
    %v2411 = vmul.f32 1.0, %v2410
    %v2412 = vadd.f32 %v2329, %v2370
    %v2413 = vxor.u32 %v2412, 2147483648
    %v2414 = vmul.f32 %v2413, 1.442695
    %v2415 = vpow.pop %v2414
    %v2416 = vadd.f32 %v2415, 1.0
    %v2417 = vrcp.pop %v2416
    %v2418 = vmul.f32 %v2416, %v2417
    %v2419 = vsub.f32 1.0, %v2418
    %v2420 = vmul.f32 %v2417, %v2419
    %v2421 = vadd.f32 %v2417, %v2420
    %vm2422 = vweird.f32 %v2416
    %vm2423 = vweird.f32 %v2417
    %vm2424 = vmor %vm2422, %vm2423
    %v2425 = vsel %vm2424, %v2417, %v2421
    %v2426 = vand.u32 2147483647, %v2416
    %vm2427 = vcmp.eq.f32.partialorder %v2426, 8.507059e+37
    %v2428 = vand.u32 %v2416, 2147483648
    %v2429 = vor.u32 1.1754944e-38, %v2428
    %v2430 = vsel %vm2427, %v2429, %v2425
    %v2431 = vmul.f32 1.0, %v2430
    %v2432 = vadd.f32 %v2390, %v1710
    %v2433 = vmul.f32 %v2411, %v2432
    %v2434 = vadd.f32 %v2330, %v2433
    %v2435 = vtanh.pop %v2434
    %v2436 = vsub.f32 1.0, %v2431
    %v2437 = vmul.f32 %v2436, %v2435
    %v2438 = vmul.f32 %v2431, %v2331
    %v2439 = vadd.f32 %v2437, %v2438
    %2440 = vst [vmem:[#allocation4] sm:$0xff] %v2439
    %v2441 = vmax.f32 %v2439, 0.0
    %v2442 = vld [vmem:[#allocation5] sm:$0xff]
    %v2443 = vadd.f32 %v2442, %v2441
    %2444 = vst [vmem:[#allocation5] sm:$0xff] %v2443
    %v2445 = vld [vmem:[#allocation6] sm:$0xff]
    %v2446 = vmax.f32 %v2445, %v2441
    %2447 = vst [vmem:[#allocation6] sm:$0xff] %v2446
    %v2448 = vld [vmem:[%s1226] sm:$0xff]
    %v2449 = vld [vmem:[%s1226 + $0x8] sm:$0xff]
    %v2450 = vld [vmem:[%s1226 + $0x10] sm:$0xff]
    %v2451 = vld [vmem:[#allocation4] sm:$0xff]
    %2452 = vmatpush.msra.mxu0 %v1601
    %2453 = vmatpush.msra.mxu0 %v1598
    %2454 = vmatpush.msra.mxu0 %v1595
    %2455 = vmatpush.msra.mxu0 %v1592
    %2456 = vmatpush.msra.mxu0 %v1589
    %2457 = vmatpush.msra.mxu0 %v1586
    %2458 = vmatpush.msra.mxu0 %v1583
    %2459 = vmatpush.msra.mxu0 %v1580
    %2460 = vmatpush.msra.mxu0 %v1577
    %2461 = vmatpush.msra.mxu0 %v1574
    %2462 = vmatpush.msra.mxu0 %v1571
    %2463 = vmatpush.msra.mxu0 %v1568
    %2464 = vmatpush.msra.mxu0 %v1565
    %2465 = vmatpush.msra.mxu0 %v1562
    %2466 = vmatpush.msra.mxu0 %v1559
    %2467 = vmatpush.msra.mxu0 %v1556
    %2468 = vmatmul.f32.gmra.mxu0 %v2451
    %v2469 = vpop.f32.mrf.mxu0
    %v2470 = vadd.f32 0.0, %v2469
    %2471 = vdwg.mxu0
    %2472 = vmatpush.msra.mxu0 %v1602
    %2473 = vmatpush.msra.mxu0 %v1599
    %2474 = vmatpush.msra.mxu0 %v1596
    %2475 = vmatpush.msra.mxu0 %v1593
    %2476 = vmatpush.msra.mxu0 %v1590
    %2477 = vmatpush.msra.mxu0 %v1587
    %2478 = vmatpush.msra.mxu0 %v1584
    %2479 = vmatpush.msra.mxu0 %v1581
    %2480 = vmatpush.msra.mxu0 %v1578
    %2481 = vmatpush.msra.mxu0 %v1575
    %2482 = vmatpush.msra.mxu0 %v1572
    %2483 = vmatpush.msra.mxu0 %v1569
    %2484 = vmatpush.msra.mxu0 %v1566
    %2485 = vmatpush.msra.mxu0 %v1563
    %2486 = vmatpush.msra.mxu0 %v1560
    %2487 = vmatpush.msra.mxu0 %v1557
    %2488 = vmatmul.f32.gmra.mxu0 %v2451
    %v2489 = vpop.f32.mrf.mxu0
    %v2490 = vadd.f32 0.0, %v2489
    %2491 = vdwg.mxu0
    %2492 = vmatpush.msra.mxu0 %v1603
    %2493 = vmatpush.msra.mxu0 %v1600
    %2494 = vmatpush.msra.mxu0 %v1597
    %2495 = vmatpush.msra.mxu0 %v1594
    %2496 = vmatpush.msra.mxu0 %v1591
    %2497 = vmatpush.msra.mxu0 %v1588
    %2498 = vmatpush.msra.mxu0 %v1585
    %2499 = vmatpush.msra.mxu0 %v1582
    %2500 = vmatpush.msra.mxu0 %v1579
    %2501 = vmatpush.msra.mxu0 %v1576
    %2502 = vmatpush.msra.mxu0 %v1573
    %2503 = vmatpush.msra.mxu0 %v1570
    %2504 = vmatpush.msra.mxu0 %v1567
    %2505 = vmatpush.msra.mxu0 %v1564
    %2506 = vmatpush.msra.mxu0 %v1561
    %2507 = vmatpush.msra.mxu0 %v1558
    %2508 = vmatmul.f32.gmra.mxu0 %v2451
    %v2509 = vpop.f32.mrf.mxu0
    %v2510 = vadd.f32 0.0, %v2509
    %2511 = vdwg.mxu0
    %v2512 = vadd.f32 %v2448, %v2470
    %v2513 = vxor.u32 %v2512, 2147483648
    %v2514 = vmul.f32 %v2513, 1.442695
    %v2515 = vpow.pop %v2514
    %v2516 = vadd.f32 %v2515, 1.0
    %v2517 = vrcp.pop %v2516
    %v2518 = vmul.f32 %v2516, %v2517
    %v2519 = vsub.f32 1.0, %v2518
    %v2520 = vmul.f32 %v2517, %v2519
    %v2521 = vadd.f32 %v2517, %v2520
    %vm2522 = vweird.f32 %v2516
    %vm2523 = vweird.f32 %v2517
    %vm2524 = vmor %vm2522, %vm2523
    %v2525 = vsel %vm2524, %v2517, %v2521
    %v2526 = vand.u32 2147483647, %v2516
    %vm2527 = vcmp.eq.f32.partialorder %v2526, 8.507059e+37
    %v2528 = vand.u32 %v2516, 2147483648
    %v2529 = vor.u32 1.1754944e-38, %v2528
    %v2530 = vsel %vm2527, %v2529, %v2525
    %v2531 = vmul.f32 1.0, %v2530
    %v2532 = vadd.f32 %v2449, %v2490
    %v2533 = vxor.u32 %v2532, 2147483648
    %v2534 = vmul.f32 %v2533, 1.442695
    %v2535 = vpow.pop %v2534
    %v2536 = vadd.f32 %v2535, 1.0
    %v2537 = vrcp.pop %v2536
    %v2538 = vmul.f32 %v2536, %v2537
    %v2539 = vsub.f32 1.0, %v2538
    %v2540 = vmul.f32 %v2537, %v2539
    %v2541 = vadd.f32 %v2537, %v2540
    %vm2542 = vweird.f32 %v2536
    %vm2543 = vweird.f32 %v2537
    %vm2544 = vmor %vm2542, %vm2543
    %v2545 = vsel %vm2544, %v2537, %v2541
    %v2546 = vand.u32 2147483647, %v2536
    %vm2547 = vcmp.eq.f32.partialorder %v2546, 8.507059e+37
    %v2548 = vand.u32 %v2536, 2147483648
    %v2549 = vor.u32 1.1754944e-38, %v2548
    %v2550 = vsel %vm2547, %v2549, %v2545
    %v2551 = vmul.f32 1.0, %v2550
    %v2552 = vadd.f32 %v2510, %v1710
    %v2553 = vmul.f32 %v2531, %v2552
    %v2554 = vadd.f32 %v2450, %v2553
    %v2555 = vtanh.pop %v2554
    %v2556 = vsub.f32 1.0, %v2551
    %v2557 = vmul.f32 %v2556, %v2555
    %v2558 = vmul.f32 %v2551, %v2451
    %v2559 = vadd.f32 %v2557, %v2558
    %2560 = vst [vmem:[#allocation4] sm:$0xff] %v2559
    %v2561 = vmax.f32 %v2559, 0.0
    %v2562 = vld [vmem:[#allocation5] sm:$0xff]
    %v2563 = vadd.f32 %v2562, %v2561
    %2564 = vst [vmem:[#allocation5] sm:$0xff] %v2563
    %v2565 = vld [vmem:[#allocation6] sm:$0xff]
    %v2566 = vmax.f32 %v2565, %v2561
    %2567 = vst [vmem:[#allocation6] sm:$0xff] %v2566
    %v2568 = vld [vmem:[#allocation5] sm:$0xff]
    %v2569 = vmul.f32 %v2568, 0.125
    %v2570 = vld [vmem:[#allocation14] sm:$0xff]
    %v2571 = vld [vmem:[#allocation14 + $0x8] sm:$0xff]
    %v2572 = vld [vmem:[#allocation14 + $0x10] sm:$0xff]
    %v2573 = vld [vmem:[#allocation14 + $0x18] sm:$0xff]
    %v2574 = vld [vmem:[#allocation14 + $0x20] sm:$0xff]
    %v2575 = vld [vmem:[#allocation14 + $0x28] sm:$0xff]
    %v2576 = vld [vmem:[#allocation14 + $0x30] sm:$0xff]
    %v2577 = vld [vmem:[#allocation14 + $0x38] sm:$0xff]
    %v2578 = vld [vmem:[#allocation14 + $0x40] sm:$0xff]
    %v2579 = vld [vmem:[#allocation14 + $0x48] sm:$0xff]
    %v2580 = vld [vmem:[#allocation14 + $0x50] sm:$0xff]
    %v2581 = vld [vmem:[#allocation14 + $0x58] sm:$0xff]
    %v2582 = vld [vmem:[#allocation14 + $0x60] sm:$0xff]
    %v2583 = vld [vmem:[#allocation14 + $0x68] sm:$0xff]
    %v2584 = vld [vmem:[#allocation14 + $0x70] sm:$0xff]
    %v2585 = vld [vmem:[#allocation14 + $0x78] sm:$0xff]
    %v2586 = vld [vmem:[#allocation6] sm:$0xff]
    %v2587 = vld [vmem:[#allocation15] sm:$0xff]
    %v2588 = vld [vmem:[#allocation15 + $0x8] sm:$0xff]
    %v2589 = vld [vmem:[#allocation15 + $0x10] sm:$0xff]
    %v2590 = vld [vmem:[#allocation15 + $0x18] sm:$0xff]
    %v2591 = vld [vmem:[#allocation15 + $0x20] sm:$0xff]
    %v2592 = vld [vmem:[#allocation15 + $0x28] sm:$0xff]
    %v2593 = vld [vmem:[#allocation15 + $0x30] sm:$0xff]
    %v2594 = vld [vmem:[#allocation15 + $0x38] sm:$0xff]
    %v2595 = vld [vmem:[#allocation15 + $0x40] sm:$0xff]
    %v2596 = vld [vmem:[#allocation15 + $0x48] sm:$0xff]
    %v2597 = vld [vmem:[#allocation15 + $0x50] sm:$0xff]
    %v2598 = vld [vmem:[#allocation15 + $0x58] sm:$0xff]
    %v2599 = vld [vmem:[#allocation15 + $0x60] sm:$0xff]
    %v2600 = vld [vmem:[#allocation15 + $0x68] sm:$0xff]
    %v2601 = vld [vmem:[#allocation15 + $0x70] sm:$0xff]
    %v2602 = vld [vmem:[#allocation15 + $0x78] sm:$0xff]
    %2603 = vmatpush.msra.mxu0 %v2602
    %2604 = vmatpush.msra.mxu0 %v2601
    %2605 = vmatpush.msra.mxu0 %v2600
    %2606 = vmatpush.msra.mxu0 %v2599
    %2607 = vmatpush.msra.mxu0 %v2598
    %2608 = vmatpush.msra.mxu0 %v2597
    %2609 = vmatpush.msra.mxu0 %v2596
    %2610 = vmatpush.msra.mxu0 %v2595
    %2611 = vmatpush.msra.mxu0 %v2594
    %2612 = vmatpush.msra.mxu0 %v2593
    %2613 = vmatpush.msra.mxu0 %v2592
    %2614 = vmatpush.msra.mxu0 %v2591
    %2615 = vmatpush.msra.mxu0 %v2590
    %2616 = vmatpush.msra.mxu0 %v2589
    %2617 = vmatpush.msra.mxu0 %v2588
    %2618 = vmatpush.msra.mxu0 %v2587
    %2619 = vmatmul.f32.gmra.mxu0 %v2586
    %v2620 = vpop.f32.mrf.mxu0
    %v2621 = vadd.f32 0.0, %v2620
    %2622 = vdwg.mxu0
    %2623 = vmatpush.msra.mxu0 %v2585
    %2624 = vmatpush.msra.mxu0 %v2584
    %2625 = vmatpush.msra.mxu0 %v2583
    %2626 = vmatpush.msra.mxu0 %v2582
    %2627 = vmatpush.msra.mxu0 %v2581
    %2628 = vmatpush.msra.mxu0 %v2580
    %2629 = vmatpush.msra.mxu0 %v2579
    %2630 = vmatpush.msra.mxu0 %v2578
    %2631 = vmatpush.msra.mxu0 %v2577
    %2632 = vmatpush.msra.mxu0 %v2576
    %2633 = vmatpush.msra.mxu0 %v2575
    %2634 = vmatpush.msra.mxu0 %v2574
    %2635 = vmatpush.msra.mxu0 %v2573
    %2636 = vmatpush.msra.mxu0 %v2572
    %2637 = vmatpush.msra.mxu0 %v2571
    %2638 = vmatpush.msra.mxu0 %v2570
    %2639 = vmatmul.f32.gmra.mxu0 %v2569
    %v2640 = vpop.f32.mrf.mxu0
    %v2641 = vadd.f32 %v2621, %v2640
    %2642 = vdwg.mxu0
    %v2643 = vld [vmem:[%s11] sm:$0x1]
    %v2645 = vperm.slane %v2643, 0
    %v2647 = vadd.f32 %v2641, %v2645
    %2648 = vst [vmem:[%s12] sm:$0xff] %v2647
    // Predicated region
    $region74: #{motion_discriminator_forward.1} parent=1 // pred_check
      _
    $region75: #{motion_discriminator_forward.1} parent=1 // pred_check_branch
      %2650 = sbr.rel (0) target = $region77
    $region76: #{motion_discriminator_forward.1} parent=1 // pred_region
      _
    $region77: #{motion_discriminator_forward.1} parent=1 // pred_fallthru
      _
    // Predicated region
    $region78: #{motion_discriminator_forward.1} parent=1 // pred_check
      _
    $region79: #{motion_discriminator_forward.1} parent=1 // pred_check_branch
      %2652 = sbr.rel (0) target = $region81
    $region80: #{motion_discriminator_forward.1} parent=1 // pred_region
      _
    $region81: #{motion_discriminator_forward.1} parent=1 // pred_fallthru
      _
    %2653 = vsyncpa [#allocation8], 1
    %2654 = vsyncpa [#allocation10], 1
    %2655 = vsyncpa [#allocation13], 1
    %2656 = vsyncpa [#allocation16], 1

</llo_original>
